<compile_context>
chip_gen: v5e
topology: v5e:2x2
jax: 0.10.0
libtpu: 0.0.40
codegen_flags: <defaults>
</compile_context>

<pallas_src>
import functools

import jax
import jax.numpy as jnp
from jax.experimental import pallas as pl
from jax.experimental.pallas import tpu as pltpu

SCALING_FACTOR = 0.18215            # diffusers AutoencoderKL default
VMEM_LIMIT = 32 * 1024 * 1024       # safe on v5e/v6e/v7x at these tile sizes


def _fold_kx(w):
    """(3, 3, Cin, Cout) -> (3, 3*Cin, Cout): fold kx taps into the MXU K dim."""
    kh, kw, cin, cout = w.shape
    return w.reshape(kh, kw * cin, cout)


# ------------------------------ Pallas kernels -------------------------------

def _conv3x3_kernel(x_ref, w_ref, b_ref, o_ref, xp_ref, *, stride, apply_silu):
    """3x3 conv (stride 1, or fused stride 2) + optional SiLU, one batch item.

    x_ref : (1, H, W, Cin)     unpadded NHWC activations (bf16)
    w_ref : (3, 3*Cin, Cout)   kx taps folded into the contraction dim (bf16)
    b_ref : (1, Cout)          bias (f32)
    o_ref : (1, Ho, Wo, Cout)  Ho = H//stride, Wo = W//stride (bf16)
    xp_ref: VMEM scratch (H+2, W+2, Cin) — in-kernel zero-padded halo copy
    """
    H, W, Cin = x_ref.shape[1], x_ref.shape[2], x_ref.shape[3]
    Ho, Wo, Cout = o_ref.shape[1], o_ref.shape[2], o_ref.shape[3]

    # In-kernel zero padding (VMEM only) — replaces the glue-side jnp.pad pass.
    xp_ref[...] = jnp.zeros(xp_ref.shape, xp_ref.dtype)
    xp_ref[1:H + 1, 1:W + 1, :] = x_ref[0]

    w = w_ref[...]                                   # (3, 3*Cin, Cout)
    acc = jnp.zeros((Ho * Wo, Cout), jnp.float32)
    for ky in range(3):                              # unrolled at trace time
        if stride == 1:
            taps = [xp_ref[ky:ky + Ho, kx:kx + Wo, :] for kx in range(3)]
        else:
            # Fused stride-2: only the even output pixels are ever computed.
            taps = [xp_ref[pl.ds(ky, Ho, 2), pl.ds(kx, Wo, 2), :]
                    for kx in range(3)]
        # Fold the 3 kx taps into one fat contraction (K = 3*Cin).
        patch = jnp.concatenate(taps, axis=-1).reshape(Ho * Wo, 3 * Cin)
        acc = acc + jnp.dot(patch, w[ky], preferred_element_type=jnp.float32)

    acc = acc + b_ref[...]
    if apply_silu:
        acc = acc * (1.0 / (1.0 + jnp.exp(-acc)))    # SiLU in f32 (EUP exp)
    o_ref[0] = acc.reshape(Ho, Wo, Cout).astype(o_ref.dtype)


def _encode_tail_kernel(h_ref, wc_ref, bc_ref, wq_ref, bq_ref, noise_ref, o_ref,
                        hp_ref, *, scaling):
    """Fused tail: conv_out(3x3) -> quant_conv(1x1) -> split -> sample -> scale.

    h_ref    : (1, Hd, Wd, C)     bf16 activations
    wc_ref   : (3, 3*C, 2L)       conv_out weight, kx folded (bf16)
    bc_ref   : (1, 2L)            conv_out bias (f32)
    wq_ref   : (2L, 2L)           quant 1x1 weight (f32); bq_ref: (1, 2L)
    noise_ref: (1, Hd*Wd, L)      standard-normal noise (f32)
    o_ref    : (1, Hd*Wd, L)      scaled latent sample (f32)
    hp_ref   : VMEM scratch (Hd+2, Wd+2, C)
    """
    Hd, Wd, C = h_ref.shape[1], h_ref.shape[2], h_ref.shape[3]
    L2 = wc_ref.shape[2]
    L = L2 // 2
    M = Hd * Wd

    hp_ref[...] = jnp.zeros(hp_ref.shape, hp_ref.dtype)
    hp_ref[1:Hd + 1, 1:Wd + 1, :] = h_ref[0]

    wc = wc_ref[...]
    acc = jnp.zeros((M, L2), jnp.float32)
    for ky in range(3):
        taps = [hp_ref[ky:ky + Hd, kx:kx + Wd, :] for kx in range(3)]
        patch = jnp.concatenate(taps, axis=-1).reshape(M, 3 * C)
        acc = acc + jnp.dot(patch, wc[ky], preferred_element_type=jnp.float32)
    moments = acc + bc_ref[...]                               # conv_out (no act)

    # 1x1 quant conv: tiny channel matmul, stays entirely in VMEM/vregs.
    moments = jnp.dot(moments, wq_ref[...],
                      preferred_element_type=jnp.float32) + bq_ref[...]

    mean = moments[:, :L]
    logvar = jnp.clip(moments[:, L:L2], -30.0, 20.0)          # diffusers clamp
    std = jnp.exp(0.5 * logvar)                               # f32 exp
    z = (mean + std * noise_ref[0]) * scaling
    o_ref[0] = z.astype(o_ref.dtype)


# -------------------------------- wrappers -----------------------------------

def conv3x3(x, w, b, *, stride, apply_silu):
    """x: (N, H, W, Cin) NHWC bf16, w: (3,3,Cin,Cout) f32, b: (1,Cout) f32."""
    N, H, W, Cin = x.shape
    Cout = w.shape[-1]
    Ho, Wo = H // stride, W // stride
    wk = _fold_kx(w).astype(jnp.bfloat16)
    kernel = functools.partial(_conv3x3_kernel, stride=stride,
                               apply_silu=apply_silu)
    return pl.pallas_call(
        kernel,
        out_shape=jax.ShapeDtypeStruct((N, Ho, Wo, Cout), jnp.bfloat16),
        grid=(N,),
        in_specs=[
            pl.BlockSpec((1, H, W, Cin), lambda n: (n, 0, 0, 0)),
            pl.BlockSpec((3, 3 * Cin, Cout), lambda n: (0, 0, 0)),
            pl.BlockSpec((1, Cout), lambda n: (0, 0)),
        ],
        out_specs=pl.BlockSpec((1, Ho, Wo, Cout), lambda n: (n, 0, 0, 0)),
        scratch_shapes=[pltpu.VMEM((H + 2, W + 2, Cin), jnp.bfloat16)],
        compiler_params=pltpu.CompilerParams(
            dimension_semantics=("parallel",),
            vmem_limit_bytes=VMEM_LIMIT),
    )(x, wk, b)


def encode_tail(h, w_co, b_co, w_q, b_q, noise, scaling):
    """Fused conv_out + quant + sample. h: (N, Hd, Wd, C) bf16 -> (N, Hd*Wd, L) f32."""
    N, Hd, Wd, C = h.shape
    L2 = w_co.shape[-1]
    L = L2 // 2
    wc = _fold_kx(w_co).astype(jnp.bfloat16)
    kernel = functools.partial(_encode_tail_kernel, scaling=scaling)
    return pl.pallas_call(
        kernel,
        out_shape=jax.ShapeDtypeStruct((N, Hd * Wd, L), jnp.float32),
        grid=(N,),
        in_specs=[
            pl.BlockSpec((1, Hd, Wd, C), lambda n: (n, 0, 0, 0)),
            pl.BlockSpec((3, 3 * C, L2), lambda n: (0, 0, 0)),
            pl.BlockSpec((1, L2), lambda n: (0, 0)),
            pl.BlockSpec((L2, L2), lambda n: (0, 0)),
            pl.BlockSpec((1, L2), lambda n: (0, 0)),
            pl.BlockSpec((1, Hd * Wd, L), lambda n: (n, 0, 0)),
        ],
        out_specs=pl.BlockSpec((1, Hd * Wd, L), lambda n: (n, 0, 0)),
        scratch_shapes=[pltpu.VMEM((Hd + 2, Wd + 2, C), jnp.bfloat16)],
        compiler_params=pltpu.CompilerParams(
            dimension_semantics=("parallel",),
            vmem_limit_bytes=VMEM_LIMIT),
    )(h, wc, b_co, w_q, b_q, noise)


# ----------------------- mini-VAE parameters / forward -----------------------

def init_mini_vae_params(key, in_ch=3, hidden=32, latent=4):
    ks = jax.random.split(key, 4)
    s = 0.1
    return {
        "conv_in_w":  s * jax.random.normal(ks[0], (3, 3, in_ch, hidden), jnp.float32),
        "conv_in_b":  jnp.zeros((1, hidden), jnp.float32),
        "down_w":     s * jax.random.normal(ks[1], (3, 3, hidden, hidden), jnp.float32),
        "down_b":     jnp.zeros((1, hidden), jnp.float32),
        "conv_out_w": s * jax.random.normal(ks[2], (3, 3, hidden, 2 * latent), jnp.float32),
        "conv_out_b": jnp.zeros((1, 2 * latent), jnp.float32),
        "quant_w":    s * jax.random.normal(ks[3], (2 * latent, 2 * latent), jnp.float32),
        "quant_b":    jnp.zeros((1, 2 * latent), jnp.float32),
        "scaling_factor": SCALING_FACTOR,
    }


def mini_vae_encode_sample(x_nchw, params, noise_key):
    """encode(x).latent_dist.sample() * scaling_factor  for one vae."""
    x = jnp.transpose(x_nchw, (0, 2, 3, 1)).astype(jnp.bfloat16)   # NCHW -> NHWC
    h = conv3x3(x, params["conv_in_w"], params["conv_in_b"],
                stride=1, apply_silu=True)
    h = conv3x3(h, params["down_w"], params["down_b"],
                stride=2, apply_silu=True)                         # fused /2
    N, Hd, Wd, _ = h.shape
    L = params["quant_w"].shape[-1] // 2
    noise = jax.random.normal(noise_key, (N, Hd * Wd, L), jnp.float32)
    z = encode_tail(h, params["conv_out_w"], params["conv_out_b"],
                    params["quant_w"], params["quant_b"], noise,
                    params["scaling_factor"])                      # (N, Hd*Wd, L)
    z = z.reshape(N, Hd, Wd, L)
    return jnp.transpose(z, (0, 3, 1, 2))                          # NHWC -> NCHW


class VAEEncode:
    """JAX/Pallas analogue of the PyTorch VAE_encode module."""

    def __init__(self, vae_params, vae_b2a_params=None):
        self.vae = vae_params
        self.vae_b2a = vae_b2a_params

    def __call__(self, x, direction, noise_key):
        assert direction in ["a2b", "b2a"]
        params = self.vae if direction == "a2b" else self.vae_b2a
        return mini_vae_encode_sample(x, params, noise_key)


# ---------------------------------- main --------------------------------------

if __name__ == "__main__":
    key = jax.random.PRNGKey(0)
    k_x, k_a2b, k_b2a, k_na, k_nb = jax.random.split(key, 5)

    # Small RGB "fundus" image batch: NCHW, like the PyTorch module expects.
    x = jax.random.normal(k_x, (2, 3, 16, 16), jnp.float32)

    vae_a2b = init_mini_vae_params(k_a2b)
    vae_b2a = init_mini_vae_params(k_b2a)
    enc = VAEEncode(vae_a2b, vae_b2a)

    # Independent noise per call (matches per-call .sample() semantics).
    z_a2b = enc(x, "a2b", k_na)
    z_b2a = enc(x, "b2a", k_nb)
    jax.block_until_ready(z_a2b)
    jax.block_until_ready(z_b2a)

    assert z_a2b.shape == (2, 4, 8, 8), z_a2b.shape
    assert z_b2a.shape == (2, 4, 8, 8), z_b2a.shape
    assert bool(jnp.all(jnp.isfinite(z_a2b))) and bool(jnp.all(jnp.isfinite(z_b2a)))

    print("KERNEL_OK")
</pallas_src>

<mosaic_0001>
module attributes {stable_mosaic.version = 11 : i64} {
  func.func @_conv3x3_kernel(%arg0: i32, %arg1: memref<1x16x16x3xbf16, #tpu.memory_space<vmem>>, %arg2: memref<3x9x32xbf16, #tpu.memory_space<vmem>>, %arg3: memref<1x32xf32, #tpu.memory_space<vmem>>, %arg4: memref<1x16x16x32xbf16, #tpu.memory_space<vmem>>, %arg5: memref<18x18x3xbf16, #tpu.memory_space<vmem>>) attributes {dimension_semantics = [#tpu.dimension_semantics<parallel>], iteration_bounds = array<i64: 2>, scalar_prefetch = 0 : i64, scratch_operands = 1 : i64, tpu.core_type = #tpu.core_type<tc>, window_params = [{transform_indices = @transform_0, window_bounds = array<i64: 1, 16, 16, 3>}, {pipeline_mode = #tpu.pipeline_mode<synchronous>, transform_indices = @transform_1, window_bounds = array<i64: 3, 9, 32>}, {pipeline_mode = #tpu.pipeline_mode<synchronous>, transform_indices = @transform_2, window_bounds = array<i64: 1, 32>}, {transform_indices = @transform_3, window_bounds = array<i64: 1, 16, 16, 32>}]} {
    %cst = arith.constant 0.000000e+00 : bf16
    %0 = vector.broadcast %cst : bf16 to vector<18x18x3xbf16>
    %c0 = arith.constant 0 : index
    %c0_0 = arith.constant 0 : index
    %c0_1 = arith.constant 0 : index
    %1 = vector.load %arg5[%c0, %c0_0, %c0_1] : memref<18x18x3xbf16, #tpu.memory_space<vmem>>, vector<18x18x3xbf16>
    tpu.vector_store %arg5[%c0, %c0_0, %c0_1], %0 {strides = array<i32>} : memref<18x18x3xbf16, #tpu.memory_space<vmem>>, vector<18x18x3xbf16>,
    %c0_2 = arith.constant 0 : index
    %c0_3 = arith.constant 0 : index
    %c0_4 = arith.constant 0 : index
    %c0_5 = arith.constant 0 : index
    %2 = vector.load %arg1[%c0_2, %c0_3, %c0_4, %c0_5] : memref<1x16x16x3xbf16, #tpu.memory_space<vmem>>, vector<1x16x16x3xbf16>
    %3 = vector.shape_cast %2 : vector<1x16x16x3xbf16> to vector<16x16x3xbf16>
    %c1 = arith.constant 1 : index
    %c1_6 = arith.constant 1 : index
    %c0_7 = arith.constant 0 : index
    %4 = vector.load %arg5[%c1, %c1_6, %c0_7] : memref<18x18x3xbf16, #tpu.memory_space<vmem>>, vector<16x16x3xbf16>
    tpu.vector_store %arg5[%c1, %c1_6, %c0_7], %3 {strides = array<i32>} : memref<18x18x3xbf16, #tpu.memory_space<vmem>>, vector<16x16x3xbf16>,
    %c0_8 = arith.constant 0 : index
    %c0_9 = arith.constant 0 : index
    %c0_10 = arith.constant 0 : index
    %5 = vector.load %arg2[%c0_8, %c0_9, %c0_10] : memref<3x9x32xbf16, #tpu.memory_space<vmem>>, vector<3x9x32xbf16>
    %cst_11 = arith.constant 0.000000e+00 : f32
    %6 = vector.broadcast %cst_11 : f32 to vector<256x32xf32>
    %c0_12 = arith.constant 0 : index
    %c0_13 = arith.constant 0 : index
    %c0_14 = arith.constant 0 : index
    %7 = vector.load %arg5[%c0_12, %c0_13, %c0_14] : memref<18x18x3xbf16, #tpu.memory_space<vmem>>, vector<16x16x3xbf16>
    %c0_15 = arith.constant 0 : index
    %c1_16 = arith.constant 1 : index
    %c0_17 = arith.constant 0 : index
    %8 = vector.load %arg5[%c0_15, %c1_16, %c0_17] : memref<18x18x3xbf16, #tpu.memory_space<vmem>>, vector<16x16x3xbf16>
    %c0_18 = arith.constant 0 : index
    %c2 = arith.constant 2 : index
    %c0_19 = arith.constant 0 : index
    %9 = vector.load %arg5[%c0_18, %c2, %c0_19] : memref<18x18x3xbf16, #tpu.memory_space<vmem>>, vector<16x16x3xbf16>
    %10 = tpu.concatenate %7, %8, %9 in 2 : vector<16x16x3xbf16>, vector<16x16x3xbf16>, vector<16x16x3xbf16> -> vector<16x16x9xbf16>
    %11 = vector.shape_cast %10 : vector<16x16x9xbf16> to vector<256x9xbf16>
    %12 = vector.extract_strided_slice %5 {offsets = [0, 0, 0], sizes = [1, 9, 32], strides = [1, 1, 1]} : vector<3x9x32xbf16> to vector<1x9x32xbf16>
    %13 = vector.shape_cast %12 : vector<1x9x32xbf16> to vector<9x32xbf16>
    %cst_20 = arith.constant dense<0.000000e+00> : vector<256x32xf32>
    %14 = tpu.matmul %11, %13, %cst_20 {dimension_numbers = #tpu.dot_dimension_numbers<[1], [0], [0], [1], [0, 0, 1, 1], [], []>} : vector<256x9xbf16>, vector<9x32xbf16>, vector<256x32xf32> -> vector<256x32xf32>
    %15 = arith.addf %6, %14 : vector<256x32xf32>
    %c1_21 = arith.constant 1 : index
    %c0_22 = arith.constant 0 : index
    %c0_23 = arith.constant 0 : index
    %16 = vector.load %arg5[%c1_21, %c0_22, %c0_23] : memref<18x18x3xbf16, #tpu.memory_space<vmem>>, vector<16x16x3xbf16>
    %c1_24 = arith.constant 1 : index
    %c1_25 = arith.constant 1 : index
    %c0_26 = arith.constant 0 : index
    %17 = vector.load %arg5[%c1_24, %c1_25, %c0_26] : memref<18x18x3xbf16, #tpu.memory_space<vmem>>, vector<16x16x3xbf16>
    %c1_27 = arith.constant 1 : index
    %c2_28 = arith.constant 2 : index
    %c0_29 = arith.constant 0 : index
    %18 = vector.load %arg5[%c1_27, %c2_28, %c0_29] : memref<18x18x3xbf16, #tpu.memory_space<vmem>>, vector<16x16x3xbf16>
    %19 = tpu.concatenate %16, %17, %18 in 2 : vector<16x16x3xbf16>, vector<16x16x3xbf16>, vector<16x16x3xbf16> -> vector<16x16x9xbf16>
    %20 = vector.shape_cast %19 : vector<16x16x9xbf16> to vector<256x9xbf16>
    %21 = vector.extract_strided_slice %5 {offsets = [1, 0, 0], sizes = [1, 9, 32], strides = [1, 1, 1]} : vector<3x9x32xbf16> to vector<1x9x32xbf16>
    %22 = vector.shape_cast %21 : vector<1x9x32xbf16> to vector<9x32xbf16>
    %cst_30 = arith.constant dense<0.000000e+00> : vector<256x32xf32>
    %23 = tpu.matmul %20, %22, %cst_30 {dimension_numbers = #tpu.dot_dimension_numbers<[1], [0], [0], [1], [0, 0, 1, 1], [], []>} : vector<256x9xbf16>, vector<9x32xbf16>, vector<256x32xf32> -> vector<256x32xf32>
    %24 = arith.addf %15, %23 : vector<256x32xf32>
    %c2_31 = arith.constant 2 : index
    %c0_32 = arith.constant 0 : index
    %c0_33 = arith.constant 0 : index
    %25 = vector.load %arg5[%c2_31, %c0_32, %c0_33] : memref<18x18x3xbf16, #tpu.memory_space<vmem>>, vector<16x16x3xbf16>
    %c2_34 = arith.constant 2 : index
    %c1_35 = arith.constant 1 : index
    %c0_36 = arith.constant 0 : index
    %26 = vector.load %arg5[%c2_34, %c1_35, %c0_36] : memref<18x18x3xbf16, #tpu.memory_space<vmem>>, vector<16x16x3xbf16>
    %c2_37 = arith.constant 2 : index
    %c2_38 = arith.constant 2 : index
    %c0_39 = arith.constant 0 : index
    %27 = vector.load %arg5[%c2_37, %c2_38, %c0_39] : memref<18x18x3xbf16, #tpu.memory_space<vmem>>, vector<16x16x3xbf16>
    %28 = tpu.concatenate %25, %26, %27 in 2 : vector<16x16x3xbf16>, vector<16x16x3xbf16>, vector<16x16x3xbf16> -> vector<16x16x9xbf16>
    %29 = vector.shape_cast %28 : vector<16x16x9xbf16> to vector<256x9xbf16>
    %30 = vector.extract_strided_slice %5 {offsets = [2, 0, 0], sizes = [1, 9, 32], strides = [1, 1, 1]} : vector<3x9x32xbf16> to vector<1x9x32xbf16>
    %31 = vector.shape_cast %30 : vector<1x9x32xbf16> to vector<9x32xbf16>
    %cst_40 = arith.constant dense<0.000000e+00> : vector<256x32xf32>
    %32 = tpu.matmul %29, %31, %cst_40 {dimension_numbers = #tpu.dot_dimension_numbers<[1], [0], [0], [1], [0, 0, 1, 1], [], []>} : vector<256x9xbf16>, vector<9x32xbf16>, vector<256x32xf32> -> vector<256x32xf32>
    %33 = arith.addf %24, %32 : vector<256x32xf32>
    %c0_41 = arith.constant 0 : index
    %c0_42 = arith.constant 0 : index
    %34 = vector.load %arg3[%c0_41, %c0_42] : memref<1x32xf32, #tpu.memory_space<vmem>>, vector<1x32xf32>
    %35 = vector.broadcast %34 : vector<1x32xf32> to vector<256x32xf32>
    %36 = arith.addf %33, %35 : vector<256x32xf32>
    %cst_43 = arith.constant 0.000000e+00 : f32
    %37 = vector.broadcast %cst_43 : f32 to vector<256x32xf32>
    %38 = arith.subf %37, %36 : vector<256x32xf32>
    %39 = math.exp %38 : vector<256x32xf32>
    %cst_44 = arith.constant 1.000000e+00 : f32
    %40 = vector.broadcast %cst_44 : f32 to vector<256x32xf32>
    %41 = arith.addf %40, %39 : vector<256x32xf32>
    %cst_45 = arith.constant 1.000000e+00 : f32
    %42 = vector.broadcast %cst_45 : f32 to vector<256x32xf32>
    %43 = arith.divf %42, %41 : vector<256x32xf32>
    %44 = arith.mulf %36, %43 : vector<256x32xf32>
    %45 = vector.shape_cast %44 : vector<256x32xf32> to vector<16x16x32xf32>
    %46 = arith.truncf %45 : vector<16x16x32xf32> to vector<16x16x32xbf16>
    %c0_46 = arith.constant 0 : index
    %c0_47 = arith.constant 0 : index
    %c0_48 = arith.constant 0 : index
    %c0_49 = arith.constant 0 : index
    %47 = vector.load %arg4[%c0_46, %c0_47, %c0_48, %c0_49] : memref<1x16x16x32xbf16, #tpu.memory_space<vmem>>, vector<1x16x16x32xbf16>
    %48 = vector.shape_cast %47 : vector<1x16x16x32xbf16> to vector<16x16x32xbf16>
    %49 = vector.shape_cast %46 : vector<16x16x32xbf16> to vector<1x16x16x32xbf16>
    tpu.vector_store %arg4[%c0_46, %c0_47, %c0_48, %c0_49], %49 {strides = array<i32>} : memref<1x16x16x32xbf16, #tpu.memory_space<vmem>>, vector<1x16x16x32xbf16>,
    return
  }
  func.func @transform_0(%arg0: i32) -> (i32, i32, i32, i32) {
    %c0_i32 = arith.constant 0 : i32
    %c0_i32_0 = arith.constant 0 : i32
    %c0_i32_1 = arith.constant 0 : i32
    %c0_i32_2 = arith.constant 0 : i32
    return %arg0, %c0_i32, %c0_i32_0, %c0_i32_1 : i32, i32, i32, i32
  }
  func.func @transform_1(%arg0: i32) -> (i32, i32, i32) {
    %c0_i32 = arith.constant 0 : i32
    %c0_i32_0 = arith.constant 0 : i32
    %c0_i32_1 = arith.constant 0 : i32
    %c0_i32_2 = arith.constant 0 : i32
    return %c0_i32, %c0_i32_0, %c0_i32_1 : i32, i32, i32
  }
  func.func @transform_2(%arg0: i32) -> (i32, i32) {
    %c0_i32 = arith.constant 0 : i32
    %c0_i32_0 = arith.constant 0 : i32
    %c0_i32_1 = arith.constant 0 : i32
    return %c0_i32, %c0_i32_0 : i32, i32
  }
  func.func @transform_3(%arg0: i32) -> (i32, i32, i32, i32) {
    %c0_i32 = arith.constant 0 : i32
    %c0_i32_0 = arith.constant 0 : i32
    %c0_i32_1 = arith.constant 0 : i32
    %c0_i32_2 = arith.constant 0 : i32
    return %arg0, %c0_i32, %c0_i32_0, %c0_i32_1 : i32, i32, i32, i32
  }
}

</mosaic_0001>

<llo_original>
// kernel: tpu_custom_call.1
$region0: #{tpu_custom_call.1}
  #allocation0 [shape = 'u32[]', space=smem, size = 0x4, offset = 0x4, fixed_abs, tag = 'smem constant byte address 0x4 - core index']
  #allocation1 [shape = 'u32[72,128]{1,0:T(1,128)}', space=vmem, size = 0x9000, scoped, tag = 'internal scratch']
  #allocation2 [shape = 'bf16[18,18,3]{2,1,0:T(8,128)(2,1)}', space=vmem, size = 0x1b000, scoped, tag = 'scratch operand']
  %s0 = inlined_call_operand.vmem [shape: bf16[2,16,16,3], index: 0, kind: input, shape index: {}]
  %s1 = inlined_call_operand.vmem [shape: bf16[3,9,32], index: 1, kind: input, shape index: {}]
  %s2 = inlined_call_operand.vmem [shape: f32[1,32], index: 2, kind: input, shape index: {}]
  %s3 = inlined_call_operand.hbm [shape: bf16[2,16,16,32], index: 3, kind: output, shape index: {}]
  %s4 = sld [smem:[#allocation0]]
  $region45: #{tpu_custom_call.1} parent=0
    _
  %s6 = ssub.s32 1, %s4
  %s7 = scalar_select 0, %s6, %s4
  $region1: #{tpu_custom_call.1} parent=0
    #allocation3 [shape = 'u8[131072]{0}', space=vmem, size = 0x20000, scoped, tag = 'output window, operand 0']
    #allocation4 [shape = 's32[2]{0}', space=sflag, size = 0x8, scoped, tag = 'scoped memory for tpu_custom_call.1']
    %8 = vsyncpa [#allocation4], 0
    %s9 = scalar_lea.sflag [#allocation4], 1
    %10 = vsyncpa %s9, 0
    loop: start=0, step=1, limit=4
    $region2: #{tpu_custom_call.1} parent=1 // loop_pre_header
      _
    $region3: #{tpu_custom_call.1} parent=1 // loop_header
      %s12 = sphi 0, %s16
      %p13 = scmp.ge.s32.totalorder %s12, 4
      %s22 = sphi 0, %s24
      %s25 = sphi 0, %s22
      %s26 = sphi 0, %s25
      %s42 = sphi 0, %s26
      %s46 = sphi 0, %s46
      %s48 = sphi 0, %s46
      %s49 = sphi 0, %s48
      %s63 = sphi 0, %s49
      %s67 = sphi 0, %s67
      %s69 = sphi 0, %s67
      %s70 = sphi 0, %s69
      %s84 = sphi 0, %s70
      %s90 = sphi 0, %s92
      %s93 = sphi 0, %s90
      %s94 = sphi 0, %s93
      %s110 = sphi 0, %s94
    $region4: #{tpu_custom_call.1} parent=1 // loop_header_branch
      %15 = sbr.rel (%p13) target = $region8
    $region5: #{tpu_custom_call.1} parent=1 // loop_body
      %s17 = ssub.s32 %s12, 1
      %s18 = ssub.s32 %s12, 2
      %s19 = sadd.s32 %s12, 1
      %s20 = ssub.s32 %s12, %s19
      %p21 = scmp.eq.s32.totalorder %s20, 0
      %s23 = sadd.s32 %s22, 1
      %s24 = scalar_select %p21, %s22, %s23
      %p27 = pneg %p21
      %p28 = scmp.eq.s32.totalorder %s12, 1
      %p29 = por %p27, %p28
      %p30 = scmp.ne.s32.totalorder %s22, %s25
      %p31 = scmp.eq.s32.totalorder %s12, 0
      %p32 = por %p30, %p31
      %p33 = scmp.ne.s32.totalorder %s22, %s25
      %p34 = scmp.eq.s32.totalorder %s17, 1
      %p35 = por %p33, %p34
      %p36 = scmp.ne.s32.totalorder %s25, %s26
      %p37 = scmp.eq.s32.totalorder %s17, 0
      %p38 = por %p36, %p37
      %p39 = scmp.ne.s32.totalorder %s25, %s26
      %p40 = scmp.eq.s32.totalorder %s18, 1
      %p41 = por %p39, %p40
      %p43 = scmp.ne.s32.totalorder %s26, %s42
      %p44 = scmp.eq.s32.totalorder %s18, 0
      %p45 = por %p43, %p44
      %s47 = sadd.s32 %s46, 1
      %p50 = scmp.eq.s32.totalorder %s12, 1
      %p51 = scmp.ne.s32.totalorder %s46, %s48
      %p52 = scmp.eq.s32.totalorder %s12, 0
      %p53 = por %p51, %p52
      %p54 = scmp.ne.s32.totalorder %s46, %s48
      %p55 = scmp.eq.s32.totalorder %s17, 1
      %p56 = por %p54, %p55
      %p57 = scmp.ne.s32.totalorder %s48, %s49
      %p58 = scmp.eq.s32.totalorder %s17, 0
      %p59 = por %p57, %p58
      %p60 = scmp.ne.s32.totalorder %s48, %s49
      %p61 = scmp.eq.s32.totalorder %s18, 1
      %p62 = por %p60, %p61
      %p64 = scmp.ne.s32.totalorder %s49, %s63
      %p65 = scmp.eq.s32.totalorder %s18, 0
      %p66 = por %p64, %p65
      %s68 = sadd.s32 %s67, 1
      %p71 = scmp.eq.s32.totalorder %s12, 1
      %p72 = scmp.ne.s32.totalorder %s67, %s69
      %p73 = scmp.eq.s32.totalorder %s12, 0
      %p74 = por %p72, %p73
      %p75 = scmp.ne.s32.totalorder %s67, %s69
      %p76 = scmp.eq.s32.totalorder %s17, 1
      %p77 = por %p75, %p76
      %p78 = scmp.ne.s32.totalorder %s69, %s70
      %p79 = scmp.eq.s32.totalorder %s17, 0
      %p80 = por %p78, %p79
      %p81 = scmp.ne.s32.totalorder %s69, %s70
      %p82 = scmp.eq.s32.totalorder %s18, 1
      %p83 = por %p81, %p82
      %p85 = scmp.ne.s32.totalorder %s70, %s84
      %p86 = scmp.eq.s32.totalorder %s18, 0
      %p87 = por %p85, %p86
      %s88 = ssub.s32 %s12, %s19
      %p89 = scmp.eq.s32.totalorder %s88, 0
      %s91 = sadd.s32 %s90, 1
      %s92 = scalar_select %p89, %s90, %s91
      %p95 = pneg %p89
      %p96 = scmp.eq.s32.totalorder %s12, 1
      %p97 = por %p95, %p96
      %p98 = scmp.ne.s32.totalorder %s90, %s93
      %p99 = scmp.eq.s32.totalorder %s12, 0
      %p100 = por %p98, %p99
      %p101 = scmp.ne.s32.totalorder %s90, %s93
      %p102 = scmp.eq.s32.totalorder %s17, 1
      %p103 = por %p101, %p102
      %p104 = scmp.ne.s32.totalorder %s93, %s94
      %p105 = scmp.eq.s32.totalorder %s17, 0
      %p106 = por %p104, %p105
      %p107 = scmp.ne.s32.totalorder %s93, %s94
      %p108 = scmp.eq.s32.totalorder %s18, 1
      %p109 = por %p107, %p108
      %p111 = scmp.ne.s32.totalorder %s94, %s110
      %p112 = scmp.eq.s32.totalorder %s18, 0
      %p113 = por %p111, %p112
      %p114 = scmp.le.s32.totalorder 1, %s12
      %p115 = scmp.lt.s32.totalorder %s12, 3
      %p116 = pnand %p114, %p115
      %p117 = pneg %p116
      // Predicated region
      $region9: #{tpu_custom_call.1} parent=5 // pred_check
        _
      $region10: #{tpu_custom_call.1} parent=5 // pred_check_branch
        %119 = sbr.rel (%p116) target = $region12
      $region11: #{tpu_custom_call.1} parent=5 // pred_region
        %s120 = ssub.s32 %s12, 1
        // Predicated region
        $region13: #{tpu_custom_call.1} parent=11 // pred_check
          %p121 = pneg %p59
        $region14: #{tpu_custom_call.1} parent=11 // pred_check_branch
          %123 = sbr.rel (%p121) target = $region16
        $region15: #{tpu_custom_call.1} parent=11 // pred_region
          _
        $region16: #{tpu_custom_call.1} parent=11 // pred_fallthru
          _
        // Predicated region
        $region17: #{tpu_custom_call.1} parent=11 // pred_check
          %p124 = pneg %p80
        $region18: #{tpu_custom_call.1} parent=11 // pred_check_branch
          %126 = sbr.rel (%p124) target = $region20
        $region19: #{tpu_custom_call.1} parent=11 // pred_region
          _
        $region20: #{tpu_custom_call.1} parent=11 // pred_fallthru
          _
      $region12: #{tpu_custom_call.1} parent=5 // pred_fallthru
        _
      %p127 = scmp.lt.s32.totalorder %s12, 2
      // Predicated region
      $region21: #{tpu_custom_call.1} parent=5 // pred_check
        %p128 = pneg %p127
      $region22: #{tpu_custom_call.1} parent=5 // pred_check_branch
        %130 = sbr.rel (%p128) target = $region24
      $region23: #{tpu_custom_call.1} parent=5 // pred_region
        // Predicated region
        $region25: #{tpu_custom_call.1} parent=23 // pred_check
          %p131 = pneg %p32
        $region26: #{tpu_custom_call.1} parent=23 // pred_check_branch
          %133 = sbr.rel (%p131) target = $region28
        $region27: #{tpu_custom_call.1} parent=23 // pred_region
          %p134 = scmp.lt.s32.totalorder %s12, 1
          %s135 = scalar_select %p134, %s12, 1
          %s136 = smul.addr %s135, 32
          %s137 = smul.addr %s136, 4
          %s138 = scalar_lea.vmem %s0, %s137
        $region28: #{tpu_custom_call.1} parent=23 // pred_fallthru
          _
      $region24: #{tpu_custom_call.1} parent=5 // pred_fallthru
        _
      %p139 = scmp.le.s32.totalorder 1, %s12
      %p140 = scmp.lt.s32.totalorder %s12, 3
      %p141 = pnand %p139, %p140
      %p142 = pneg %p141
      // Predicated region
      $region29: #{tpu_custom_call.1} parent=5 // pred_check
        _
      $region30: #{tpu_custom_call.1} parent=5 // pred_check_branch
        %144 = sbr.rel (%p141) target = $region32
      $region31: #{tpu_custom_call.1} parent=5 // pred_region
        %s145 = ssub.s32 %s12, 1
        %p146 = scmp.lt.s32.totalorder %s17, 1
        %s147 = scalar_select %p146, %s17, 1
        %s148 = smul.addr %s147, 32
        %s149 = smul.addr %s148, 4
        %s150 = scalar_lea.vmem %s0, %s149
        %p151 = pneg %p38
        %p152 = pneg %p35
        %p153 = pneg %p59
        %p154 = pneg %p56
        %p155 = pneg %p80
        %p156 = pneg %p77
        %p157 = pneg %p106
        %p158 = pneg %p103
        %s159 = sand.u32 %s93, 1
        %s160 = scalar_lea.sflag [#allocation4], %s159
        %s161 = sand.u32 %s93, 1
        %s162 = smul.addr %s161, 128
        %s163 = scalar_lea.vmem [#allocation3], %s162
        %p164 = scmp.lt.s32.totalorder %s17, 1
        %s165 = scalar_select %p164, %s17, 1
        %s166 = smul.addr %s165, 32
        %s167 = smul.addr %s166, 4
        %s168 = scalar_lea.vmem %s0, %s167
        %vm170 = vcmask 19456
        %171 = vst.msk [vmem:[#allocation2] sm:$0xf] %vm170, 0
        %172 = vst.msk [vmem:[#allocation2 + $0x4] sm:$0xf] %vm170, 0
        %vm173 = vcmask 16384
        %174 = vst.msk [vmem:[#allocation2 + $0x8] sm:$0x1] %vm173, 0
        %175 = vst.msk [vmem:[#allocation2 + $0xc] sm:$0xf] %vm170, 0
        %176 = vst.msk [vmem:[#allocation2 + $0x10] sm:$0xf] %vm170, 0
        %177 = vst.msk [vmem:[#allocation2 + $0x14] sm:$0x1] %vm173, 0
        %178 = vst.msk [vmem:[#allocation2 + $0x18] sm:$0xf] %vm170, 0
        %179 = vst.msk [vmem:[#allocation2 + $0x1c] sm:$0xf] %vm170, 0
        %180 = vst.msk [vmem:[#allocation2 + $0x20] sm:$0x1] %vm173, 0
        %181 = vst.msk [vmem:[#allocation2 + $0x24] sm:$0xf] %vm170, 0
        %182 = vst.msk [vmem:[#allocation2 + $0x28] sm:$0xf] %vm170, 0
        %183 = vst.msk [vmem:[#allocation2 + $0x2c] sm:$0x1] %vm173, 0
        %184 = vst.msk [vmem:[#allocation2 + $0x30] sm:$0xf] %vm170, 0
        %185 = vst.msk [vmem:[#allocation2 + $0x34] sm:$0xf] %vm170, 0
        %186 = vst.msk [vmem:[#allocation2 + $0x38] sm:$0x1] %vm173, 0
        %187 = vst.msk [vmem:[#allocation2 + $0x3c] sm:$0xf] %vm170, 0
        %188 = vst.msk [vmem:[#allocation2 + $0x40] sm:$0xf] %vm170, 0
        %189 = vst.msk [vmem:[#allocation2 + $0x44] sm:$0x1] %vm173, 0
        %190 = vst.msk [vmem:[#allocation2 + $0x48] sm:$0xf] %vm170, 0
        %191 = vst.msk [vmem:[#allocation2 + $0x4c] sm:$0xf] %vm170, 0
        %192 = vst.msk [vmem:[#allocation2 + $0x50] sm:$0x1] %vm173, 0
        %193 = vst.msk [vmem:[#allocation2 + $0x54] sm:$0xf] %vm170, 0
        %194 = vst.msk [vmem:[#allocation2 + $0x58] sm:$0xf] %vm170, 0
        %195 = vst.msk [vmem:[#allocation2 + $0x5c] sm:$0x1] %vm173, 0
        %196 = vst.msk [vmem:[#allocation2 + $0x60] sm:$0xf] %vm170, 0
        %197 = vst.msk [vmem:[#allocation2 + $0x64] sm:$0xf] %vm170, 0
        %198 = vst.msk [vmem:[#allocation2 + $0x68] sm:$0x1] %vm173, 0
        %199 = vst.msk [vmem:[#allocation2 + $0x6c] sm:$0xf] %vm170, 0
        %200 = vst.msk [vmem:[#allocation2 + $0x70] sm:$0xf] %vm170, 0
        %201 = vst.msk [vmem:[#allocation2 + $0x74] sm:$0x1] %vm173, 0
        %202 = vst.msk [vmem:[#allocation2 + $0x78] sm:$0xf] %vm170, 0
        %203 = vst.msk [vmem:[#allocation2 + $0x7c] sm:$0xf] %vm170, 0
        %204 = vst.msk [vmem:[#allocation2 + $0x80] sm:$0x1] %vm173, 0
        %205 = vst.msk [vmem:[#allocation2 + $0x84] sm:$0xf] %vm170, 0
        %206 = vst.msk [vmem:[#allocation2 + $0x88] sm:$0xf] %vm170, 0
        %207 = vst.msk [vmem:[#allocation2 + $0x8c] sm:$0x1] %vm173, 0
        %208 = vst.msk [vmem:[#allocation2 + $0x90] sm:$0xf] %vm170, 0
        %209 = vst.msk [vmem:[#allocation2 + $0x94] sm:$0xf] %vm170, 0
        %210 = vst.msk [vmem:[#allocation2 + $0x98] sm:$0x1] %vm173, 0
        %211 = vst.msk [vmem:[#allocation2 + $0x9c] sm:$0xf] %vm170, 0
        %212 = vst.msk [vmem:[#allocation2 + $0xa0] sm:$0xf] %vm170, 0
        %213 = vst.msk [vmem:[#allocation2 + $0xa4] sm:$0x1] %vm173, 0
        %214 = vst.msk [vmem:[#allocation2 + $0xa8] sm:$0xf] %vm170, 0
        %215 = vst.msk [vmem:[#allocation2 + $0xac] sm:$0xf] %vm170, 0
        %216 = vst.msk [vmem:[#allocation2 + $0xb0] sm:$0x1] %vm173, 0
        %217 = vst.msk [vmem:[#allocation2 + $0xb4] sm:$0xf] %vm170, 0
        %218 = vst.msk [vmem:[#allocation2 + $0xb8] sm:$0xf] %vm170, 0
        %219 = vst.msk [vmem:[#allocation2 + $0xbc] sm:$0x1] %vm173, 0
        %220 = vst.msk [vmem:[#allocation2 + $0xc0] sm:$0xf] %vm170, 0
        %221 = vst.msk [vmem:[#allocation2 + $0xc4] sm:$0xf] %vm170, 0
        %222 = vst.msk [vmem:[#allocation2 + $0xc8] sm:$0x1] %vm173, 0
        %223 = vst.msk [vmem:[#allocation2 + $0xcc] sm:$0xf] %vm170, 0
        %224 = vst.msk [vmem:[#allocation2 + $0xd0] sm:$0xf] %vm170, 0
        %225 = vst.msk [vmem:[#allocation2 + $0xd4] sm:$0x1] %vm173, 0
        %v226 = vld [vmem:[%s168] sm:$0xf]
        %v227 = vld [vmem:[%s168 + $0x4] sm:$0xf]
        %v228 = vld [vmem:[%s168 + $0x8] sm:$0xf]
        %v229 = vld [vmem:[%s168 + $0xc] sm:$0xf]
        %v230 = vld [vmem:[%s168 + $0x10] sm:$0xf]
        %v231 = vld [vmem:[%s168 + $0x14] sm:$0xf]
        %v232 = vld [vmem:[%s168 + $0x18] sm:$0xf]
        %v233 = vld [vmem:[%s168 + $0x1c] sm:$0xf]
        %v234 = vld [vmem:[%s168 + $0x20] sm:$0xf]
        %v235 = vld [vmem:[%s168 + $0x24] sm:$0xf]
        %v236 = vld [vmem:[%s168 + $0x28] sm:$0xf]
        %v237 = vld [vmem:[%s168 + $0x2c] sm:$0xf]
        %v238 = vld [vmem:[%s168 + $0x30] sm:$0xf]
        %v239 = vld [vmem:[%s168 + $0x34] sm:$0xf]
        %v240 = vld [vmem:[%s168 + $0x38] sm:$0xf]
        %v241 = vld [vmem:[%s168 + $0x3c] sm:$0xf]
        %v242 = vld [vmem:[%s168 + $0x40] sm:$0xf]
        %v243 = vld [vmem:[%s168 + $0x44] sm:$0xf]
        %v244 = vld [vmem:[%s168 + $0x48] sm:$0xf]
        %v245 = vld [vmem:[%s168 + $0x4c] sm:$0xf]
        %v246 = vld [vmem:[%s168 + $0x50] sm:$0xf]
        %v247 = vld [vmem:[%s168 + $0x54] sm:$0xf]
        %v248 = vld [vmem:[%s168 + $0x58] sm:$0xf]
        %v249 = vld [vmem:[%s168 + $0x5c] sm:$0xf]
        %v250 = vld [vmem:[%s168 + $0x60] sm:$0xf]
        %v251 = vld [vmem:[%s168 + $0x64] sm:$0xf]
        %v252 = vld [vmem:[%s168 + $0x68] sm:$0xf]
        %v253 = vld [vmem:[%s168 + $0x6c] sm:$0xf]
        %v254 = vld [vmem:[%s168 + $0x70] sm:$0xf]
        %v255 = vld [vmem:[%s168 + $0x74] sm:$0xf]
        %v256 = vld [vmem:[%s168 + $0x78] sm:$0xf]
        %v257 = vld [vmem:[%s168 + $0x7c] sm:$0xf]
        %vm258 = vsmask.f32 256
        %vm259 = vsmask.f32 4368
        %vm260 = vmor %vm258, %vm259
        %v262 = vshrl.u32 %v226, 16
        %v264 = vrot.slane %v262, 7
        %v265 = vshll.u32 %v226, 16
        %v267 = vor.u32 %v264, %v265
        %v268 = vrot.slane %v264, 4
        %v270 = vshrl.u32 %v227, 16
        %v272 = vrot.slane %v270, 7
        %v273 = vshll.u32 %v227, 16
        %v275 = vor.u32 %v272, %v273
        %v276 = vsel %vm260, %v268, %v275
        %v277 = vrot.slane %v272, 4
        %v279 = vshrl.u32 %v228, 16
        %v281 = vrot.slane %v279, 7
        %v282 = vshll.u32 %v228, 16
        %v284 = vor.u32 %v281, %v282
        %v285 = vrot.slane %v281, 4
        %v287 = vshrl.u32 %v229, 16
        %v289 = vrot.slane %v287, 7
        %v290 = vshll.u32 %v229, 16
        %v292 = vor.u32 %v289, %v290
        %v293 = vsel %vm260, %v285, %v292
        %v294 = vrot.slane %v289, 4
        %v296 = vshrl.u32 %v230, 16
        %v298 = vrot.slane %v296, 7
        %v299 = vshll.u32 %v230, 16
        %v301 = vor.u32 %v298, %v299
        %v302 = vrot.slane %v298, 4
        %v304 = vshrl.u32 %v231, 16
        %v306 = vrot.slane %v304, 7
        %v307 = vshll.u32 %v231, 16
        %v309 = vor.u32 %v306, %v307
        %v310 = vsel %vm260, %v302, %v309
        %v311 = vrot.slane %v306, 4
        %v313 = vshrl.u32 %v232, 16
        %v315 = vrot.slane %v313, 7
        %v316 = vshll.u32 %v232, 16
        %v318 = vor.u32 %v315, %v316
        %v319 = vrot.slane %v315, 4
        %v321 = vshrl.u32 %v233, 16
        %v323 = vrot.slane %v321, 7
        %v324 = vshll.u32 %v233, 16
        %v326 = vor.u32 %v323, %v324
        %v327 = vsel %vm260, %v319, %v326
        %v328 = vrot.slane %v323, 4
        %v330 = vshrl.u32 %v234, 16
        %v332 = vrot.slane %v330, 7
        %v333 = vshll.u32 %v234, 16
        %v335 = vor.u32 %v332, %v333
        %v336 = vrot.slane %v332, 4
        %v338 = vshrl.u32 %v235, 16
        %v340 = vrot.slane %v338, 7
        %v341 = vshll.u32 %v235, 16
        %v343 = vor.u32 %v340, %v341
        %v344 = vsel %vm260, %v336, %v343
        %v345 = vrot.slane %v340, 4
        %v347 = vshrl.u32 %v236, 16
        %v349 = vrot.slane %v347, 7
        %v350 = vshll.u32 %v236, 16
        %v352 = vor.u32 %v349, %v350
        %v353 = vrot.slane %v349, 4
        %v355 = vshrl.u32 %v237, 16
        %v357 = vrot.slane %v355, 7
        %v358 = vshll.u32 %v237, 16
        %v360 = vor.u32 %v357, %v358
        %v361 = vsel %vm260, %v353, %v360
        %v362 = vrot.slane %v357, 4
        %v364 = vshrl.u32 %v238, 16
        %v366 = vrot.slane %v364, 7
        %v367 = vshll.u32 %v238, 16
        %v369 = vor.u32 %v366, %v367
        %v370 = vrot.slane %v366, 4
        %v372 = vshrl.u32 %v239, 16
        %v374 = vrot.slane %v372, 7
        %v375 = vshll.u32 %v239, 16
        %v377 = vor.u32 %v374, %v375
        %v378 = vsel %vm260, %v370, %v377
        %v379 = vrot.slane %v374, 4
        %v381 = vshrl.u32 %v240, 16
        %v383 = vrot.slane %v381, 7
        %v384 = vshll.u32 %v240, 16
        %v386 = vor.u32 %v383, %v384
        %v387 = vrot.slane %v383, 4
        %v389 = vshrl.u32 %v241, 16
        %v391 = vrot.slane %v389, 7
        %v392 = vshll.u32 %v241, 16
        %v394 = vor.u32 %v391, %v392
        %v395 = vsel %vm260, %v387, %v394
        %v396 = vrot.slane %v391, 4
        %v398 = vshrl.u32 %v242, 16
        %v400 = vrot.slane %v398, 7
        %v401 = vshll.u32 %v242, 16
        %v403 = vor.u32 %v400, %v401
        %v404 = vrot.slane %v400, 4
        %v406 = vshrl.u32 %v243, 16
        %v408 = vrot.slane %v406, 7
        %v409 = vshll.u32 %v243, 16
        %v411 = vor.u32 %v408, %v409
        %v412 = vsel %vm260, %v404, %v411
        %v413 = vrot.slane %v408, 4
        %v415 = vshrl.u32 %v244, 16
        %v417 = vrot.slane %v415, 7
        %v418 = vshll.u32 %v244, 16
        %v420 = vor.u32 %v417, %v418
        %v421 = vrot.slane %v417, 4
        %v423 = vshrl.u32 %v245, 16
        %v425 = vrot.slane %v423, 7
        %v426 = vshll.u32 %v245, 16
        %v428 = vor.u32 %v425, %v426
        %v429 = vsel %vm260, %v421, %v428
        %v430 = vrot.slane %v425, 4
        %v432 = vshrl.u32 %v246, 16
        %v434 = vrot.slane %v432, 7
        %v435 = vshll.u32 %v246, 16
        %v437 = vor.u32 %v434, %v435
        %v438 = vrot.slane %v434, 4
        %v440 = vshrl.u32 %v247, 16
        %v442 = vrot.slane %v440, 7
        %v443 = vshll.u32 %v247, 16
        %v445 = vor.u32 %v442, %v443
        %v446 = vsel %vm260, %v438, %v445
        %v447 = vrot.slane %v442, 4
        %v449 = vshrl.u32 %v248, 16
        %v451 = vrot.slane %v449, 7
        %v452 = vshll.u32 %v248, 16
        %v454 = vor.u32 %v451, %v452
        %v455 = vrot.slane %v451, 4
        %v457 = vshrl.u32 %v249, 16
        %v459 = vrot.slane %v457, 7
        %v460 = vshll.u32 %v249, 16
        %v462 = vor.u32 %v459, %v460
        %v463 = vsel %vm260, %v455, %v462
        %v464 = vrot.slane %v459, 4
        %v466 = vshrl.u32 %v250, 16
        %v468 = vrot.slane %v466, 7
        %v469 = vshll.u32 %v250, 16
        %v471 = vor.u32 %v468, %v469
        %v472 = vrot.slane %v468, 4
        %v474 = vshrl.u32 %v251, 16
        %v476 = vrot.slane %v474, 7
        %v477 = vshll.u32 %v251, 16
        %v479 = vor.u32 %v476, %v477
        %v480 = vsel %vm260, %v472, %v479
        %v481 = vrot.slane %v476, 4
        %v483 = vshrl.u32 %v252, 16
        %v485 = vrot.slane %v483, 7
        %v486 = vshll.u32 %v252, 16
        %v488 = vor.u32 %v485, %v486
        %v489 = vrot.slane %v485, 4
        %v491 = vshrl.u32 %v253, 16
        %v493 = vrot.slane %v491, 7
        %v494 = vshll.u32 %v253, 16
        %v496 = vor.u32 %v493, %v494
        %v497 = vsel %vm260, %v489, %v496
        %v498 = vrot.slane %v493, 4
        %v500 = vshrl.u32 %v254, 16
        %v502 = vrot.slane %v500, 7
        %v503 = vshll.u32 %v254, 16
        %v505 = vor.u32 %v502, %v503
        %v506 = vrot.slane %v502, 4
        %v508 = vshrl.u32 %v255, 16
        %v510 = vrot.slane %v508, 7
        %v511 = vshll.u32 %v255, 16
        %v513 = vor.u32 %v510, %v511
        %v514 = vsel %vm260, %v506, %v513
        %v515 = vrot.slane %v510, 4
        %v517 = vshrl.u32 %v256, 16
        %v519 = vrot.slane %v517, 7
        %v520 = vshll.u32 %v256, 16
        %v522 = vor.u32 %v519, %v520
        %v523 = vrot.slane %v519, 4
        %v525 = vshrl.u32 %v257, 16
        %v527 = vrot.slane %v525, 7
        %v528 = vshll.u32 %v257, 16
        %v530 = vor.u32 %v527, %v528
        %v531 = vsel %vm260, %v523, %v530
        %v532 = vrot.slane %v527, 4
        %s581 = scalar_lea.vmem [#allocation2], 12
        %vm582 = vcmask 19456
        %vm583 = vsmask.f32 7938
        %vm584 = vmand %vm582, %vm583
        %v585 = vld [vmem:[%s581] sm:$0xf]
        %v586 = vsel %vm584, %v267, %v585
        %587 = vst [vmem:[%s581] sm:$0xf] %v586
        %588 = vst.msk [vmem:[%s581 + $0x4] sm:$0xf] %vm170, %v276
        %vm589 = vcmask 16384
        %vm590 = vmand %vm589, %vm258
        %v591 = vld [vmem:[%s581 + $0x8] sm:$0x1]
        %v592 = vsel %vm590, %v277, %v591
        %593 = vst [vmem:[%s581 + $0x8] sm:$0x1] %v592
        %v594 = vld [vmem:[%s581 + $0xc] sm:$0xf]
        %v595 = vsel %vm584, %v284, %v594
        %596 = vst [vmem:[%s581 + $0xc] sm:$0xf] %v595
        %597 = vst.msk [vmem:[%s581 + $0x10] sm:$0xf] %vm170, %v293
        %v598 = vld [vmem:[%s581 + $0x14] sm:$0x1]
        %v599 = vsel %vm590, %v294, %v598
        %600 = vst [vmem:[%s581 + $0x14] sm:$0x1] %v599
        %v601 = vld [vmem:[%s581 + $0x18] sm:$0xf]
        %v602 = vsel %vm584, %v301, %v601
        %603 = vst [vmem:[%s581 + $0x18] sm:$0xf] %v602
        %604 = vst.msk [vmem:[%s581 + $0x1c] sm:$0xf] %vm170, %v310
        %v605 = vld [vmem:[%s581 + $0x20] sm:$0x1]
        %v606 = vsel %vm590, %v311, %v605
        %607 = vst [vmem:[%s581 + $0x20] sm:$0x1] %v606
        %v608 = vld [vmem:[%s581 + $0x24] sm:$0xf]
        %v609 = vsel %vm584, %v318, %v608
        %610 = vst [vmem:[%s581 + $0x24] sm:$0xf] %v609
        %611 = vst.msk [vmem:[%s581 + $0x28] sm:$0xf] %vm170, %v327
        %v612 = vld [vmem:[%s581 + $0x2c] sm:$0x1]
        %v613 = vsel %vm590, %v328, %v612
        %614 = vst [vmem:[%s581 + $0x2c] sm:$0x1] %v613
        %v615 = vld [vmem:[%s581 + $0x30] sm:$0xf]
        %v616 = vsel %vm584, %v335, %v615
        %617 = vst [vmem:[%s581 + $0x30] sm:$0xf] %v616
        %618 = vst.msk [vmem:[%s581 + $0x34] sm:$0xf] %vm170, %v344
        %v619 = vld [vmem:[%s581 + $0x38] sm:$0x1]
        %v620 = vsel %vm590, %v345, %v619
        %621 = vst [vmem:[%s581 + $0x38] sm:$0x1] %v620
        %v622 = vld [vmem:[%s581 + $0x3c] sm:$0xf]
        %v623 = vsel %vm584, %v352, %v622
        %624 = vst [vmem:[%s581 + $0x3c] sm:$0xf] %v623
        %625 = vst.msk [vmem:[%s581 + $0x40] sm:$0xf] %vm170, %v361
        %v626 = vld [vmem:[%s581 + $0x44] sm:$0x1]
        %v627 = vsel %vm590, %v362, %v626
        %628 = vst [vmem:[%s581 + $0x44] sm:$0x1] %v627
        %v629 = vld [vmem:[%s581 + $0x48] sm:$0xf]
        %v630 = vsel %vm584, %v369, %v629
        %631 = vst [vmem:[%s581 + $0x48] sm:$0xf] %v630
        %632 = vst.msk [vmem:[%s581 + $0x4c] sm:$0xf] %vm170, %v378
        %v633 = vld [vmem:[%s581 + $0x50] sm:$0x1]
        %v634 = vsel %vm590, %v379, %v633
        %635 = vst [vmem:[%s581 + $0x50] sm:$0x1] %v634
        %v636 = vld [vmem:[%s581 + $0x54] sm:$0xf]
        %v637 = vsel %vm584, %v386, %v636
        %638 = vst [vmem:[%s581 + $0x54] sm:$0xf] %v637
        %639 = vst.msk [vmem:[%s581 + $0x58] sm:$0xf] %vm170, %v395
        %v640 = vld [vmem:[%s581 + $0x5c] sm:$0x1]
        %v641 = vsel %vm590, %v396, %v640
        %642 = vst [vmem:[%s581 + $0x5c] sm:$0x1] %v641
        %v643 = vld [vmem:[%s581 + $0x60] sm:$0xf]
        %v644 = vsel %vm584, %v403, %v643
        %645 = vst [vmem:[%s581 + $0x60] sm:$0xf] %v644
        %646 = vst.msk [vmem:[%s581 + $0x64] sm:$0xf] %vm170, %v412
        %v647 = vld [vmem:[%s581 + $0x68] sm:$0x1]
        %v648 = vsel %vm590, %v413, %v647
        %649 = vst [vmem:[%s581 + $0x68] sm:$0x1] %v648
        %v650 = vld [vmem:[%s581 + $0x6c] sm:$0xf]
        %v651 = vsel %vm584, %v420, %v650
        %652 = vst [vmem:[%s581 + $0x6c] sm:$0xf] %v651
        %653 = vst.msk [vmem:[%s581 + $0x70] sm:$0xf] %vm170, %v429
        %v654 = vld [vmem:[%s581 + $0x74] sm:$0x1]
        %v655 = vsel %vm590, %v430, %v654
        %656 = vst [vmem:[%s581 + $0x74] sm:$0x1] %v655
        %v657 = vld [vmem:[%s581 + $0x78] sm:$0xf]
        %v658 = vsel %vm584, %v437, %v657
        %659 = vst [vmem:[%s581 + $0x78] sm:$0xf] %v658
        %660 = vst.msk [vmem:[%s581 + $0x7c] sm:$0xf] %vm170, %v446
        %v661 = vld [vmem:[%s581 + $0x80] sm:$0x1]
        %v662 = vsel %vm590, %v447, %v661
        %663 = vst [vmem:[%s581 + $0x80] sm:$0x1] %v662
        %v664 = vld [vmem:[%s581 + $0x84] sm:$0xf]
        %v665 = vsel %vm584, %v454, %v664
        %666 = vst [vmem:[%s581 + $0x84] sm:$0xf] %v665
        %667 = vst.msk [vmem:[%s581 + $0x88] sm:$0xf] %vm170, %v463
        %v668 = vld [vmem:[%s581 + $0x8c] sm:$0x1]
        %v669 = vsel %vm590, %v464, %v668
        %670 = vst [vmem:[%s581 + $0x8c] sm:$0x1] %v669
        %v671 = vld [vmem:[%s581 + $0x90] sm:$0xf]
        %v672 = vsel %vm584, %v471, %v671
        %673 = vst [vmem:[%s581 + $0x90] sm:$0xf] %v672
        %674 = vst.msk [vmem:[%s581 + $0x94] sm:$0xf] %vm170, %v480
        %v675 = vld [vmem:[%s581 + $0x98] sm:$0x1]
        %v676 = vsel %vm590, %v481, %v675
        %677 = vst [vmem:[%s581 + $0x98] sm:$0x1] %v676
        %v678 = vld [vmem:[%s581 + $0x9c] sm:$0xf]
        %v679 = vsel %vm584, %v488, %v678
        %680 = vst [vmem:[%s581 + $0x9c] sm:$0xf] %v679
        %681 = vst.msk [vmem:[%s581 + $0xa0] sm:$0xf] %vm170, %v497
        %v682 = vld [vmem:[%s581 + $0xa4] sm:$0x1]
        %v683 = vsel %vm590, %v498, %v682
        %684 = vst [vmem:[%s581 + $0xa4] sm:$0x1] %v683
        %v685 = vld [vmem:[%s581 + $0xa8] sm:$0xf]
        %v686 = vsel %vm584, %v505, %v685
        %687 = vst [vmem:[%s581 + $0xa8] sm:$0xf] %v686
        %688 = vst.msk [vmem:[%s581 + $0xac] sm:$0xf] %vm170, %v514
        %v689 = vld [vmem:[%s581 + $0xb0] sm:$0x1]
        %v690 = vsel %vm590, %v515, %v689
        %691 = vst [vmem:[%s581 + $0xb0] sm:$0x1] %v690
        %v692 = vld [vmem:[%s581 + $0xb4] sm:$0xf]
        %v693 = vsel %vm584, %v522, %v692
        %694 = vst [vmem:[%s581 + $0xb4] sm:$0xf] %v693
        %695 = vst.msk [vmem:[%s581 + $0xb8] sm:$0xf] %vm170, %v531
        %v696 = vld [vmem:[%s581 + $0xbc] sm:$0x1]
        %v697 = vsel %vm590, %v532, %v696
        %698 = vst [vmem:[%s581 + $0xbc] sm:$0x1] %v697
        %v699 = vld [vmem:[%s1] sm:$0xf]
        %v700 = vld [vmem:[%s1 + $0x4] sm:$0x1]
        %v701 = vld [vmem:[%s1 + $0x8] sm:$0xf]
        %v702 = vld [vmem:[%s1 + $0xc] sm:$0x1]
        %v703 = vld [vmem:[%s1 + $0x10] sm:$0xf]
        %v704 = vld [vmem:[%s1 + $0x14] sm:$0x1]
        %v705 = vld [vmem:[#allocation2] sm:$0xf]
        %v706 = vld [vmem:[#allocation2 + $0x4] sm:$0xf]
        %v707 = vld [vmem:[#allocation2 + $0xc] sm:$0xf]
        %v708 = vld [vmem:[#allocation2 + $0x10] sm:$0xf]
        %v709 = vld [vmem:[#allocation2 + $0x18] sm:$0xf]
        %v710 = vld [vmem:[#allocation2 + $0x1c] sm:$0xf]
        %v711 = vld [vmem:[#allocation2 + $0x24] sm:$0xf]
        %v712 = vld [vmem:[#allocation2 + $0x28] sm:$0xf]
        %v713 = vld [vmem:[#allocation2 + $0x30] sm:$0xf]
        %v714 = vld [vmem:[#allocation2 + $0x34] sm:$0xf]
        %v715 = vld [vmem:[#allocation2 + $0x3c] sm:$0xf]
        %v716 = vld [vmem:[#allocation2 + $0x40] sm:$0xf]
        %v717 = vld [vmem:[#allocation2 + $0x48] sm:$0xf]
        %v718 = vld [vmem:[#allocation2 + $0x4c] sm:$0xf]
        %v719 = vld [vmem:[#allocation2 + $0x54] sm:$0xf]
        %v720 = vld [vmem:[#allocation2 + $0x58] sm:$0xf]
        %v721 = vld [vmem:[#allocation2 + $0x60] sm:$0xf]
        %v722 = vld [vmem:[#allocation2 + $0x64] sm:$0xf]
        %v723 = vld [vmem:[#allocation2 + $0x6c] sm:$0xf]
        %v724 = vld [vmem:[#allocation2 + $0x70] sm:$0xf]
        %v725 = vld [vmem:[#allocation2 + $0x78] sm:$0xf]
        %v726 = vld [vmem:[#allocation2 + $0x7c] sm:$0xf]
        %v727 = vld [vmem:[#allocation2 + $0x84] sm:$0xf]
        %v728 = vld [vmem:[#allocation2 + $0x88] sm:$0xf]
        %v729 = vld [vmem:[#allocation2 + $0x90] sm:$0xf]
        %v730 = vld [vmem:[#allocation2 + $0x94] sm:$0xf]
        %v731 = vld [vmem:[#allocation2 + $0x9c] sm:$0xf]
        %v732 = vld [vmem:[#allocation2 + $0xa0] sm:$0xf]
        %v733 = vld [vmem:[#allocation2 + $0xa8] sm:$0xf]
        %v734 = vld [vmem:[#allocation2 + $0xac] sm:$0xf]
        %v735 = vld [vmem:[#allocation2 + $0xb4] sm:$0xf]
        %v736 = vld [vmem:[#allocation2 + $0xb8] sm:$0xf]
        %v737 = vld [vmem:[#allocation2 + $0x8] sm:$0x1]
        %v738 = vld [vmem:[#allocation2 + $0x14] sm:$0x1]
        %v739 = vld [vmem:[#allocation2 + $0x20] sm:$0x1]
        %v740 = vld [vmem:[#allocation2 + $0x2c] sm:$0x1]
        %v741 = vld [vmem:[#allocation2 + $0x38] sm:$0x1]
        %v742 = vld [vmem:[#allocation2 + $0x44] sm:$0x1]
        %v743 = vld [vmem:[#allocation2 + $0x50] sm:$0x1]
        %v744 = vld [vmem:[#allocation2 + $0x5c] sm:$0x1]
        %v745 = vld [vmem:[#allocation2 + $0x68] sm:$0x1]
        %v746 = vld [vmem:[#allocation2 + $0x74] sm:$0x1]
        %v747 = vld [vmem:[#allocation2 + $0x80] sm:$0x1]
        %v748 = vld [vmem:[#allocation2 + $0x8c] sm:$0x1]
        %v749 = vld [vmem:[#allocation2 + $0x98] sm:$0x1]
        %v750 = vld [vmem:[#allocation2 + $0xa4] sm:$0x1]
        %v751 = vld [vmem:[#allocation2 + $0xb0] sm:$0x1]
        %v752 = vld [vmem:[#allocation2 + $0xbc] sm:$0x1]
        %v753 = vld [vmem:[#allocation2] sm:$0xe]
        %v754 = vld [vmem:[#allocation2 + $0xc] sm:$0xe]
        %v755 = vld [vmem:[#allocation2 + $0x18] sm:$0xe]
        %v756 = vld [vmem:[#allocation2 + $0x24] sm:$0xe]
        %v757 = vld [vmem:[#allocation2 + $0x30] sm:$0xe]
        %v758 = vld [vmem:[#allocation2 + $0x3c] sm:$0xe]
        %v759 = vld [vmem:[#allocation2 + $0x48] sm:$0xe]
        %v760 = vld [vmem:[#allocation2 + $0x54] sm:$0xe]
        %v761 = vld [vmem:[#allocation2 + $0x60] sm:$0xe]
        %v762 = vld [vmem:[#allocation2 + $0x6c] sm:$0xe]
        %v763 = vld [vmem:[#allocation2 + $0x78] sm:$0xe]
        %v764 = vld [vmem:[#allocation2 + $0x84] sm:$0xe]
        %v765 = vld [vmem:[#allocation2 + $0x90] sm:$0xe]
        %v766 = vld [vmem:[#allocation2 + $0x9c] sm:$0xe]
        %v767 = vld [vmem:[#allocation2 + $0xa8] sm:$0xe]
        %v768 = vld [vmem:[#allocation2 + $0xb4] sm:$0xe]
        %v801 = vunpack.c.l.b16 %v705
        %v802 = vunpack.c.l.b16 %v706
        %v803 = vunpack.c.l.b16 %v707
        %v804 = vunpack.c.l.b16 %v708
        %v805 = vunpack.c.l.b16 %v709
        %v806 = vunpack.c.l.b16 %v710
        %v807 = vunpack.c.l.b16 %v711
        %v808 = vunpack.c.l.b16 %v712
        %v809 = vunpack.c.l.b16 %v713
        %v810 = vunpack.c.l.b16 %v714
        %v811 = vunpack.c.l.b16 %v715
        %v812 = vunpack.c.l.b16 %v716
        %v813 = vunpack.c.l.b16 %v717
        %v814 = vunpack.c.l.b16 %v718
        %v815 = vunpack.c.l.b16 %v719
        %v816 = vunpack.c.l.b16 %v720
        %v817 = vunpack.c.l.b16 %v721
        %v818 = vunpack.c.l.b16 %v722
        %v819 = vunpack.c.l.b16 %v723
        %v820 = vunpack.c.l.b16 %v724
        %v821 = vunpack.c.l.b16 %v725
        %v822 = vunpack.c.l.b16 %v726
        %v823 = vunpack.c.l.b16 %v727
        %v824 = vunpack.c.l.b16 %v728
        %v825 = vunpack.c.l.b16 %v729
        %v826 = vunpack.c.l.b16 %v730
        %v827 = vunpack.c.l.b16 %v731
        %v828 = vunpack.c.l.b16 %v732
        %v829 = vunpack.c.l.b16 %v733
        %v830 = vunpack.c.l.b16 %v734
        %v831 = vunpack.c.l.b16 %v735
        %v832 = vunpack.c.l.b16 %v736
        %v833 = vpack.c.b16 %v802, %v801
        %v834 = vpack.c.b16 %v804, %v803
        %v835 = vpack.c.b16 %v806, %v805
        %v836 = vpack.c.b16 %v808, %v807
        %v837 = vpack.c.b16 %v810, %v809
        %v838 = vpack.c.b16 %v812, %v811
        %v839 = vpack.c.b16 %v814, %v813
        %v840 = vpack.c.b16 %v816, %v815
        %v841 = vpack.c.b16 %v818, %v817
        %v842 = vpack.c.b16 %v820, %v819
        %v843 = vpack.c.b16 %v822, %v821
        %v844 = vpack.c.b16 %v824, %v823
        %v845 = vpack.c.b16 %v826, %v825
        %v846 = vpack.c.b16 %v828, %v827
        %v847 = vpack.c.b16 %v830, %v829
        %v848 = vpack.c.b16 %v832, %v831
        %v865 = vunpack.c.l.b16 %v737
        %v866 = vunpack.c.l.b16 %v738
        %v867 = vunpack.c.l.b16 %v739
        %v868 = vunpack.c.l.b16 %v740
        %v869 = vunpack.c.l.b16 %v741
        %v870 = vunpack.c.l.b16 %v742
        %v871 = vunpack.c.l.b16 %v743
        %v872 = vunpack.c.l.b16 %v744
        %v873 = vunpack.c.l.b16 %v745
        %v874 = vunpack.c.l.b16 %v746
        %v875 = vunpack.c.l.b16 %v747
        %v876 = vunpack.c.l.b16 %v748
        %v877 = vunpack.c.l.b16 %v749
        %v878 = vunpack.c.l.b16 %v750
        %v879 = vunpack.c.l.b16 %v751
        %v880 = vunpack.c.l.b16 %v752
        %v881 = vpack.c.b16 %v865, %v865
        %v882 = vpack.c.b16 %v866, %v866
        %v883 = vpack.c.b16 %v867, %v867
        %v884 = vpack.c.b16 %v868, %v868
        %v885 = vpack.c.b16 %v869, %v869
        %v886 = vpack.c.b16 %v870, %v870
        %v887 = vpack.c.b16 %v871, %v871
        %v888 = vpack.c.b16 %v872, %v872
        %v889 = vpack.c.b16 %v873, %v873
        %v890 = vpack.c.b16 %v874, %v874
        %v891 = vpack.c.b16 %v875, %v875
        %v892 = vpack.c.b16 %v876, %v876
        %v893 = vpack.c.b16 %v877, %v877
        %v894 = vpack.c.b16 %v878, %v878
        %v895 = vpack.c.b16 %v879, %v879
        %v896 = vpack.c.b16 %v880, %v880
        %vm897 = vsmask.f32 7424
        %v899 = vshrl.u32 %v833, 16
        %v901 = vshll.u32 %v833, 16
        %v903 = vrot.slane %v901, 1
        %v904 = vor.u32 %v899, %v903
        %v906 = vshll.u32 %v881, 16
        %v908 = vrot.slane %v906, 1
        %v909 = vsel %vm897, %v904, %v908
        %v911 = vshrl.u32 %v834, 16
        %v913 = vshll.u32 %v834, 16
        %v915 = vrot.slane %v913, 1
        %v916 = vor.u32 %v911, %v915
        %v918 = vshll.u32 %v882, 16
        %v920 = vrot.slane %v918, 1
        %v921 = vsel %vm897, %v916, %v920
        %v923 = vshrl.u32 %v835, 16
        %v925 = vshll.u32 %v835, 16
        %v927 = vrot.slane %v925, 1
        %v928 = vor.u32 %v923, %v927
        %v930 = vshll.u32 %v883, 16
        %v932 = vrot.slane %v930, 1
        %v933 = vsel %vm897, %v928, %v932
        %v935 = vshrl.u32 %v836, 16
        %v937 = vshll.u32 %v836, 16
        %v939 = vrot.slane %v937, 1
        %v940 = vor.u32 %v935, %v939
        %v942 = vshll.u32 %v884, 16
        %v944 = vrot.slane %v942, 1
        %v945 = vsel %vm897, %v940, %v944
        %v947 = vshrl.u32 %v837, 16
        %v949 = vshll.u32 %v837, 16
        %v951 = vrot.slane %v949, 1
        %v952 = vor.u32 %v947, %v951
        %v954 = vshll.u32 %v885, 16
        %v956 = vrot.slane %v954, 1
        %v957 = vsel %vm897, %v952, %v956
        %v959 = vshrl.u32 %v838, 16
        %v961 = vshll.u32 %v838, 16
        %v963 = vrot.slane %v961, 1
        %v964 = vor.u32 %v959, %v963
        %v966 = vshll.u32 %v886, 16
        %v968 = vrot.slane %v966, 1
        %v969 = vsel %vm897, %v964, %v968
        %v971 = vshrl.u32 %v839, 16
        %v973 = vshll.u32 %v839, 16
        %v975 = vrot.slane %v973, 1
        %v976 = vor.u32 %v971, %v975
        %v978 = vshll.u32 %v887, 16
        %v980 = vrot.slane %v978, 1
        %v981 = vsel %vm897, %v976, %v980
        %v983 = vshrl.u32 %v840, 16
        %v985 = vshll.u32 %v840, 16
        %v987 = vrot.slane %v985, 1
        %v988 = vor.u32 %v983, %v987
        %v990 = vshll.u32 %v888, 16
        %v992 = vrot.slane %v990, 1
        %v993 = vsel %vm897, %v988, %v992
        %v995 = vshrl.u32 %v841, 16
        %v997 = vshll.u32 %v841, 16
        %v999 = vrot.slane %v997, 1
        %v1000 = vor.u32 %v995, %v999
        %v1002 = vshll.u32 %v889, 16
        %v1004 = vrot.slane %v1002, 1
        %v1005 = vsel %vm897, %v1000, %v1004
        %v1007 = vshrl.u32 %v842, 16
        %v1009 = vshll.u32 %v842, 16
        %v1011 = vrot.slane %v1009, 1
        %v1012 = vor.u32 %v1007, %v1011
        %v1014 = vshll.u32 %v890, 16
        %v1016 = vrot.slane %v1014, 1
        %v1017 = vsel %vm897, %v1012, %v1016
        %v1019 = vshrl.u32 %v843, 16
        %v1021 = vshll.u32 %v843, 16
        %v1023 = vrot.slane %v1021, 1
        %v1024 = vor.u32 %v1019, %v1023
        %v1026 = vshll.u32 %v891, 16
        %v1028 = vrot.slane %v1026, 1
        %v1029 = vsel %vm897, %v1024, %v1028
        %v1031 = vshrl.u32 %v844, 16
        %v1033 = vshll.u32 %v844, 16
        %v1035 = vrot.slane %v1033, 1
        %v1036 = vor.u32 %v1031, %v1035
        %v1038 = vshll.u32 %v892, 16
        %v1040 = vrot.slane %v1038, 1
        %v1041 = vsel %vm897, %v1036, %v1040
        %v1043 = vshrl.u32 %v845, 16
        %v1045 = vshll.u32 %v845, 16
        %v1047 = vrot.slane %v1045, 1
        %v1048 = vor.u32 %v1043, %v1047
        %v1050 = vshll.u32 %v893, 16
        %v1052 = vrot.slane %v1050, 1
        %v1053 = vsel %vm897, %v1048, %v1052
        %v1055 = vshrl.u32 %v846, 16
        %v1057 = vshll.u32 %v846, 16
        %v1059 = vrot.slane %v1057, 1
        %v1060 = vor.u32 %v1055, %v1059
        %v1062 = vshll.u32 %v894, 16
        %v1064 = vrot.slane %v1062, 1
        %v1065 = vsel %vm897, %v1060, %v1064
        %v1067 = vshrl.u32 %v847, 16
        %v1069 = vshll.u32 %v847, 16
        %v1071 = vrot.slane %v1069, 1
        %v1072 = vor.u32 %v1067, %v1071
        %v1074 = vshll.u32 %v895, 16
        %v1076 = vrot.slane %v1074, 1
        %v1077 = vsel %vm897, %v1072, %v1076
        %v1079 = vshrl.u32 %v848, 16
        %v1081 = vshll.u32 %v848, 16
        %v1083 = vrot.slane %v1081, 1
        %v1084 = vor.u32 %v1079, %v1083
        %v1086 = vshll.u32 %v896, 16
        %v1088 = vrot.slane %v1086, 1
        %v1089 = vsel %vm897, %v1084, %v1088
        %1090 = vrot.lane.b32.xlu0 %v909, 3
        %v1091 = vpop.permute.xlu0 %1090
        %1092 = vrot.lane.b32.xlu0 %v921, 3
        %v1093 = vpop.permute.xlu0 %1092
        %1094 = vrot.lane.b32.xlu0 %v933, 3
        %v1095 = vpop.permute.xlu0 %1094
        %1096 = vrot.lane.b32.xlu0 %v945, 3
        %v1097 = vpop.permute.xlu0 %1096
        %1098 = vrot.lane.b32.xlu0 %v957, 3
        %v1099 = vpop.permute.xlu0 %1098
        %1100 = vrot.lane.b32.xlu0 %v969, 3
        %v1101 = vpop.permute.xlu0 %1100
        %1102 = vrot.lane.b32.xlu0 %v981, 3
        %v1103 = vpop.permute.xlu0 %1102
        %1104 = vrot.lane.b32.xlu0 %v993, 3
        %v1105 = vpop.permute.xlu0 %1104
        %1106 = vrot.lane.b32.xlu0 %v1005, 3
        %v1107 = vpop.permute.xlu0 %1106
        %1108 = vrot.lane.b32.xlu0 %v1017, 3
        %v1109 = vpop.permute.xlu0 %1108
        %1110 = vrot.lane.b32.xlu0 %v1029, 3
        %v1111 = vpop.permute.xlu0 %1110
        %1112 = vrot.lane.b32.xlu0 %v1041, 3
        %v1113 = vpop.permute.xlu0 %1112
        %1114 = vrot.lane.b32.xlu0 %v1053, 3
        %v1115 = vpop.permute.xlu0 %1114
        %1116 = vrot.lane.b32.xlu0 %v1065, 3
        %v1117 = vpop.permute.xlu0 %1116
        %1118 = vrot.lane.b32.xlu0 %v1077, 3
        %v1119 = vpop.permute.xlu0 %1118
        %1120 = vrot.lane.b32.xlu0 %v1089, 3
        %v1121 = vpop.permute.xlu0 %1120
        %v1138 = vunpack.c.l.b16 %v753
        %v1139 = vunpack.c.l.b16 %v754
        %v1140 = vunpack.c.l.b16 %v755
        %v1141 = vunpack.c.l.b16 %v756
        %v1142 = vunpack.c.l.b16 %v757
        %v1143 = vunpack.c.l.b16 %v758
        %v1144 = vunpack.c.l.b16 %v759
        %v1145 = vunpack.c.l.b16 %v760
        %v1146 = vunpack.c.l.b16 %v761
        %v1147 = vunpack.c.l.b16 %v762
        %v1148 = vunpack.c.l.b16 %v763
        %v1149 = vunpack.c.l.b16 %v764
        %v1150 = vunpack.c.l.b16 %v765
        %v1151 = vunpack.c.l.b16 %v766
        %v1152 = vunpack.c.l.b16 %v767
        %v1153 = vunpack.c.l.b16 %v768
        %v1154 = vpack.c.b16 %v802, %v1138
        %v1155 = vpack.c.b16 %v804, %v1139
        %v1156 = vpack.c.b16 %v806, %v1140
        %v1157 = vpack.c.b16 %v808, %v1141
        %v1158 = vpack.c.b16 %v810, %v1142
        %v1159 = vpack.c.b16 %v812, %v1143
        %v1160 = vpack.c.b16 %v814, %v1144
        %v1161 = vpack.c.b16 %v816, %v1145
        %v1162 = vpack.c.b16 %v818, %v1146
        %v1163 = vpack.c.b16 %v820, %v1147
        %v1164 = vpack.c.b16 %v822, %v1148
        %v1165 = vpack.c.b16 %v824, %v1149
        %v1166 = vpack.c.b16 %v826, %v1150
        %v1167 = vpack.c.b16 %v828, %v1151
        %v1168 = vpack.c.b16 %v830, %v1152
        %v1169 = vpack.c.b16 %v832, %v1153
        %vm1170 = vcmask 1046528
        %v1171 = vrot.slane %v1154, 1
        %v1172 = vrot.slane %v881, 1
        %v1173 = vsel %vm1170, %v1171, %v1172
        %v1174 = vrot.slane %v1155, 1
        %v1175 = vrot.slane %v882, 1
        %v1176 = vsel %vm1170, %v1174, %v1175
        %v1177 = vrot.slane %v1156, 1
        %v1178 = vrot.slane %v883, 1
        %v1179 = vsel %vm1170, %v1177, %v1178
        %v1180 = vrot.slane %v1157, 1
        %v1181 = vrot.slane %v884, 1
        %v1182 = vsel %vm1170, %v1180, %v1181
        %v1183 = vrot.slane %v1158, 1
        %v1184 = vrot.slane %v885, 1
        %v1185 = vsel %vm1170, %v1183, %v1184
        %v1186 = vrot.slane %v1159, 1
        %v1187 = vrot.slane %v886, 1
        %v1188 = vsel %vm1170, %v1186, %v1187
        %v1189 = vrot.slane %v1160, 1
        %v1190 = vrot.slane %v887, 1
        %v1191 = vsel %vm1170, %v1189, %v1190
        %v1192 = vrot.slane %v1161, 1
        %v1193 = vrot.slane %v888, 1
        %v1194 = vsel %vm1170, %v1192, %v1193
        %v1195 = vrot.slane %v1162, 1
        %v1196 = vrot.slane %v889, 1
        %v1197 = vsel %vm1170, %v1195, %v1196
        %v1198 = vrot.slane %v1163, 1
        %v1199 = vrot.slane %v890, 1
        %v1200 = vsel %vm1170, %v1198, %v1199
        %v1201 = vrot.slane %v1164, 1
        %v1202 = vrot.slane %v891, 1
        %v1203 = vsel %vm1170, %v1201, %v1202
        %v1204 = vrot.slane %v1165, 1
        %v1205 = vrot.slane %v892, 1
        %v1206 = vsel %vm1170, %v1204, %v1205
        %v1207 = vrot.slane %v1166, 1
        %v1208 = vrot.slane %v893, 1
        %v1209 = vsel %vm1170, %v1207, %v1208
        %v1210 = vrot.slane %v1167, 1
        %v1211 = vrot.slane %v894, 1
        %v1212 = vsel %vm1170, %v1210, %v1211
        %v1213 = vrot.slane %v1168, 1
        %v1214 = vrot.slane %v895, 1
        %v1215 = vsel %vm1170, %v1213, %v1214
        %v1216 = vrot.slane %v1169, 1
        %v1217 = vrot.slane %v896, 1
        %v1218 = vsel %vm1170, %v1216, %v1217
        %1219 = vrot.lane.b32.xlu0 %v1173, 6
        %v1220 = vpop.permute.xlu0 %1219
        %1221 = vrot.lane.b32.xlu0 %v1176, 6
        %v1222 = vpop.permute.xlu0 %1221
        %1223 = vrot.lane.b32.xlu0 %v1179, 6
        %v1224 = vpop.permute.xlu0 %1223
        %1225 = vrot.lane.b32.xlu0 %v1182, 6
        %v1226 = vpop.permute.xlu0 %1225
        %1227 = vrot.lane.b32.xlu0 %v1185, 6
        %v1228 = vpop.permute.xlu0 %1227
        %1229 = vrot.lane.b32.xlu0 %v1188, 6
        %v1230 = vpop.permute.xlu0 %1229
        %1231 = vrot.lane.b32.xlu0 %v1191, 6
        %v1232 = vpop.permute.xlu0 %1231
        %1233 = vrot.lane.b32.xlu0 %v1194, 6
        %v1234 = vpop.permute.xlu0 %1233
        %1235 = vrot.lane.b32.xlu0 %v1197, 6
        %v1236 = vpop.permute.xlu0 %1235
        %1237 = vrot.lane.b32.xlu0 %v1200, 6
        %v1238 = vpop.permute.xlu0 %1237
        %1239 = vrot.lane.b32.xlu0 %v1203, 6
        %v1240 = vpop.permute.xlu0 %1239
        %1241 = vrot.lane.b32.xlu0 %v1206, 6
        %v1242 = vpop.permute.xlu0 %1241
        %1243 = vrot.lane.b32.xlu0 %v1209, 6
        %v1244 = vpop.permute.xlu0 %1243
        %1245 = vrot.lane.b32.xlu0 %v1212, 6
        %v1246 = vpop.permute.xlu0 %1245
        %1247 = vrot.lane.b32.xlu0 %v1215, 6
        %v1248 = vpop.permute.xlu0 %1247
        %1249 = vrot.lane.b32.xlu0 %v1218, 6
        %v1250 = vpop.permute.xlu0 %1249
        %vm1251 = vcmask 23552
        %v1253 = vsel %vm1251, %v833, %v1091
        %v1255 = vsel %vm1251, %v834, %v1093
        %v1257 = vsel %vm1251, %v835, %v1095
        %v1259 = vsel %vm1251, %v836, %v1097
        %v1261 = vsel %vm1251, %v837, %v1099
        %v1263 = vsel %vm1251, %v838, %v1101
        %v1265 = vsel %vm1251, %v839, %v1103
        %v1267 = vsel %vm1251, %v840, %v1105
        %v1269 = vsel %vm1251, %v841, %v1107
        %v1271 = vsel %vm1251, %v842, %v1109
        %v1273 = vsel %vm1251, %v843, %v1111
        %v1275 = vsel %vm1251, %v844, %v1113
        %v1277 = vsel %vm1251, %v845, %v1115
        %v1279 = vsel %vm1251, %v846, %v1117
        %v1281 = vsel %vm1251, %v847, %v1119
        %v1283 = vsel %vm1251, %v848, %v1121
        %vm1284 = vcmask 48128
        %v1286 = vsel %vm1284, %v1253, %v1220
        %v1288 = vsel %vm1284, %v1255, %v1222
        %v1290 = vsel %vm1284, %v1257, %v1224
        %v1292 = vsel %vm1284, %v1259, %v1226
        %v1294 = vsel %vm1284, %v1261, %v1228
        %v1296 = vsel %vm1284, %v1263, %v1230
        %v1298 = vsel %vm1284, %v1265, %v1232
        %v1300 = vsel %vm1284, %v1267, %v1234
        %v1302 = vsel %vm1284, %v1269, %v1236
        %v1304 = vsel %vm1284, %v1271, %v1238
        %v1306 = vsel %vm1284, %v1273, %v1240
        %v1308 = vsel %vm1284, %v1275, %v1242
        %v1310 = vsel %vm1284, %v1277, %v1244
        %v1312 = vsel %vm1284, %v1279, %v1246
        %v1314 = vsel %vm1284, %v1281, %v1248
        %v1316 = vsel %vm1284, %v1283, %v1250
        %v1317 = vld [vmem:[%s581] sm:$0xf]
        %v1318 = vld [vmem:[%s581 + $0x4] sm:$0xf]
        %v1319 = vld [vmem:[%s581 + $0xc] sm:$0xf]
        %v1320 = vld [vmem:[%s581 + $0x10] sm:$0xf]
        %v1321 = vld [vmem:[%s581 + $0x18] sm:$0xf]
        %v1322 = vld [vmem:[%s581 + $0x1c] sm:$0xf]
        %v1323 = vld [vmem:[%s581 + $0x24] sm:$0xf]
        %v1324 = vld [vmem:[%s581 + $0x28] sm:$0xf]
        %v1325 = vld [vmem:[%s581 + $0x30] sm:$0xf]
        %v1326 = vld [vmem:[%s581 + $0x34] sm:$0xf]
        %v1327 = vld [vmem:[%s581 + $0x3c] sm:$0xf]
        %v1328 = vld [vmem:[%s581 + $0x40] sm:$0xf]
        %v1329 = vld [vmem:[%s581 + $0x48] sm:$0xf]
        %v1330 = vld [vmem:[%s581 + $0x4c] sm:$0xf]
        %v1331 = vld [vmem:[%s581 + $0x54] sm:$0xf]
        %v1332 = vld [vmem:[%s581 + $0x58] sm:$0xf]
        %v1333 = vld [vmem:[%s581 + $0x60] sm:$0xf]
        %v1334 = vld [vmem:[%s581 + $0x64] sm:$0xf]
        %v1335 = vld [vmem:[%s581 + $0x6c] sm:$0xf]
        %v1336 = vld [vmem:[%s581 + $0x70] sm:$0xf]
        %v1337 = vld [vmem:[%s581 + $0x78] sm:$0xf]
        %v1338 = vld [vmem:[%s581 + $0x7c] sm:$0xf]
        %v1339 = vld [vmem:[%s581 + $0x84] sm:$0xf]
        %v1340 = vld [vmem:[%s581 + $0x88] sm:$0xf]
        %v1341 = vld [vmem:[%s581 + $0x90] sm:$0xf]
        %v1342 = vld [vmem:[%s581 + $0x94] sm:$0xf]
        %v1343 = vld [vmem:[%s581 + $0x9c] sm:$0xf]
        %v1344 = vld [vmem:[%s581 + $0xa0] sm:$0xf]
        %v1345 = vld [vmem:[%s581 + $0xa8] sm:$0xf]
        %v1346 = vld [vmem:[%s581 + $0xac] sm:$0xf]
        %v1347 = vld [vmem:[%s581 + $0xb4] sm:$0xf]
        %v1348 = vld [vmem:[%s581 + $0xb8] sm:$0xf]
        %v1349 = vld [vmem:[%s581 + $0x8] sm:$0x1]
        %v1350 = vld [vmem:[%s581 + $0x14] sm:$0x1]
        %v1351 = vld [vmem:[%s581 + $0x20] sm:$0x1]
        %v1352 = vld [vmem:[%s581 + $0x2c] sm:$0x1]
        %v1353 = vld [vmem:[%s581 + $0x38] sm:$0x1]
        %v1354 = vld [vmem:[%s581 + $0x44] sm:$0x1]
        %v1355 = vld [vmem:[%s581 + $0x50] sm:$0x1]
        %v1356 = vld [vmem:[%s581 + $0x5c] sm:$0x1]
        %v1357 = vld [vmem:[%s581 + $0x68] sm:$0x1]
        %v1358 = vld [vmem:[%s581 + $0x74] sm:$0x1]
        %v1359 = vld [vmem:[%s581 + $0x80] sm:$0x1]
        %v1360 = vld [vmem:[%s581 + $0x8c] sm:$0x1]
        %v1361 = vld [vmem:[%s581 + $0x98] sm:$0x1]
        %v1362 = vld [vmem:[%s581 + $0xa4] sm:$0x1]
        %v1363 = vld [vmem:[%s581 + $0xb0] sm:$0x1]
        %v1364 = vld [vmem:[%s581 + $0xbc] sm:$0x1]
        %v1365 = vld [vmem:[%s581] sm:$0xe]
        %v1366 = vld [vmem:[%s581 + $0xc] sm:$0xe]
        %v1367 = vld [vmem:[%s581 + $0x18] sm:$0xe]
        %v1368 = vld [vmem:[%s581 + $0x24] sm:$0xe]
        %v1369 = vld [vmem:[%s581 + $0x30] sm:$0xe]
        %v1370 = vld [vmem:[%s581 + $0x3c] sm:$0xe]
        %v1371 = vld [vmem:[%s581 + $0x48] sm:$0xe]
        %v1372 = vld [vmem:[%s581 + $0x54] sm:$0xe]
        %v1373 = vld [vmem:[%s581 + $0x60] sm:$0xe]
        %v1374 = vld [vmem:[%s581 + $0x6c] sm:$0xe]
        %v1375 = vld [vmem:[%s581 + $0x78] sm:$0xe]
        %v1376 = vld [vmem:[%s581 + $0x84] sm:$0xe]
        %v1377 = vld [vmem:[%s581 + $0x90] sm:$0xe]
        %v1378 = vld [vmem:[%s581 + $0x9c] sm:$0xe]
        %v1379 = vld [vmem:[%s581 + $0xa8] sm:$0xe]
        %v1380 = vld [vmem:[%s581 + $0xb4] sm:$0xe]
        %v1413 = vunpack.c.l.b16 %v1317
        %v1414 = vunpack.c.l.b16 %v1318
        %v1415 = vunpack.c.l.b16 %v1319
        %v1416 = vunpack.c.l.b16 %v1320
        %v1417 = vunpack.c.l.b16 %v1321
        %v1418 = vunpack.c.l.b16 %v1322
        %v1419 = vunpack.c.l.b16 %v1323
        %v1420 = vunpack.c.l.b16 %v1324
        %v1421 = vunpack.c.l.b16 %v1325
        %v1422 = vunpack.c.l.b16 %v1326
        %v1423 = vunpack.c.l.b16 %v1327
        %v1424 = vunpack.c.l.b16 %v1328
        %v1425 = vunpack.c.l.b16 %v1329
        %v1426 = vunpack.c.l.b16 %v1330
        %v1427 = vunpack.c.l.b16 %v1331
        %v1428 = vunpack.c.l.b16 %v1332
        %v1429 = vunpack.c.l.b16 %v1333
        %v1430 = vunpack.c.l.b16 %v1334
        %v1431 = vunpack.c.l.b16 %v1335
        %v1432 = vunpack.c.l.b16 %v1336
        %v1433 = vunpack.c.l.b16 %v1337
        %v1434 = vunpack.c.l.b16 %v1338
        %v1435 = vunpack.c.l.b16 %v1339
        %v1436 = vunpack.c.l.b16 %v1340
        %v1437 = vunpack.c.l.b16 %v1341
        %v1438 = vunpack.c.l.b16 %v1342
        %v1439 = vunpack.c.l.b16 %v1343
        %v1440 = vunpack.c.l.b16 %v1344
        %v1441 = vunpack.c.l.b16 %v1345
        %v1442 = vunpack.c.l.b16 %v1346
        %v1443 = vunpack.c.l.b16 %v1347
        %v1444 = vunpack.c.l.b16 %v1348
        %v1445 = vpack.c.b16 %v1414, %v1413
        %v1446 = vpack.c.b16 %v1416, %v1415
        %v1447 = vpack.c.b16 %v1418, %v1417
        %v1448 = vpack.c.b16 %v1420, %v1419
        %v1449 = vpack.c.b16 %v1422, %v1421
        %v1450 = vpack.c.b16 %v1424, %v1423
        %v1451 = vpack.c.b16 %v1426, %v1425
        %v1452 = vpack.c.b16 %v1428, %v1427
        %v1453 = vpack.c.b16 %v1430, %v1429
        %v1454 = vpack.c.b16 %v1432, %v1431
        %v1455 = vpack.c.b16 %v1434, %v1433
        %v1456 = vpack.c.b16 %v1436, %v1435
        %v1457 = vpack.c.b16 %v1438, %v1437
        %v1458 = vpack.c.b16 %v1440, %v1439
        %v1459 = vpack.c.b16 %v1442, %v1441
        %v1460 = vpack.c.b16 %v1444, %v1443
        %v1477 = vunpack.c.l.b16 %v1349
        %v1478 = vunpack.c.l.b16 %v1350
        %v1479 = vunpack.c.l.b16 %v1351
        %v1480 = vunpack.c.l.b16 %v1352
        %v1481 = vunpack.c.l.b16 %v1353
        %v1482 = vunpack.c.l.b16 %v1354
        %v1483 = vunpack.c.l.b16 %v1355
        %v1484 = vunpack.c.l.b16 %v1356
        %v1485 = vunpack.c.l.b16 %v1357
        %v1486 = vunpack.c.l.b16 %v1358
        %v1487 = vunpack.c.l.b16 %v1359
        %v1488 = vunpack.c.l.b16 %v1360
        %v1489 = vunpack.c.l.b16 %v1361
        %v1490 = vunpack.c.l.b16 %v1362
        %v1491 = vunpack.c.l.b16 %v1363
        %v1492 = vunpack.c.l.b16 %v1364
        %v1493 = vpack.c.b16 %v1477, %v1477
        %v1494 = vpack.c.b16 %v1478, %v1478
        %v1495 = vpack.c.b16 %v1479, %v1479
        %v1496 = vpack.c.b16 %v1480, %v1480
        %v1497 = vpack.c.b16 %v1481, %v1481
        %v1498 = vpack.c.b16 %v1482, %v1482
        %v1499 = vpack.c.b16 %v1483, %v1483
        %v1500 = vpack.c.b16 %v1484, %v1484
        %v1501 = vpack.c.b16 %v1485, %v1485
        %v1502 = vpack.c.b16 %v1486, %v1486
        %v1503 = vpack.c.b16 %v1487, %v1487
        %v1504 = vpack.c.b16 %v1488, %v1488
        %v1505 = vpack.c.b16 %v1489, %v1489
        %v1506 = vpack.c.b16 %v1490, %v1490
        %v1507 = vpack.c.b16 %v1491, %v1491
        %v1508 = vpack.c.b16 %v1492, %v1492
        %v1510 = vshrl.u32 %v1445, 16
        %v1512 = vshll.u32 %v1445, 16
        %v1514 = vrot.slane %v1512, 1
        %v1515 = vor.u32 %v1510, %v1514
        %v1517 = vshll.u32 %v1493, 16
        %v1519 = vrot.slane %v1517, 1
        %v1520 = vsel %vm897, %v1515, %v1519
        %v1522 = vshrl.u32 %v1446, 16
        %v1524 = vshll.u32 %v1446, 16
        %v1526 = vrot.slane %v1524, 1
        %v1527 = vor.u32 %v1522, %v1526
        %v1529 = vshll.u32 %v1494, 16
        %v1531 = vrot.slane %v1529, 1
        %v1532 = vsel %vm897, %v1527, %v1531
        %v1534 = vshrl.u32 %v1447, 16
        %v1536 = vshll.u32 %v1447, 16
        %v1538 = vrot.slane %v1536, 1
        %v1539 = vor.u32 %v1534, %v1538
        %v1541 = vshll.u32 %v1495, 16
        %v1543 = vrot.slane %v1541, 1
        %v1544 = vsel %vm897, %v1539, %v1543
        %v1546 = vshrl.u32 %v1448, 16
        %v1548 = vshll.u32 %v1448, 16
        %v1550 = vrot.slane %v1548, 1
        %v1551 = vor.u32 %v1546, %v1550
        %v1553 = vshll.u32 %v1496, 16
        %v1555 = vrot.slane %v1553, 1
        %v1556 = vsel %vm897, %v1551, %v1555
        %v1558 = vshrl.u32 %v1449, 16
        %v1560 = vshll.u32 %v1449, 16
        %v1562 = vrot.slane %v1560, 1
        %v1563 = vor.u32 %v1558, %v1562
        %v1565 = vshll.u32 %v1497, 16
        %v1567 = vrot.slane %v1565, 1
        %v1568 = vsel %vm897, %v1563, %v1567
        %v1570 = vshrl.u32 %v1450, 16
        %v1572 = vshll.u32 %v1450, 16
        %v1574 = vrot.slane %v1572, 1
        %v1575 = vor.u32 %v1570, %v1574
        %v1577 = vshll.u32 %v1498, 16
        %v1579 = vrot.slane %v1577, 1
        %v1580 = vsel %vm897, %v1575, %v1579
        %v1582 = vshrl.u32 %v1451, 16
        %v1584 = vshll.u32 %v1451, 16
        %v1586 = vrot.slane %v1584, 1
        %v1587 = vor.u32 %v1582, %v1586
        %v1589 = vshll.u32 %v1499, 16
        %v1591 = vrot.slane %v1589, 1
        %v1592 = vsel %vm897, %v1587, %v1591
        %v1594 = vshrl.u32 %v1452, 16
        %v1596 = vshll.u32 %v1452, 16
        %v1598 = vrot.slane %v1596, 1
        %v1599 = vor.u32 %v1594, %v1598
        %v1601 = vshll.u32 %v1500, 16
        %v1603 = vrot.slane %v1601, 1
        %v1604 = vsel %vm897, %v1599, %v1603
        %v1606 = vshrl.u32 %v1453, 16
        %v1608 = vshll.u32 %v1453, 16
        %v1610 = vrot.slane %v1608, 1
        %v1611 = vor.u32 %v1606, %v1610
        %v1613 = vshll.u32 %v1501, 16
        %v1615 = vrot.slane %v1613, 1
        %v1616 = vsel %vm897, %v1611, %v1615
        %v1618 = vshrl.u32 %v1454, 16
        %v1620 = vshll.u32 %v1454, 16
        %v1622 = vrot.slane %v1620, 1
        %v1623 = vor.u32 %v1618, %v1622
        %v1625 = vshll.u32 %v1502, 16
        %v1627 = vrot.slane %v1625, 1
        %v1628 = vsel %vm897, %v1623, %v1627
        %v1630 = vshrl.u32 %v1455, 16
        %v1632 = vshll.u32 %v1455, 16
        %v1634 = vrot.slane %v1632, 1
        %v1635 = vor.u32 %v1630, %v1634
        %v1637 = vshll.u32 %v1503, 16
        %v1639 = vrot.slane %v1637, 1
        %v1640 = vsel %vm897, %v1635, %v1639
        %v1642 = vshrl.u32 %v1456, 16
        %v1644 = vshll.u32 %v1456, 16
        %v1646 = vrot.slane %v1644, 1
        %v1647 = vor.u32 %v1642, %v1646
        %v1649 = vshll.u32 %v1504, 16
        %v1651 = vrot.slane %v1649, 1
        %v1652 = vsel %vm897, %v1647, %v1651
        %v1654 = vshrl.u32 %v1457, 16
        %v1656 = vshll.u32 %v1457, 16
        %v1658 = vrot.slane %v1656, 1
        %v1659 = vor.u32 %v1654, %v1658
        %v1661 = vshll.u32 %v1505, 16
        %v1663 = vrot.slane %v1661, 1
        %v1664 = vsel %vm897, %v1659, %v1663
        %v1666 = vshrl.u32 %v1458, 16
        %v1668 = vshll.u32 %v1458, 16
        %v1670 = vrot.slane %v1668, 1
        %v1671 = vor.u32 %v1666, %v1670
        %v1673 = vshll.u32 %v1506, 16
        %v1675 = vrot.slane %v1673, 1
        %v1676 = vsel %vm897, %v1671, %v1675
        %v1678 = vshrl.u32 %v1459, 16
        %v1680 = vshll.u32 %v1459, 16
        %v1682 = vrot.slane %v1680, 1
        %v1683 = vor.u32 %v1678, %v1682
        %v1685 = vshll.u32 %v1507, 16
        %v1687 = vrot.slane %v1685, 1
        %v1688 = vsel %vm897, %v1683, %v1687
        %v1690 = vshrl.u32 %v1460, 16
        %v1692 = vshll.u32 %v1460, 16
        %v1694 = vrot.slane %v1692, 1
        %v1695 = vor.u32 %v1690, %v1694
        %v1697 = vshll.u32 %v1508, 16
        %v1699 = vrot.slane %v1697, 1
        %v1700 = vsel %vm897, %v1695, %v1699
        %1701 = vrot.lane.b32.xlu0 %v1520, 3
        %v1702 = vpop.permute.xlu0 %1701
        %1703 = vrot.lane.b32.xlu0 %v1532, 3
        %v1704 = vpop.permute.xlu0 %1703
        %1705 = vrot.lane.b32.xlu0 %v1544, 3
        %v1706 = vpop.permute.xlu0 %1705
        %1707 = vrot.lane.b32.xlu0 %v1556, 3
        %v1708 = vpop.permute.xlu0 %1707
        %1709 = vrot.lane.b32.xlu0 %v1568, 3
        %v1710 = vpop.permute.xlu0 %1709
        %1711 = vrot.lane.b32.xlu0 %v1580, 3
        %v1712 = vpop.permute.xlu0 %1711
        %1713 = vrot.lane.b32.xlu0 %v1592, 3
        %v1714 = vpop.permute.xlu0 %1713
        %1715 = vrot.lane.b32.xlu0 %v1604, 3
        %v1716 = vpop.permute.xlu0 %1715
        %1717 = vrot.lane.b32.xlu0 %v1616, 3
        %v1718 = vpop.permute.xlu0 %1717
        %1719 = vrot.lane.b32.xlu0 %v1628, 3
        %v1720 = vpop.permute.xlu0 %1719
        %1721 = vrot.lane.b32.xlu0 %v1640, 3
        %v1722 = vpop.permute.xlu0 %1721
        %1723 = vrot.lane.b32.xlu0 %v1652, 3
        %v1724 = vpop.permute.xlu0 %1723
        %1725 = vrot.lane.b32.xlu0 %v1664, 3
        %v1726 = vpop.permute.xlu0 %1725
        %1727 = vrot.lane.b32.xlu0 %v1676, 3
        %v1728 = vpop.permute.xlu0 %1727
        %1729 = vrot.lane.b32.xlu0 %v1688, 3
        %v1730 = vpop.permute.xlu0 %1729
        %1731 = vrot.lane.b32.xlu0 %v1700, 3
        %v1732 = vpop.permute.xlu0 %1731
        %v1749 = vunpack.c.l.b16 %v1365
        %v1750 = vunpack.c.l.b16 %v1366
        %v1751 = vunpack.c.l.b16 %v1367
        %v1752 = vunpack.c.l.b16 %v1368
        %v1753 = vunpack.c.l.b16 %v1369
        %v1754 = vunpack.c.l.b16 %v1370
        %v1755 = vunpack.c.l.b16 %v1371
        %v1756 = vunpack.c.l.b16 %v1372
        %v1757 = vunpack.c.l.b16 %v1373
        %v1758 = vunpack.c.l.b16 %v1374
        %v1759 = vunpack.c.l.b16 %v1375
        %v1760 = vunpack.c.l.b16 %v1376
        %v1761 = vunpack.c.l.b16 %v1377
        %v1762 = vunpack.c.l.b16 %v1378
        %v1763 = vunpack.c.l.b16 %v1379
        %v1764 = vunpack.c.l.b16 %v1380
        %v1765 = vpack.c.b16 %v1414, %v1749
        %v1766 = vpack.c.b16 %v1416, %v1750
        %v1767 = vpack.c.b16 %v1418, %v1751
        %v1768 = vpack.c.b16 %v1420, %v1752
        %v1769 = vpack.c.b16 %v1422, %v1753
        %v1770 = vpack.c.b16 %v1424, %v1754
        %v1771 = vpack.c.b16 %v1426, %v1755
        %v1772 = vpack.c.b16 %v1428, %v1756
        %v1773 = vpack.c.b16 %v1430, %v1757
        %v1774 = vpack.c.b16 %v1432, %v1758
        %v1775 = vpack.c.b16 %v1434, %v1759
        %v1776 = vpack.c.b16 %v1436, %v1760
        %v1777 = vpack.c.b16 %v1438, %v1761
        %v1778 = vpack.c.b16 %v1440, %v1762
        %v1779 = vpack.c.b16 %v1442, %v1763
        %v1780 = vpack.c.b16 %v1444, %v1764
        %v1781 = vrot.slane %v1765, 1
        %v1782 = vrot.slane %v1493, 1
        %v1783 = vsel %vm1170, %v1781, %v1782
        %v1784 = vrot.slane %v1766, 1
        %v1785 = vrot.slane %v1494, 1
        %v1786 = vsel %vm1170, %v1784, %v1785
        %v1787 = vrot.slane %v1767, 1
        %v1788 = vrot.slane %v1495, 1
        %v1789 = vsel %vm1170, %v1787, %v1788
        %v1790 = vrot.slane %v1768, 1
        %v1791 = vrot.slane %v1496, 1
        %v1792 = vsel %vm1170, %v1790, %v1791
        %v1793 = vrot.slane %v1769, 1
        %v1794 = vrot.slane %v1497, 1
        %v1795 = vsel %vm1170, %v1793, %v1794
        %v1796 = vrot.slane %v1770, 1
        %v1797 = vrot.slane %v1498, 1
        %v1798 = vsel %vm1170, %v1796, %v1797
        %v1799 = vrot.slane %v1771, 1
        %v1800 = vrot.slane %v1499, 1
        %v1801 = vsel %vm1170, %v1799, %v1800
        %v1802 = vrot.slane %v1772, 1
        %v1803 = vrot.slane %v1500, 1
        %v1804 = vsel %vm1170, %v1802, %v1803
        %v1805 = vrot.slane %v1773, 1
        %v1806 = vrot.slane %v1501, 1
        %v1807 = vsel %vm1170, %v1805, %v1806
        %v1808 = vrot.slane %v1774, 1
        %v1809 = vrot.slane %v1502, 1
        %v1810 = vsel %vm1170, %v1808, %v1809
        %v1811 = vrot.slane %v1775, 1
        %v1812 = vrot.slane %v1503, 1
        %v1813 = vsel %vm1170, %v1811, %v1812
        %v1814 = vrot.slane %v1776, 1
        %v1815 = vrot.slane %v1504, 1
        %v1816 = vsel %vm1170, %v1814, %v1815
        %v1817 = vrot.slane %v1777, 1
        %v1818 = vrot.slane %v1505, 1
        %v1819 = vsel %vm1170, %v1817, %v1818
        %v1820 = vrot.slane %v1778, 1
        %v1821 = vrot.slane %v1506, 1
        %v1822 = vsel %vm1170, %v1820, %v1821
        %v1823 = vrot.slane %v1779, 1
        %v1824 = vrot.slane %v1507, 1
        %v1825 = vsel %vm1170, %v1823, %v1824
        %v1826 = vrot.slane %v1780, 1
        %v1827 = vrot.slane %v1508, 1
        %v1828 = vsel %vm1170, %v1826, %v1827
        %1829 = vrot.lane.b32.xlu0 %v1783, 6
        %v1830 = vpop.permute.xlu0 %1829
        %1831 = vrot.lane.b32.xlu0 %v1786, 6
        %v1832 = vpop.permute.xlu0 %1831
        %1833 = vrot.lane.b32.xlu0 %v1789, 6
        %v1834 = vpop.permute.xlu0 %1833
        %1835 = vrot.lane.b32.xlu0 %v1792, 6
        %v1836 = vpop.permute.xlu0 %1835
        %1837 = vrot.lane.b32.xlu0 %v1795, 6
        %v1838 = vpop.permute.xlu0 %1837
        %1839 = vrot.lane.b32.xlu0 %v1798, 6
        %v1840 = vpop.permute.xlu0 %1839
        %1841 = vrot.lane.b32.xlu0 %v1801, 6
        %v1842 = vpop.permute.xlu0 %1841
        %1843 = vrot.lane.b32.xlu0 %v1804, 6
        %v1844 = vpop.permute.xlu0 %1843
        %1845 = vrot.lane.b32.xlu0 %v1807, 6
        %v1846 = vpop.permute.xlu0 %1845
        %1847 = vrot.lane.b32.xlu0 %v1810, 6
        %v1848 = vpop.permute.xlu0 %1847
        %1849 = vrot.lane.b32.xlu0 %v1813, 6
        %v1850 = vpop.permute.xlu0 %1849
        %1851 = vrot.lane.b32.xlu0 %v1816, 6
        %v1852 = vpop.permute.xlu0 %1851
        %1853 = vrot.lane.b32.xlu0 %v1819, 6
        %v1854 = vpop.permute.xlu0 %1853
        %1855 = vrot.lane.b32.xlu0 %v1822, 6
        %v1856 = vpop.permute.xlu0 %1855
        %1857 = vrot.lane.b32.xlu0 %v1825, 6
        %v1858 = vpop.permute.xlu0 %1857
        %1859 = vrot.lane.b32.xlu0 %v1828, 6
        %v1860 = vpop.permute.xlu0 %1859
        %v1862 = vsel %vm1251, %v1445, %v1702
        %v1864 = vsel %vm1251, %v1446, %v1704
        %v1866 = vsel %vm1251, %v1447, %v1706
        %v1868 = vsel %vm1251, %v1448, %v1708
        %v1870 = vsel %vm1251, %v1449, %v1710
        %v1872 = vsel %vm1251, %v1450, %v1712
        %v1874 = vsel %vm1251, %v1451, %v1714
        %v1876 = vsel %vm1251, %v1452, %v1716
        %v1878 = vsel %vm1251, %v1453, %v1718
        %v1880 = vsel %vm1251, %v1454, %v1720
        %v1882 = vsel %vm1251, %v1455, %v1722
        %v1884 = vsel %vm1251, %v1456, %v1724
        %v1886 = vsel %vm1251, %v1457, %v1726
        %v1888 = vsel %vm1251, %v1458, %v1728
        %v1890 = vsel %vm1251, %v1459, %v1730
        %v1892 = vsel %vm1251, %v1460, %v1732
        %v1894 = vsel %vm1284, %v1862, %v1830
        %v1896 = vsel %vm1284, %v1864, %v1832
        %v1898 = vsel %vm1284, %v1866, %v1834
        %v1900 = vsel %vm1284, %v1868, %v1836
        %v1902 = vsel %vm1284, %v1870, %v1838
        %v1904 = vsel %vm1284, %v1872, %v1840
        %v1906 = vsel %vm1284, %v1874, %v1842
        %v1908 = vsel %vm1284, %v1876, %v1844
        %v1910 = vsel %vm1284, %v1878, %v1846
        %v1912 = vsel %vm1284, %v1880, %v1848
        %v1914 = vsel %vm1284, %v1882, %v1850
        %v1916 = vsel %vm1284, %v1884, %v1852
        %v1918 = vsel %vm1284, %v1886, %v1854
        %v1920 = vsel %vm1284, %v1888, %v1856
        %v1922 = vsel %vm1284, %v1890, %v1858
        %v1924 = vsel %vm1284, %v1892, %v1860
        %v1927 = vunpack.c.l.b16 %v701
        %v1928 = vunpack.c.l.b16 %v702
        %v1929 = vpack.c.b16 %v1928, %v1927
        %vm1930 = vcmask 72704
        %v1931 = vsel %vm1930, %v1894, 0
        %v1933 = vsel %vm1930, %v1896, 0
        %v1935 = vsel %vm1930, %v1898, 0
        %v1937 = vsel %vm1930, %v1900, 0
        %v1939 = vsel %vm1930, %v1902, 0
        %v1941 = vsel %vm1930, %v1904, 0
        %v1943 = vsel %vm1930, %v1906, 0
        %v1945 = vsel %vm1930, %v1908, 0
        %v1947 = vsel %vm1930, %v1910, 0
        %v1949 = vsel %vm1930, %v1912, 0
        %v1951 = vsel %vm1930, %v1914, 0
        %v1953 = vsel %vm1930, %v1916, 0
        %v1955 = vsel %vm1930, %v1918, 0
        %v1957 = vsel %vm1930, %v1920, 0
        %v1959 = vsel %vm1930, %v1922, 0
        %v1961 = vsel %vm1930, %v1924, 0
        %vm1963 = vcmask 1043456
        %vm1964 = vcmask 1044480
        %v1965 = vsel %vm1963, 4294967295, 65535
        %v1966 = vsel %vm1964, %v1965, 0
        %v1968 = vand.u32 %v1929, %v1966
        %1970 = vmatpush.bf16.msra.mxu0 0
        %1971 = vmatpush.bf16.msra.mxu0 0
        %1972 = vmatpush.bf16.msra.mxu0 0
        %1973 = vmatpush.bf16.msra.mxu0 0
        %1974 = vmatpush.bf16.msra.mxu0 0
        %1975 = vmatpush.bf16.msra.mxu0 0
        %1976 = vmatpush.bf16.msra.mxu0 0
        %1977 = vmatpush.bf16.msra.mxu0 %v1968
        %1978 = vmatmul.bf16.gmra.mxu0 %v1931
        %v1979 = vpop.f32.mrf.mxu0
        %v1980 = vadd.f32 0.0, %v1979
        %v1981 = vpop.f32.mrf.mxu0
        %v1982 = vadd.f32 0.0, %v1981
        %1983 = vmatmul.bf16.gmra.mxu0 %v1933
        %v1984 = vpop.f32.mrf.mxu0
        %v1985 = vadd.f32 0.0, %v1984
        %v1986 = vpop.f32.mrf.mxu0
        %v1987 = vadd.f32 0.0, %v1986
        %1988 = vmatmul.bf16.gmra.mxu0 %v1935
        %v1989 = vpop.f32.mrf.mxu0
        %v1990 = vadd.f32 0.0, %v1989
        %v1991 = vpop.f32.mrf.mxu0
        %v1992 = vadd.f32 0.0, %v1991
        %1993 = vmatmul.bf16.gmra.mxu0 %v1937
        %v1994 = vpop.f32.mrf.mxu0
        %v1995 = vadd.f32 0.0, %v1994
        %v1996 = vpop.f32.mrf.mxu0
        %v1997 = vadd.f32 0.0, %v1996
        %1998 = vmatmul.bf16.gmra.mxu0 %v1939
        %v1999 = vpop.f32.mrf.mxu0
        %v2000 = vadd.f32 0.0, %v1999
        %v2001 = vpop.f32.mrf.mxu0
        %v2002 = vadd.f32 0.0, %v2001
        %2003 = vmatmul.bf16.gmra.mxu0 %v1941
        %v2004 = vpop.f32.mrf.mxu0
        %v2005 = vadd.f32 0.0, %v2004
        %v2006 = vpop.f32.mrf.mxu0
        %v2007 = vadd.f32 0.0, %v2006
        %2008 = vmatmul.bf16.gmra.mxu0 %v1943
        %v2009 = vpop.f32.mrf.mxu0
        %v2010 = vadd.f32 0.0, %v2009
        %v2011 = vpop.f32.mrf.mxu0
        %v2012 = vadd.f32 0.0, %v2011
        %2013 = vmatmul.bf16.gmra.mxu0 %v1945
        %v2014 = vpop.f32.mrf.mxu0
        %v2015 = vadd.f32 0.0, %v2014
        %v2016 = vpop.f32.mrf.mxu0
        %v2017 = vadd.f32 0.0, %v2016
        %2018 = vmatmul.bf16.gmra.mxu0 %v1947
        %v2019 = vpop.f32.mrf.mxu0
        %v2020 = vadd.f32 0.0, %v2019
        %v2021 = vpop.f32.mrf.mxu0
        %v2022 = vadd.f32 0.0, %v2021
        %2023 = vmatmul.bf16.gmra.mxu0 %v1949
        %v2024 = vpop.f32.mrf.mxu0
        %v2025 = vadd.f32 0.0, %v2024
        %v2026 = vpop.f32.mrf.mxu0
        %v2027 = vadd.f32 0.0, %v2026
        %2028 = vmatmul.bf16.gmra.mxu0 %v1951
        %v2029 = vpop.f32.mrf.mxu0
        %v2030 = vadd.f32 0.0, %v2029
        %v2031 = vpop.f32.mrf.mxu0
        %v2032 = vadd.f32 0.0, %v2031
        %2033 = vmatmul.bf16.gmra.mxu0 %v1953
        %v2034 = vpop.f32.mrf.mxu0
        %v2035 = vadd.f32 0.0, %v2034
        %v2036 = vpop.f32.mrf.mxu0
        %v2037 = vadd.f32 0.0, %v2036
        %2038 = vmatmul.bf16.gmra.mxu0 %v1955
        %v2039 = vpop.f32.mrf.mxu0
        %v2040 = vadd.f32 0.0, %v2039
        %v2041 = vpop.f32.mrf.mxu0
        %v2042 = vadd.f32 0.0, %v2041
        %2043 = vmatmul.bf16.gmra.mxu0 %v1957
        %v2044 = vpop.f32.mrf.mxu0
        %v2045 = vadd.f32 0.0, %v2044
        %v2046 = vpop.f32.mrf.mxu0
        %v2047 = vadd.f32 0.0, %v2046
        %2048 = vmatmul.bf16.gmra.mxu0 %v1959
        %v2049 = vpop.f32.mrf.mxu0
        %v2050 = vadd.f32 0.0, %v2049
        %v2051 = vpop.f32.mrf.mxu0
        %v2052 = vadd.f32 0.0, %v2051
        %2053 = vmatmul.bf16.gmra.mxu0 %v1961
        %v2054 = vpop.f32.mrf.mxu0
        %v2055 = vadd.f32 0.0, %v2054
        %v2056 = vpop.f32.mrf.mxu0
        %v2057 = vadd.f32 0.0, %v2056
        %2058 = vdwg.mxu0
        %v2061 = vunpack.c.l.b16 %v699
        %v2062 = vunpack.c.l.b16 %v700
        %v2063 = vpack.c.b16 %v2062, %v2061
        %v2064 = vsel %vm1930, %v1286, 0
        %v2066 = vsel %vm1930, %v1288, 0
        %v2068 = vsel %vm1930, %v1290, 0
        %v2070 = vsel %vm1930, %v1292, 0
        %v2072 = vsel %vm1930, %v1294, 0
        %v2074 = vsel %vm1930, %v1296, 0
        %v2076 = vsel %vm1930, %v1298, 0
        %v2078 = vsel %vm1930, %v1300, 0
        %v2080 = vsel %vm1930, %v1302, 0
        %v2082 = vsel %vm1930, %v1304, 0
        %v2084 = vsel %vm1930, %v1306, 0
        %v2086 = vsel %vm1930, %v1308, 0
        %v2088 = vsel %vm1930, %v1310, 0
        %v2090 = vsel %vm1930, %v1312, 0
        %v2092 = vsel %vm1930, %v1314, 0
        %v2094 = vsel %vm1930, %v1316, 0
        %v2097 = vand.u32 %v2063, %v1966
        %2099 = vmatpush.bf16.msra.mxu0 0
        %2100 = vmatpush.bf16.msra.mxu0 0
        %2101 = vmatpush.bf16.msra.mxu0 0
        %2102 = vmatpush.bf16.msra.mxu0 0
        %2103 = vmatpush.bf16.msra.mxu0 0
        %2104 = vmatpush.bf16.msra.mxu0 0
        %2105 = vmatpush.bf16.msra.mxu0 0
        %2106 = vmatpush.bf16.msra.mxu0 %v2097
        %2107 = vmatmul.bf16.gmra.mxu0 %v2064
        %v2108 = vpop.f32.mrf.mxu0
        %v2109 = vadd.f32 %v1980, %v2108
        %v2110 = vpop.f32.mrf.mxu0
        %v2111 = vadd.f32 %v1982, %v2110
        %2112 = vmatmul.bf16.gmra.mxu0 %v2066
        %v2113 = vpop.f32.mrf.mxu0
        %v2114 = vadd.f32 %v1985, %v2113
        %v2115 = vpop.f32.mrf.mxu0
        %v2116 = vadd.f32 %v1987, %v2115
        %2117 = vmatmul.bf16.gmra.mxu0 %v2068
        %v2118 = vpop.f32.mrf.mxu0
        %v2119 = vadd.f32 %v1990, %v2118
        %v2120 = vpop.f32.mrf.mxu0
        %v2121 = vadd.f32 %v1992, %v2120
        %2122 = vmatmul.bf16.gmra.mxu0 %v2070
        %v2123 = vpop.f32.mrf.mxu0
        %v2124 = vadd.f32 %v1995, %v2123
        %v2125 = vpop.f32.mrf.mxu0
        %v2126 = vadd.f32 %v1997, %v2125
        %2127 = vmatmul.bf16.gmra.mxu0 %v2072
        %v2128 = vpop.f32.mrf.mxu0
        %v2129 = vadd.f32 %v2000, %v2128
        %v2130 = vpop.f32.mrf.mxu0
        %v2131 = vadd.f32 %v2002, %v2130
        %2132 = vmatmul.bf16.gmra.mxu0 %v2074
        %v2133 = vpop.f32.mrf.mxu0
        %v2134 = vadd.f32 %v2005, %v2133
        %v2135 = vpop.f32.mrf.mxu0
        %v2136 = vadd.f32 %v2007, %v2135
        %2137 = vmatmul.bf16.gmra.mxu0 %v2076
        %v2138 = vpop.f32.mrf.mxu0
        %v2139 = vadd.f32 %v2010, %v2138
        %v2140 = vpop.f32.mrf.mxu0
        %v2141 = vadd.f32 %v2012, %v2140
        %2142 = vmatmul.bf16.gmra.mxu0 %v2078
        %v2143 = vpop.f32.mrf.mxu0
        %v2144 = vadd.f32 %v2015, %v2143
        %v2145 = vpop.f32.mrf.mxu0
        %v2146 = vadd.f32 %v2017, %v2145
        %2147 = vmatmul.bf16.gmra.mxu0 %v2080
        %v2148 = vpop.f32.mrf.mxu0
        %v2149 = vadd.f32 %v2020, %v2148
        %v2150 = vpop.f32.mrf.mxu0
        %v2151 = vadd.f32 %v2022, %v2150
        %2152 = vmatmul.bf16.gmra.mxu0 %v2082
        %v2153 = vpop.f32.mrf.mxu0
        %v2154 = vadd.f32 %v2025, %v2153
        %v2155 = vpop.f32.mrf.mxu0
        %v2156 = vadd.f32 %v2027, %v2155
        %2157 = vmatmul.bf16.gmra.mxu0 %v2084
        %v2158 = vpop.f32.mrf.mxu0
        %v2159 = vadd.f32 %v2030, %v2158
        %v2160 = vpop.f32.mrf.mxu0
        %v2161 = vadd.f32 %v2032, %v2160
        %2162 = vmatmul.bf16.gmra.mxu0 %v2086
        %v2163 = vpop.f32.mrf.mxu0
        %v2164 = vadd.f32 %v2035, %v2163
        %v2165 = vpop.f32.mrf.mxu0
        %v2166 = vadd.f32 %v2037, %v2165
        %2167 = vmatmul.bf16.gmra.mxu0 %v2088
        %v2168 = vpop.f32.mrf.mxu0
        %v2169 = vadd.f32 %v2040, %v2168
        %v2170 = vpop.f32.mrf.mxu0
        %v2171 = vadd.f32 %v2042, %v2170
        %2172 = vmatmul.bf16.gmra.mxu0 %v2090
        %v2173 = vpop.f32.mrf.mxu0
        %v2174 = vadd.f32 %v2045, %v2173
        %v2175 = vpop.f32.mrf.mxu0
        %v2176 = vadd.f32 %v2047, %v2175
        %2177 = vmatmul.bf16.gmra.mxu0 %v2092
        %v2178 = vpop.f32.mrf.mxu0
        %v2179 = vadd.f32 %v2050, %v2178
        %v2180 = vpop.f32.mrf.mxu0
        %v2181 = vadd.f32 %v2052, %v2180
        %2182 = vmatmul.bf16.gmra.mxu0 %v2094
        %v2183 = vpop.f32.mrf.mxu0
        %v2184 = vadd.f32 %v2055, %v2183
        %v2185 = vpop.f32.mrf.mxu0
        %v2186 = vadd.f32 %v2057, %v2185
        %2187 = vdwg.mxu0
        %s2188 = scalar_lea.vmem [#allocation2], 24
        %v2189 = vld [vmem:[%s2188] sm:$0xf]
        %v2190 = vld [vmem:[%s2188 + $0x4] sm:$0xf]
        %v2191 = vld [vmem:[%s2188 + $0xc] sm:$0xf]
        %v2192 = vld [vmem:[%s2188 + $0x10] sm:$0xf]
        %v2193 = vld [vmem:[%s2188 + $0x18] sm:$0xf]
        %v2194 = vld [vmem:[%s2188 + $0x1c] sm:$0xf]
        %v2195 = vld [vmem:[%s2188 + $0x24] sm:$0xf]
        %v2196 = vld [vmem:[%s2188 + $0x28] sm:$0xf]
        %v2197 = vld [vmem:[%s2188 + $0x30] sm:$0xf]
        %v2198 = vld [vmem:[%s2188 + $0x34] sm:$0xf]
        %v2199 = vld [vmem:[%s2188 + $0x3c] sm:$0xf]
        %v2200 = vld [vmem:[%s2188 + $0x40] sm:$0xf]
        %v2201 = vld [vmem:[%s2188 + $0x48] sm:$0xf]
        %v2202 = vld [vmem:[%s2188 + $0x4c] sm:$0xf]
        %v2203 = vld [vmem:[%s2188 + $0x54] sm:$0xf]
        %v2204 = vld [vmem:[%s2188 + $0x58] sm:$0xf]
        %v2205 = vld [vmem:[%s2188 + $0x60] sm:$0xf]
        %v2206 = vld [vmem:[%s2188 + $0x64] sm:$0xf]
        %v2207 = vld [vmem:[%s2188 + $0x6c] sm:$0xf]
        %v2208 = vld [vmem:[%s2188 + $0x70] sm:$0xf]
        %v2209 = vld [vmem:[%s2188 + $0x78] sm:$0xf]
        %v2210 = vld [vmem:[%s2188 + $0x7c] sm:$0xf]
        %v2211 = vld [vmem:[%s2188 + $0x84] sm:$0xf]
        %v2212 = vld [vmem:[%s2188 + $0x88] sm:$0xf]
        %v2213 = vld [vmem:[%s2188 + $0x90] sm:$0xf]
        %v2214 = vld [vmem:[%s2188 + $0x94] sm:$0xf]
        %v2215 = vld [vmem:[%s2188 + $0x9c] sm:$0xf]
        %v2216 = vld [vmem:[%s2188 + $0xa0] sm:$0xf]
        %v2217 = vld [vmem:[%s2188 + $0xa8] sm:$0xf]
        %v2218 = vld [vmem:[%s2188 + $0xac] sm:$0xf]
        %v2219 = vld [vmem:[%s2188 + $0xb4] sm:$0xf]
        %v2220 = vld [vmem:[%s2188 + $0xb8] sm:$0xf]
        %v2221 = vld [vmem:[%s2188 + $0x8] sm:$0x1]
        %v2222 = vld [vmem:[%s2188 + $0x14] sm:$0x1]
        %v2223 = vld [vmem:[%s2188 + $0x20] sm:$0x1]
        %v2224 = vld [vmem:[%s2188 + $0x2c] sm:$0x1]
        %v2225 = vld [vmem:[%s2188 + $0x38] sm:$0x1]
        %v2226 = vld [vmem:[%s2188 + $0x44] sm:$0x1]
        %v2227 = vld [vmem:[%s2188 + $0x50] sm:$0x1]
        %v2228 = vld [vmem:[%s2188 + $0x5c] sm:$0x1]
        %v2229 = vld [vmem:[%s2188 + $0x68] sm:$0x1]
        %v2230 = vld [vmem:[%s2188 + $0x74] sm:$0x1]
        %v2231 = vld [vmem:[%s2188 + $0x80] sm:$0x1]
        %v2232 = vld [vmem:[%s2188 + $0x8c] sm:$0x1]
        %v2233 = vld [vmem:[%s2188 + $0x98] sm:$0x1]
        %v2234 = vld [vmem:[%s2188 + $0xa4] sm:$0x1]
        %v2235 = vld [vmem:[%s2188 + $0xb0] sm:$0x1]
        %v2236 = vld [vmem:[%s2188 + $0xbc] sm:$0x1]
        %v2237 = vld [vmem:[%s2188] sm:$0xe]
        %v2238 = vld [vmem:[%s2188 + $0xc] sm:$0xe]
        %v2239 = vld [vmem:[%s2188 + $0x18] sm:$0xe]
        %v2240 = vld [vmem:[%s2188 + $0x24] sm:$0xe]
        %v2241 = vld [vmem:[%s2188 + $0x30] sm:$0xe]
        %v2242 = vld [vmem:[%s2188 + $0x3c] sm:$0xe]
        %v2243 = vld [vmem:[%s2188 + $0x48] sm:$0xe]
        %v2244 = vld [vmem:[%s2188 + $0x54] sm:$0xe]
        %v2245 = vld [vmem:[%s2188 + $0x60] sm:$0xe]
        %v2246 = vld [vmem:[%s2188 + $0x6c] sm:$0xe]
        %v2247 = vld [vmem:[%s2188 + $0x78] sm:$0xe]
        %v2248 = vld [vmem:[%s2188 + $0x84] sm:$0xe]
        %v2249 = vld [vmem:[%s2188 + $0x90] sm:$0xe]
        %v2250 = vld [vmem:[%s2188 + $0x9c] sm:$0xe]
        %v2251 = vld [vmem:[%s2188 + $0xa8] sm:$0xe]
        %v2252 = vld [vmem:[%s2188 + $0xb4] sm:$0xe]
        %v2285 = vunpack.c.l.b16 %v2189
        %v2286 = vunpack.c.l.b16 %v2190
        %v2287 = vunpack.c.l.b16 %v2191
        %v2288 = vunpack.c.l.b16 %v2192
        %v2289 = vunpack.c.l.b16 %v2193
        %v2290 = vunpack.c.l.b16 %v2194
        %v2291 = vunpack.c.l.b16 %v2195
        %v2292 = vunpack.c.l.b16 %v2196
        %v2293 = vunpack.c.l.b16 %v2197
        %v2294 = vunpack.c.l.b16 %v2198
        %v2295 = vunpack.c.l.b16 %v2199
        %v2296 = vunpack.c.l.b16 %v2200
        %v2297 = vunpack.c.l.b16 %v2201
        %v2298 = vunpack.c.l.b16 %v2202
        %v2299 = vunpack.c.l.b16 %v2203
        %v2300 = vunpack.c.l.b16 %v2204
        %v2301 = vunpack.c.l.b16 %v2205
        %v2302 = vunpack.c.l.b16 %v2206
        %v2303 = vunpack.c.l.b16 %v2207
        %v2304 = vunpack.c.l.b16 %v2208
        %v2305 = vunpack.c.l.b16 %v2209
        %v2306 = vunpack.c.l.b16 %v2210
        %v2307 = vunpack.c.l.b16 %v2211
        %v2308 = vunpack.c.l.b16 %v2212
        %v2309 = vunpack.c.l.b16 %v2213
        %v2310 = vunpack.c.l.b16 %v2214
        %v2311 = vunpack.c.l.b16 %v2215
        %v2312 = vunpack.c.l.b16 %v2216
        %v2313 = vunpack.c.l.b16 %v2217
        %v2314 = vunpack.c.l.b16 %v2218
        %v2315 = vunpack.c.l.b16 %v2219
        %v2316 = vunpack.c.l.b16 %v2220
        %v2317 = vpack.c.b16 %v2286, %v2285
        %v2318 = vpack.c.b16 %v2288, %v2287
        %v2319 = vpack.c.b16 %v2290, %v2289
        %v2320 = vpack.c.b16 %v2292, %v2291
        %v2321 = vpack.c.b16 %v2294, %v2293
        %v2322 = vpack.c.b16 %v2296, %v2295
        %v2323 = vpack.c.b16 %v2298, %v2297
        %v2324 = vpack.c.b16 %v2300, %v2299
        %v2325 = vpack.c.b16 %v2302, %v2301
        %v2326 = vpack.c.b16 %v2304, %v2303
        %v2327 = vpack.c.b16 %v2306, %v2305
        %v2328 = vpack.c.b16 %v2308, %v2307
        %v2329 = vpack.c.b16 %v2310, %v2309
        %v2330 = vpack.c.b16 %v2312, %v2311
        %v2331 = vpack.c.b16 %v2314, %v2313
        %v2332 = vpack.c.b16 %v2316, %v2315
        %v2349 = vunpack.c.l.b16 %v2221
        %v2350 = vunpack.c.l.b16 %v2222
        %v2351 = vunpack.c.l.b16 %v2223
        %v2352 = vunpack.c.l.b16 %v2224
        %v2353 = vunpack.c.l.b16 %v2225
        %v2354 = vunpack.c.l.b16 %v2226
        %v2355 = vunpack.c.l.b16 %v2227
        %v2356 = vunpack.c.l.b16 %v2228
        %v2357 = vunpack.c.l.b16 %v2229
        %v2358 = vunpack.c.l.b16 %v2230
        %v2359 = vunpack.c.l.b16 %v2231
        %v2360 = vunpack.c.l.b16 %v2232
        %v2361 = vunpack.c.l.b16 %v2233
        %v2362 = vunpack.c.l.b16 %v2234
        %v2363 = vunpack.c.l.b16 %v2235
        %v2364 = vunpack.c.l.b16 %v2236
        %v2365 = vpack.c.b16 %v2349, %v2349
        %v2366 = vpack.c.b16 %v2350, %v2350
        %v2367 = vpack.c.b16 %v2351, %v2351
        %v2368 = vpack.c.b16 %v2352, %v2352
        %v2369 = vpack.c.b16 %v2353, %v2353
        %v2370 = vpack.c.b16 %v2354, %v2354
        %v2371 = vpack.c.b16 %v2355, %v2355
        %v2372 = vpack.c.b16 %v2356, %v2356
        %v2373 = vpack.c.b16 %v2357, %v2357
        %v2374 = vpack.c.b16 %v2358, %v2358
        %v2375 = vpack.c.b16 %v2359, %v2359
        %v2376 = vpack.c.b16 %v2360, %v2360
        %v2377 = vpack.c.b16 %v2361, %v2361
        %v2378 = vpack.c.b16 %v2362, %v2362
        %v2379 = vpack.c.b16 %v2363, %v2363
        %v2380 = vpack.c.b16 %v2364, %v2364
        %v2382 = vshrl.u32 %v2317, 16
        %v2384 = vshll.u32 %v2317, 16
        %v2386 = vrot.slane %v2384, 1
        %v2387 = vor.u32 %v2382, %v2386
        %v2389 = vshll.u32 %v2365, 16
        %v2391 = vrot.slane %v2389, 1
        %v2392 = vsel %vm897, %v2387, %v2391
        %v2394 = vshrl.u32 %v2318, 16
        %v2396 = vshll.u32 %v2318, 16
        %v2398 = vrot.slane %v2396, 1
        %v2399 = vor.u32 %v2394, %v2398
        %v2401 = vshll.u32 %v2366, 16
        %v2403 = vrot.slane %v2401, 1
        %v2404 = vsel %vm897, %v2399, %v2403
        %v2406 = vshrl.u32 %v2319, 16
        %v2408 = vshll.u32 %v2319, 16
        %v2410 = vrot.slane %v2408, 1
        %v2411 = vor.u32 %v2406, %v2410
        %v2413 = vshll.u32 %v2367, 16
        %v2415 = vrot.slane %v2413, 1
        %v2416 = vsel %vm897, %v2411, %v2415
        %v2418 = vshrl.u32 %v2320, 16
        %v2420 = vshll.u32 %v2320, 16
        %v2422 = vrot.slane %v2420, 1
        %v2423 = vor.u32 %v2418, %v2422
        %v2425 = vshll.u32 %v2368, 16
        %v2427 = vrot.slane %v2425, 1
        %v2428 = vsel %vm897, %v2423, %v2427
        %v2430 = vshrl.u32 %v2321, 16
        %v2432 = vshll.u32 %v2321, 16
        %v2434 = vrot.slane %v2432, 1
        %v2435 = vor.u32 %v2430, %v2434
        %v2437 = vshll.u32 %v2369, 16
        %v2439 = vrot.slane %v2437, 1
        %v2440 = vsel %vm897, %v2435, %v2439
        %v2442 = vshrl.u32 %v2322, 16
        %v2444 = vshll.u32 %v2322, 16
        %v2446 = vrot.slane %v2444, 1
        %v2447 = vor.u32 %v2442, %v2446
        %v2449 = vshll.u32 %v2370, 16
        %v2451 = vrot.slane %v2449, 1
        %v2452 = vsel %vm897, %v2447, %v2451
        %v2454 = vshrl.u32 %v2323, 16
        %v2456 = vshll.u32 %v2323, 16
        %v2458 = vrot.slane %v2456, 1
        %v2459 = vor.u32 %v2454, %v2458
        %v2461 = vshll.u32 %v2371, 16
        %v2463 = vrot.slane %v2461, 1
        %v2464 = vsel %vm897, %v2459, %v2463
        %v2466 = vshrl.u32 %v2324, 16
        %v2468 = vshll.u32 %v2324, 16
        %v2470 = vrot.slane %v2468, 1
        %v2471 = vor.u32 %v2466, %v2470
        %v2473 = vshll.u32 %v2372, 16
        %v2475 = vrot.slane %v2473, 1
        %v2476 = vsel %vm897, %v2471, %v2475
        %v2478 = vshrl.u32 %v2325, 16
        %v2480 = vshll.u32 %v2325, 16
        %v2482 = vrot.slane %v2480, 1
        %v2483 = vor.u32 %v2478, %v2482
        %v2485 = vshll.u32 %v2373, 16
        %v2487 = vrot.slane %v2485, 1
        %v2488 = vsel %vm897, %v2483, %v2487
        %v2490 = vshrl.u32 %v2326, 16
        %v2492 = vshll.u32 %v2326, 16
        %v2494 = vrot.slane %v2492, 1
        %v2495 = vor.u32 %v2490, %v2494
        %v2497 = vshll.u32 %v2374, 16
        %v2499 = vrot.slane %v2497, 1
        %v2500 = vsel %vm897, %v2495, %v2499
        %v2502 = vshrl.u32 %v2327, 16
        %v2504 = vshll.u32 %v2327, 16
        %v2506 = vrot.slane %v2504, 1
        %v2507 = vor.u32 %v2502, %v2506
        %v2509 = vshll.u32 %v2375, 16
        %v2511 = vrot.slane %v2509, 1
        %v2512 = vsel %vm897, %v2507, %v2511
        %v2514 = vshrl.u32 %v2328, 16
        %v2516 = vshll.u32 %v2328, 16
        %v2518 = vrot.slane %v2516, 1
        %v2519 = vor.u32 %v2514, %v2518
        %v2521 = vshll.u32 %v2376, 16
        %v2523 = vrot.slane %v2521, 1
        %v2524 = vsel %vm897, %v2519, %v2523
        %v2526 = vshrl.u32 %v2329, 16
        %v2528 = vshll.u32 %v2329, 16
        %v2530 = vrot.slane %v2528, 1
        %v2531 = vor.u32 %v2526, %v2530
        %v2533 = vshll.u32 %v2377, 16
        %v2535 = vrot.slane %v2533, 1
        %v2536 = vsel %vm897, %v2531, %v2535
        %v2538 = vshrl.u32 %v2330, 16
        %v2540 = vshll.u32 %v2330, 16
        %v2542 = vrot.slane %v2540, 1
        %v2543 = vor.u32 %v2538, %v2542
        %v2545 = vshll.u32 %v2378, 16
        %v2547 = vrot.slane %v2545, 1
        %v2548 = vsel %vm897, %v2543, %v2547
        %v2550 = vshrl.u32 %v2331, 16
        %v2552 = vshll.u32 %v2331, 16
        %v2554 = vrot.slane %v2552, 1
        %v2555 = vor.u32 %v2550, %v2554
        %v2557 = vshll.u32 %v2379, 16
        %v2559 = vrot.slane %v2557, 1
        %v2560 = vsel %vm897, %v2555, %v2559
        %v2562 = vshrl.u32 %v2332, 16
        %v2564 = vshll.u32 %v2332, 16
        %v2566 = vrot.slane %v2564, 1
        %v2567 = vor.u32 %v2562, %v2566
        %v2569 = vshll.u32 %v2380, 16
        %v2571 = vrot.slane %v2569, 1
        %v2572 = vsel %vm897, %v2567, %v2571
        %2573 = vrot.lane.b32.xlu0 %v2392, 3
        %v2574 = vpop.permute.xlu0 %2573
        %2575 = vrot.lane.b32.xlu0 %v2404, 3
        %v2576 = vpop.permute.xlu0 %2575
        %2577 = vrot.lane.b32.xlu0 %v2416, 3
        %v2578 = vpop.permute.xlu0 %2577
        %2579 = vrot.lane.b32.xlu0 %v2428, 3
        %v2580 = vpop.permute.xlu0 %2579
        %2581 = vrot.lane.b32.xlu0 %v2440, 3
        %v2582 = vpop.permute.xlu0 %2581
        %2583 = vrot.lane.b32.xlu0 %v2452, 3
        %v2584 = vpop.permute.xlu0 %2583
        %2585 = vrot.lane.b32.xlu0 %v2464, 3
        %v2586 = vpop.permute.xlu0 %2585
        %2587 = vrot.lane.b32.xlu0 %v2476, 3
        %v2588 = vpop.permute.xlu0 %2587
        %2589 = vrot.lane.b32.xlu0 %v2488, 3
        %v2590 = vpop.permute.xlu0 %2589
        %2591 = vrot.lane.b32.xlu0 %v2500, 3
        %v2592 = vpop.permute.xlu0 %2591
        %2593 = vrot.lane.b32.xlu0 %v2512, 3
        %v2594 = vpop.permute.xlu0 %2593
        %2595 = vrot.lane.b32.xlu0 %v2524, 3
        %v2596 = vpop.permute.xlu0 %2595
        %2597 = vrot.lane.b32.xlu0 %v2536, 3
        %v2598 = vpop.permute.xlu0 %2597
        %2599 = vrot.lane.b32.xlu0 %v2548, 3
        %v2600 = vpop.permute.xlu0 %2599
        %2601 = vrot.lane.b32.xlu0 %v2560, 3
        %v2602 = vpop.permute.xlu0 %2601
        %2603 = vrot.lane.b32.xlu0 %v2572, 3
        %v2604 = vpop.permute.xlu0 %2603
        %v2621 = vunpack.c.l.b16 %v2237
        %v2622 = vunpack.c.l.b16 %v2238
        %v2623 = vunpack.c.l.b16 %v2239
        %v2624 = vunpack.c.l.b16 %v2240
        %v2625 = vunpack.c.l.b16 %v2241
        %v2626 = vunpack.c.l.b16 %v2242
        %v2627 = vunpack.c.l.b16 %v2243
        %v2628 = vunpack.c.l.b16 %v2244
        %v2629 = vunpack.c.l.b16 %v2245
        %v2630 = vunpack.c.l.b16 %v2246
        %v2631 = vunpack.c.l.b16 %v2247
        %v2632 = vunpack.c.l.b16 %v2248
        %v2633 = vunpack.c.l.b16 %v2249
        %v2634 = vunpack.c.l.b16 %v2250
        %v2635 = vunpack.c.l.b16 %v2251
        %v2636 = vunpack.c.l.b16 %v2252
        %v2637 = vpack.c.b16 %v2286, %v2621
        %v2638 = vpack.c.b16 %v2288, %v2622
        %v2639 = vpack.c.b16 %v2290, %v2623
        %v2640 = vpack.c.b16 %v2292, %v2624
        %v2641 = vpack.c.b16 %v2294, %v2625
        %v2642 = vpack.c.b16 %v2296, %v2626
        %v2643 = vpack.c.b16 %v2298, %v2627
        %v2644 = vpack.c.b16 %v2300, %v2628
        %v2645 = vpack.c.b16 %v2302, %v2629
        %v2646 = vpack.c.b16 %v2304, %v2630
        %v2647 = vpack.c.b16 %v2306, %v2631
        %v2648 = vpack.c.b16 %v2308, %v2632
        %v2649 = vpack.c.b16 %v2310, %v2633
        %v2650 = vpack.c.b16 %v2312, %v2634
        %v2651 = vpack.c.b16 %v2314, %v2635
        %v2652 = vpack.c.b16 %v2316, %v2636
        %v2653 = vrot.slane %v2637, 1
        %v2654 = vrot.slane %v2365, 1
        %v2655 = vsel %vm1170, %v2653, %v2654
        %v2656 = vrot.slane %v2638, 1
        %v2657 = vrot.slane %v2366, 1
        %v2658 = vsel %vm1170, %v2656, %v2657
        %v2659 = vrot.slane %v2639, 1
        %v2660 = vrot.slane %v2367, 1
        %v2661 = vsel %vm1170, %v2659, %v2660
        %v2662 = vrot.slane %v2640, 1
        %v2663 = vrot.slane %v2368, 1
        %v2664 = vsel %vm1170, %v2662, %v2663
        %v2665 = vrot.slane %v2641, 1
        %v2666 = vrot.slane %v2369, 1
        %v2667 = vsel %vm1170, %v2665, %v2666
        %v2668 = vrot.slane %v2642, 1
        %v2669 = vrot.slane %v2370, 1
        %v2670 = vsel %vm1170, %v2668, %v2669
        %v2671 = vrot.slane %v2643, 1
        %v2672 = vrot.slane %v2371, 1
        %v2673 = vsel %vm1170, %v2671, %v2672
        %v2674 = vrot.slane %v2644, 1
        %v2675 = vrot.slane %v2372, 1
        %v2676 = vsel %vm1170, %v2674, %v2675
        %v2677 = vrot.slane %v2645, 1
        %v2678 = vrot.slane %v2373, 1
        %v2679 = vsel %vm1170, %v2677, %v2678
        %v2680 = vrot.slane %v2646, 1
        %v2681 = vrot.slane %v2374, 1
        %v2682 = vsel %vm1170, %v2680, %v2681
        %v2683 = vrot.slane %v2647, 1
        %v2684 = vrot.slane %v2375, 1
        %v2685 = vsel %vm1170, %v2683, %v2684
        %v2686 = vrot.slane %v2648, 1
        %v2687 = vrot.slane %v2376, 1
        %v2688 = vsel %vm1170, %v2686, %v2687
        %v2689 = vrot.slane %v2649, 1
        %v2690 = vrot.slane %v2377, 1
        %v2691 = vsel %vm1170, %v2689, %v2690
        %v2692 = vrot.slane %v2650, 1
        %v2693 = vrot.slane %v2378, 1
        %v2694 = vsel %vm1170, %v2692, %v2693
        %v2695 = vrot.slane %v2651, 1
        %v2696 = vrot.slane %v2379, 1
        %v2697 = vsel %vm1170, %v2695, %v2696
        %v2698 = vrot.slane %v2652, 1
        %v2699 = vrot.slane %v2380, 1
        %v2700 = vsel %vm1170, %v2698, %v2699
        %2701 = vrot.lane.b32.xlu0 %v2655, 6
        %v2702 = vpop.permute.xlu0 %2701
        %2703 = vrot.lane.b32.xlu0 %v2658, 6
        %v2704 = vpop.permute.xlu0 %2703
        %2705 = vrot.lane.b32.xlu0 %v2661, 6
        %v2706 = vpop.permute.xlu0 %2705
        %2707 = vrot.lane.b32.xlu0 %v2664, 6
        %v2708 = vpop.permute.xlu0 %2707
        %2709 = vrot.lane.b32.xlu0 %v2667, 6
        %v2710 = vpop.permute.xlu0 %2709
        %2711 = vrot.lane.b32.xlu0 %v2670, 6
        %v2712 = vpop.permute.xlu0 %2711
        %2713 = vrot.lane.b32.xlu0 %v2673, 6
        %v2714 = vpop.permute.xlu0 %2713
        %2715 = vrot.lane.b32.xlu0 %v2676, 6
        %v2716 = vpop.permute.xlu0 %2715
        %2717 = vrot.lane.b32.xlu0 %v2679, 6
        %v2718 = vpop.permute.xlu0 %2717
        %2719 = vrot.lane.b32.xlu0 %v2682, 6
        %v2720 = vpop.permute.xlu0 %2719
        %2721 = vrot.lane.b32.xlu0 %v2685, 6
        %v2722 = vpop.permute.xlu0 %2721
        %2723 = vrot.lane.b32.xlu0 %v2688, 6
        %v2724 = vpop.permute.xlu0 %2723
        %2725 = vrot.lane.b32.xlu0 %v2691, 6
        %v2726 = vpop.permute.xlu0 %2725
        %2727 = vrot.lane.b32.xlu0 %v2694, 6
        %v2728 = vpop.permute.xlu0 %2727
        %2729 = vrot.lane.b32.xlu0 %v2697, 6
        %v2730 = vpop.permute.xlu0 %2729
        %2731 = vrot.lane.b32.xlu0 %v2700, 6
        %v2732 = vpop.permute.xlu0 %2731
        %v2734 = vsel %vm1251, %v2317, %v2574
        %v2736 = vsel %vm1251, %v2318, %v2576
        %v2738 = vsel %vm1251, %v2319, %v2578
        %v2740 = vsel %vm1251, %v2320, %v2580
        %v2742 = vsel %vm1251, %v2321, %v2582
        %v2744 = vsel %vm1251, %v2322, %v2584
        %v2746 = vsel %vm1251, %v2323, %v2586
        %v2748 = vsel %vm1251, %v2324, %v2588
        %v2750 = vsel %vm1251, %v2325, %v2590
        %v2752 = vsel %vm1251, %v2326, %v2592
        %v2754 = vsel %vm1251, %v2327, %v2594
        %v2756 = vsel %vm1251, %v2328, %v2596
        %v2758 = vsel %vm1251, %v2329, %v2598
        %v2760 = vsel %vm1251, %v2330, %v2600
        %v2762 = vsel %vm1251, %v2331, %v2602
        %v2764 = vsel %vm1251, %v2332, %v2604
        %v2766 = vsel %vm1284, %v2734, %v2702
        %v2768 = vsel %vm1284, %v2736, %v2704
        %v2770 = vsel %vm1284, %v2738, %v2706
        %v2772 = vsel %vm1284, %v2740, %v2708
        %v2774 = vsel %vm1284, %v2742, %v2710
        %v2776 = vsel %vm1284, %v2744, %v2712
        %v2778 = vsel %vm1284, %v2746, %v2714
        %v2780 = vsel %vm1284, %v2748, %v2716
        %v2782 = vsel %vm1284, %v2750, %v2718
        %v2784 = vsel %vm1284, %v2752, %v2720
        %v2786 = vsel %vm1284, %v2754, %v2722
        %v2788 = vsel %vm1284, %v2756, %v2724
        %v2790 = vsel %vm1284, %v2758, %v2726
        %v2792 = vsel %vm1284, %v2760, %v2728
        %v2794 = vsel %vm1284, %v2762, %v2730
        %v2796 = vsel %vm1284, %v2764, %v2732
        %v2799 = vunpack.c.l.b16 %v703
        %v2800 = vunpack.c.l.b16 %v704
        %v2801 = vpack.c.b16 %v2800, %v2799
        %v2802 = vsel %vm1930, %v2766, 0
        %v2804 = vsel %vm1930, %v2768, 0
        %v2806 = vsel %vm1930, %v2770, 0
        %v2808 = vsel %vm1930, %v2772, 0
        %v2810 = vsel %vm1930, %v2774, 0
        %v2812 = vsel %vm1930, %v2776, 0
        %v2814 = vsel %vm1930, %v2778, 0
        %v2816 = vsel %vm1930, %v2780, 0
        %v2818 = vsel %vm1930, %v2782, 0
        %v2820 = vsel %vm1930, %v2784, 0
        %v2822 = vsel %vm1930, %v2786, 0
        %v2824 = vsel %vm1930, %v2788, 0
        %v2826 = vsel %vm1930, %v2790, 0
        %v2828 = vsel %vm1930, %v2792, 0
        %v2830 = vsel %vm1930, %v2794, 0
        %v2832 = vsel %vm1930, %v2796, 0
        %v2835 = vand.u32 %v2801, %v1966
        %2837 = vmatpush.bf16.msra.mxu0 0
        %2838 = vmatpush.bf16.msra.mxu0 0
        %2839 = vmatpush.bf16.msra.mxu0 0
        %2840 = vmatpush.bf16.msra.mxu0 0
        %2841 = vmatpush.bf16.msra.mxu0 0
        %2842 = vmatpush.bf16.msra.mxu0 0
        %2843 = vmatpush.bf16.msra.mxu0 0
        %2844 = vmatpush.bf16.msra.mxu0 %v2835
        %2845 = vmatmul.bf16.gmra.mxu0 %v2802
        %v2846 = vpop.f32.mrf.mxu0
        %v2847 = vadd.f32 0.0, %v2846
        %v2848 = vpop.f32.mrf.mxu0
        %v2849 = vadd.f32 0.0, %v2848
        %2850 = vmatmul.bf16.gmra.mxu0 %v2804
        %v2851 = vpop.f32.mrf.mxu0
        %v2852 = vadd.f32 0.0, %v2851
        %v2853 = vpop.f32.mrf.mxu0
        %v2854 = vadd.f32 0.0, %v2853
        %2855 = vmatmul.bf16.gmra.mxu0 %v2806
        %v2856 = vpop.f32.mrf.mxu0
        %v2857 = vadd.f32 0.0, %v2856
        %v2858 = vpop.f32.mrf.mxu0
        %v2859 = vadd.f32 0.0, %v2858
        %2860 = vmatmul.bf16.gmra.mxu0 %v2808
        %v2861 = vpop.f32.mrf.mxu0
        %v2862 = vadd.f32 0.0, %v2861
        %v2863 = vpop.f32.mrf.mxu0
        %v2864 = vadd.f32 0.0, %v2863
        %2865 = vmatmul.bf16.gmra.mxu0 %v2810
        %v2866 = vpop.f32.mrf.mxu0
        %v2867 = vadd.f32 0.0, %v2866
        %v2868 = vpop.f32.mrf.mxu0
        %v2869 = vadd.f32 0.0, %v2868
        %2870 = vmatmul.bf16.gmra.mxu0 %v2812
        %v2871 = vpop.f32.mrf.mxu0
        %v2872 = vadd.f32 0.0, %v2871
        %v2873 = vpop.f32.mrf.mxu0
        %v2874 = vadd.f32 0.0, %v2873
        %2875 = vmatmul.bf16.gmra.mxu0 %v2814
        %v2876 = vpop.f32.mrf.mxu0
        %v2877 = vadd.f32 0.0, %v2876
        %v2878 = vpop.f32.mrf.mxu0
        %v2879 = vadd.f32 0.0, %v2878
        %2880 = vmatmul.bf16.gmra.mxu0 %v2816
        %v2881 = vpop.f32.mrf.mxu0
        %v2882 = vadd.f32 0.0, %v2881
        %v2883 = vpop.f32.mrf.mxu0
        %v2884 = vadd.f32 0.0, %v2883
        %2885 = vmatmul.bf16.gmra.mxu0 %v2818
        %v2886 = vpop.f32.mrf.mxu0
        %v2887 = vadd.f32 0.0, %v2886
        %v2888 = vpop.f32.mrf.mxu0
        %v2889 = vadd.f32 0.0, %v2888
        %2890 = vmatmul.bf16.gmra.mxu0 %v2820
        %v2891 = vpop.f32.mrf.mxu0
        %v2892 = vadd.f32 0.0, %v2891
        %v2893 = vpop.f32.mrf.mxu0
        %v2894 = vadd.f32 0.0, %v2893
        %2895 = vmatmul.bf16.gmra.mxu0 %v2822
        %v2896 = vpop.f32.mrf.mxu0
        %v2897 = vadd.f32 0.0, %v2896
        %v2898 = vpop.f32.mrf.mxu0
        %v2899 = vadd.f32 0.0, %v2898
        %2900 = vmatmul.bf16.gmra.mxu0 %v2824
        %v2901 = vpop.f32.mrf.mxu0
        %v2902 = vadd.f32 0.0, %v2901
        %v2903 = vpop.f32.mrf.mxu0
        %v2904 = vadd.f32 0.0, %v2903
        %2905 = vmatmul.bf16.gmra.mxu0 %v2826
        %v2906 = vpop.f32.mrf.mxu0
        %v2907 = vadd.f32 0.0, %v2906
        %v2908 = vpop.f32.mrf.mxu0
        %v2909 = vadd.f32 0.0, %v2908
        %2910 = vmatmul.bf16.gmra.mxu0 %v2828
        %v2911 = vpop.f32.mrf.mxu0
        %v2912 = vadd.f32 0.0, %v2911
        %v2913 = vpop.f32.mrf.mxu0
        %v2914 = vadd.f32 0.0, %v2913
        %2915 = vmatmul.bf16.gmra.mxu0 %v2830
        %v2916 = vpop.f32.mrf.mxu0
        %v2917 = vadd.f32 0.0, %v2916
        %v2918 = vpop.f32.mrf.mxu0
        %v2919 = vadd.f32 0.0, %v2918
        %2920 = vmatmul.bf16.gmra.mxu0 %v2832
        %v2921 = vpop.f32.mrf.mxu0
        %v2922 = vadd.f32 0.0, %v2921
        %v2923 = vpop.f32.mrf.mxu0
        %v2924 = vadd.f32 0.0, %v2923
        %2925 = vdwg.mxu0
        %v2926 = vadd.f32 %v2109, %v2847
        %v2927 = vadd.f32 %v2111, %v2849
        %v2928 = vadd.f32 %v2114, %v2852
        %v2929 = vadd.f32 %v2116, %v2854
        %v2930 = vadd.f32 %v2119, %v2857
        %v2931 = vadd.f32 %v2121, %v2859
        %v2932 = vadd.f32 %v2124, %v2862
        %v2933 = vadd.f32 %v2126, %v2864
        %v2934 = vadd.f32 %v2129, %v2867
        %v2935 = vadd.f32 %v2131, %v2869
        %v2936 = vadd.f32 %v2134, %v2872
        %v2937 = vadd.f32 %v2136, %v2874
        %v2938 = vadd.f32 %v2139, %v2877
        %v2939 = vadd.f32 %v2141, %v2879
        %v2940 = vadd.f32 %v2144, %v2882
        %v2941 = vadd.f32 %v2146, %v2884
        %v2942 = vadd.f32 %v2149, %v2887
        %v2943 = vadd.f32 %v2151, %v2889
        %v2944 = vadd.f32 %v2154, %v2892
        %v2945 = vadd.f32 %v2156, %v2894
        %v2946 = vadd.f32 %v2159, %v2897
        %v2947 = vadd.f32 %v2161, %v2899
        %v2948 = vadd.f32 %v2164, %v2902
        %v2949 = vadd.f32 %v2166, %v2904
        %v2950 = vadd.f32 %v2169, %v2907
        %v2951 = vadd.f32 %v2171, %v2909
        %v2952 = vadd.f32 %v2174, %v2912
        %v2953 = vadd.f32 %v2176, %v2914
        %v2954 = vadd.f32 %v2179, %v2917
        %v2955 = vadd.f32 %v2181, %v2919
        %v2956 = vadd.f32 %v2184, %v2922
        %v2957 = vadd.f32 %v2186, %v2924
        %v2958 = vld [vmem:[%s2] sm:$0x1]
        %v2960 = vperm.slane %v2958, 0
        %v2962 = vadd.f32 %v2926, %v2960
        %v2963 = vadd.f32 %v2927, %v2960
        %v2964 = vadd.f32 %v2928, %v2960
        %v2965 = vadd.f32 %v2929, %v2960
        %v2966 = vadd.f32 %v2930, %v2960
        %v2967 = vadd.f32 %v2931, %v2960
        %v2968 = vadd.f32 %v2932, %v2960
        %v2969 = vadd.f32 %v2933, %v2960
        %v2970 = vadd.f32 %v2934, %v2960
        %v2971 = vadd.f32 %v2935, %v2960
        %v2972 = vadd.f32 %v2936, %v2960
        %v2973 = vadd.f32 %v2937, %v2960
        %v2974 = vadd.f32 %v2938, %v2960
        %v2975 = vadd.f32 %v2939, %v2960
        %v2976 = vadd.f32 %v2940, %v2960
        %v2977 = vadd.f32 %v2941, %v2960
        %v2978 = vadd.f32 %v2942, %v2960
        %v2979 = vadd.f32 %v2943, %v2960
        %v2980 = vadd.f32 %v2944, %v2960
        %v2981 = vadd.f32 %v2945, %v2960
        %v2982 = vadd.f32 %v2946, %v2960
        %v2983 = vadd.f32 %v2947, %v2960
        %v2984 = vadd.f32 %v2948, %v2960
        %v2985 = vadd.f32 %v2949, %v2960
        %v2986 = vadd.f32 %v2950, %v2960
        %v2987 = vadd.f32 %v2951, %v2960
        %v2988 = vadd.f32 %v2952, %v2960
        %v2989 = vadd.f32 %v2953, %v2960
        %v2990 = vadd.f32 %v2954, %v2960
        %v2991 = vadd.f32 %v2955, %v2960
        %v2992 = vadd.f32 %v2956, %v2960
        %v2993 = vadd.f32 %v2957, %v2960
        %v2994 = vsub.f32 0.0, %v2962
        %v2995 = vsub.f32 0.0, %v2963
        %v2996 = vsub.f32 0.0, %v2964
        %v2997 = vsub.f32 0.0, %v2965
        %v2998 = vsub.f32 0.0, %v2966
        %v2999 = vsub.f32 0.0, %v2967
        %v3000 = vsub.f32 0.0, %v2968
        %v3001 = vsub.f32 0.0, %v2969
        %v3002 = vsub.f32 0.0, %v2970
        %v3003 = vsub.f32 0.0, %v2971
        %v3004 = vsub.f32 0.0, %v2972
        %v3005 = vsub.f32 0.0, %v2973
        %v3006 = vsub.f32 0.0, %v2974
        %v3007 = vsub.f32 0.0, %v2975
        %v3008 = vsub.f32 0.0, %v2976
        %v3009 = vsub.f32 0.0, %v2977
        %v3010 = vsub.f32 0.0, %v2978
        %v3011 = vsub.f32 0.0, %v2979
        %v3012 = vsub.f32 0.0, %v2980
        %v3013 = vsub.f32 0.0, %v2981
        %v3014 = vsub.f32 0.0, %v2982
        %v3015 = vsub.f32 0.0, %v2983
        %v3016 = vsub.f32 0.0, %v2984
        %v3017 = vsub.f32 0.0, %v2985
        %v3018 = vsub.f32 0.0, %v2986
        %v3019 = vsub.f32 0.0, %v2987
        %v3020 = vsub.f32 0.0, %v2988
        %v3021 = vsub.f32 0.0, %v2989
        %v3022 = vsub.f32 0.0, %v2990
        %v3023 = vsub.f32 0.0, %v2991
        %v3024 = vsub.f32 0.0, %v2992
        %v3025 = vsub.f32 0.0, %v2993
        %v3026 = vmul.f32 %v2994, 1.442695
        %v3027 = vpow.pop %v3026
        %v3028 = vmul.f32 %v2995, 1.442695
        %v3029 = vpow.pop %v3028
        %v3030 = vmul.f32 %v2996, 1.442695
        %v3031 = vpow.pop %v3030
        %v3032 = vmul.f32 %v2997, 1.442695
        %v3033 = vpow.pop %v3032
        %v3034 = vmul.f32 %v2998, 1.442695
        %v3035 = vpow.pop %v3034
        %v3036 = vmul.f32 %v2999, 1.442695
        %v3037 = vpow.pop %v3036
        %v3038 = vmul.f32 %v3000, 1.442695
        %v3039 = vpow.pop %v3038
        %v3040 = vmul.f32 %v3001, 1.442695
        %v3041 = vpow.pop %v3040
        %v3042 = vmul.f32 %v3002, 1.442695
        %v3043 = vpow.pop %v3042
        %v3044 = vmul.f32 %v3003, 1.442695
        %v3045 = vpow.pop %v3044
        %v3046 = vmul.f32 %v3004, 1.442695
        %v3047 = vpow.pop %v3046
        %v3048 = vmul.f32 %v3005, 1.442695
        %v3049 = vpow.pop %v3048
        %v3050 = vmul.f32 %v3006, 1.442695
        %v3051 = vpow.pop %v3050
        %v3052 = vmul.f32 %v3007, 1.442695
        %v3053 = vpow.pop %v3052
        %v3054 = vmul.f32 %v3008, 1.442695
        %v3055 = vpow.pop %v3054
        %v3056 = vmul.f32 %v3009, 1.442695
        %v3057 = vpow.pop %v3056
        %v3058 = vmul.f32 %v3010, 1.442695
        %v3059 = vpow.pop %v3058
        %v3060 = vmul.f32 %v3011, 1.442695
        %v3061 = vpow.pop %v3060
        %v3062 = vmul.f32 %v3012, 1.442695
        %v3063 = vpow.pop %v3062
        %v3064 = vmul.f32 %v3013, 1.442695
        %v3065 = vpow.pop %v3064
        %v3066 = vmul.f32 %v3014, 1.442695
        %v3067 = vpow.pop %v3066
        %v3068 = vmul.f32 %v3015, 1.442695
        %v3069 = vpow.pop %v3068
        %v3070 = vmul.f32 %v3016, 1.442695
        %v3071 = vpow.pop %v3070
        %v3072 = vmul.f32 %v3017, 1.442695
        %v3073 = vpow.pop %v3072
        %v3074 = vmul.f32 %v3018, 1.442695
        %v3075 = vpow.pop %v3074
        %v3076 = vmul.f32 %v3019, 1.442695
        %v3077 = vpow.pop %v3076
        %v3078 = vmul.f32 %v3020, 1.442695
        %v3079 = vpow.pop %v3078
        %v3080 = vmul.f32 %v3021, 1.442695
        %v3081 = vpow.pop %v3080
        %v3082 = vmul.f32 %v3022, 1.442695
        %v3083 = vpow.pop %v3082
        %v3084 = vmul.f32 %v3023, 1.442695
        %v3085 = vpow.pop %v3084
        %v3086 = vmul.f32 %v3024, 1.442695
        %v3087 = vpow.pop %v3086
        %v3088 = vmul.f32 %v3025, 1.442695
        %v3089 = vpow.pop %v3088
        %v3090 = vadd.f32 %v3027, 1.0
        %v3091 = vadd.f32 %v3029, 1.0
        %v3092 = vadd.f32 %v3031, 1.0
        %v3093 = vadd.f32 %v3033, 1.0
        %v3094 = vadd.f32 %v3035, 1.0
        %v3095 = vadd.f32 %v3037, 1.0
        %v3096 = vadd.f32 %v3039, 1.0
        %v3097 = vadd.f32 %v3041, 1.0
        %v3098 = vadd.f32 %v3043, 1.0
        %v3099 = vadd.f32 %v3045, 1.0
        %v3100 = vadd.f32 %v3047, 1.0
        %v3101 = vadd.f32 %v3049, 1.0
        %v3102 = vadd.f32 %v3051, 1.0
        %v3103 = vadd.f32 %v3053, 1.0
        %v3104 = vadd.f32 %v3055, 1.0
        %v3105 = vadd.f32 %v3057, 1.0
        %v3106 = vadd.f32 %v3059, 1.0
        %v3107 = vadd.f32 %v3061, 1.0
        %v3108 = vadd.f32 %v3063, 1.0
        %v3109 = vadd.f32 %v3065, 1.0
        %v3110 = vadd.f32 %v3067, 1.0
        %v3111 = vadd.f32 %v3069, 1.0
        %v3112 = vadd.f32 %v3071, 1.0
        %v3113 = vadd.f32 %v3073, 1.0
        %v3114 = vadd.f32 %v3075, 1.0
        %v3115 = vadd.f32 %v3077, 1.0
        %v3116 = vadd.f32 %v3079, 1.0
        %v3117 = vadd.f32 %v3081, 1.0
        %v3118 = vadd.f32 %v3083, 1.0
        %v3119 = vadd.f32 %v3085, 1.0
        %v3120 = vadd.f32 %v3087, 1.0
        %v3121 = vadd.f32 %v3089, 1.0
        %v3122 = vrcp.pop %v3090
        %v3123 = vmul.f32 %v3090, %v3122
        %v3124 = vsub.f32 1.0, %v3123
        %v3125 = vmul.f32 %v3122, %v3124
        %v3126 = vadd.f32 %v3122, %v3125
        %vm3127 = vweird.f32 %v3090
        %vm3128 = vweird.f32 %v3122
        %vm3129 = vmor %vm3127, %vm3128
        %v3130 = vsel %vm3129, %v3122, %v3126
        %v3131 = vand.u32 2147483647, %v3090
        %vm3132 = vcmp.eq.f32.partialorder %v3131, 8.507059e+37
        %v3133 = vand.u32 %v3090, 2147483648
        %v3134 = vor.u32 1.1754944e-38, %v3133
        %v3135 = vsel %vm3132, %v3134, %v3130
        %v3136 = vmul.f32 1.0, %v3135
        %v3137 = vrcp.pop %v3091
        %v3138 = vmul.f32 %v3091, %v3137
        %v3139 = vsub.f32 1.0, %v3138
        %v3140 = vmul.f32 %v3137, %v3139
        %v3141 = vadd.f32 %v3137, %v3140
        %vm3142 = vweird.f32 %v3091
        %vm3143 = vweird.f32 %v3137
        %vm3144 = vmor %vm3142, %vm3143
        %v3145 = vsel %vm3144, %v3137, %v3141
        %v3146 = vand.u32 2147483647, %v3091
        %vm3147 = vcmp.eq.f32.partialorder %v3146, 8.507059e+37
        %v3148 = vand.u32 %v3091, 2147483648
        %v3149 = vor.u32 1.1754944e-38, %v3148
        %v3150 = vsel %vm3147, %v3149, %v3145
        %v3151 = vmul.f32 1.0, %v3150
        %v3152 = vrcp.pop %v3092
        %v3153 = vmul.f32 %v3092, %v3152
        %v3154 = vsub.f32 1.0, %v3153
        %v3155 = vmul.f32 %v3152, %v3154
        %v3156 = vadd.f32 %v3152, %v3155
        %vm3157 = vweird.f32 %v3092
        %vm3158 = vweird.f32 %v3152
        %vm3159 = vmor %vm3157, %vm3158
        %v3160 = vsel %vm3159, %v3152, %v3156
        %v3161 = vand.u32 2147483647, %v3092
        %vm3162 = vcmp.eq.f32.partialorder %v3161, 8.507059e+37
        %v3163 = vand.u32 %v3092, 2147483648
        %v3164 = vor.u32 1.1754944e-38, %v3163
        %v3165 = vsel %vm3162, %v3164, %v3160
        %v3166 = vmul.f32 1.0, %v3165
        %v3167 = vrcp.pop %v3093
        %v3168 = vmul.f32 %v3093, %v3167
        %v3169 = vsub.f32 1.0, %v3168
        %v3170 = vmul.f32 %v3167, %v3169
        %v3171 = vadd.f32 %v3167, %v3170
        %vm3172 = vweird.f32 %v3093
        %vm3173 = vweird.f32 %v3167
        %vm3174 = vmor %vm3172, %vm3173
        %v3175 = vsel %vm3174, %v3167, %v3171
        %v3176 = vand.u32 2147483647, %v3093
        %vm3177 = vcmp.eq.f32.partialorder %v3176, 8.507059e+37
        %v3178 = vand.u32 %v3093, 2147483648
        %v3179 = vor.u32 1.1754944e-38, %v3178
        %v3180 = vsel %vm3177, %v3179, %v3175
        %v3181 = vmul.f32 1.0, %v3180
        %v3182 = vrcp.pop %v3094
        %v3183 = vmul.f32 %v3094, %v3182
        %v3184 = vsub.f32 1.0, %v3183
        %v3185 = vmul.f32 %v3182, %v3184
        %v3186 = vadd.f32 %v3182, %v3185
        %vm3187 = vweird.f32 %v3094
        %vm3188 = vweird.f32 %v3182
        %vm3189 = vmor %vm3187, %vm3188
        %v3190 = vsel %vm3189, %v3182, %v3186
        %v3191 = vand.u32 2147483647, %v3094
        %vm3192 = vcmp.eq.f32.partialorder %v3191, 8.507059e+37
        %v3193 = vand.u32 %v3094, 2147483648
        %v3194 = vor.u32 1.1754944e-38, %v3193
        %v3195 = vsel %vm3192, %v3194, %v3190
        %v3196 = vmul.f32 1.0, %v3195
        %v3197 = vrcp.pop %v3095
        %v3198 = vmul.f32 %v3095, %v3197
        %v3199 = vsub.f32 1.0, %v3198
        %v3200 = vmul.f32 %v3197, %v3199
        %v3201 = vadd.f32 %v3197, %v3200
        %vm3202 = vweird.f32 %v3095
        %vm3203 = vweird.f32 %v3197
        %vm3204 = vmor %vm3202, %vm3203
        %v3205 = vsel %vm3204, %v3197, %v3201
        %v3206 = vand.u32 2147483647, %v3095
        %vm3207 = vcmp.eq.f32.partialorder %v3206, 8.507059e+37
        %v3208 = vand.u32 %v3095, 2147483648
        %v3209 = vor.u32 1.1754944e-38, %v3208
        %v3210 = vsel %vm3207, %v3209, %v3205
        %v3211 = vmul.f32 1.0, %v3210
        %v3212 = vrcp.pop %v3096
        %v3213 = vmul.f32 %v3096, %v3212
        %v3214 = vsub.f32 1.0, %v3213
        %v3215 = vmul.f32 %v3212, %v3214
        %v3216 = vadd.f32 %v3212, %v3215
        %vm3217 = vweird.f32 %v3096
        %vm3218 = vweird.f32 %v3212
        %vm3219 = vmor %vm3217, %vm3218
        %v3220 = vsel %vm3219, %v3212, %v3216
        %v3221 = vand.u32 2147483647, %v3096
        %vm3222 = vcmp.eq.f32.partialorder %v3221, 8.507059e+37
        %v3223 = vand.u32 %v3096, 2147483648
        %v3224 = vor.u32 1.1754944e-38, %v3223
        %v3225 = vsel %vm3222, %v3224, %v3220
        %v3226 = vmul.f32 1.0, %v3225
        %v3227 = vrcp.pop %v3097
        %v3228 = vmul.f32 %v3097, %v3227
        %v3229 = vsub.f32 1.0, %v3228
        %v3230 = vmul.f32 %v3227, %v3229
        %v3231 = vadd.f32 %v3227, %v3230
        %vm3232 = vweird.f32 %v3097
        %vm3233 = vweird.f32 %v3227
        %vm3234 = vmor %vm3232, %vm3233
        %v3235 = vsel %vm3234, %v3227, %v3231
        %v3236 = vand.u32 2147483647, %v3097
        %vm3237 = vcmp.eq.f32.partialorder %v3236, 8.507059e+37
        %v3238 = vand.u32 %v3097, 2147483648
        %v3239 = vor.u32 1.1754944e-38, %v3238
        %v3240 = vsel %vm3237, %v3239, %v3235
        %v3241 = vmul.f32 1.0, %v3240
        %v3242 = vrcp.pop %v3098
        %v3243 = vmul.f32 %v3098, %v3242
        %v3244 = vsub.f32 1.0, %v3243
        %v3245 = vmul.f32 %v3242, %v3244
        %v3246 = vadd.f32 %v3242, %v3245
        %vm3247 = vweird.f32 %v3098
        %vm3248 = vweird.f32 %v3242
        %vm3249 = vmor %vm3247, %vm3248
        %v3250 = vsel %vm3249, %v3242, %v3246
        %v3251 = vand.u32 2147483647, %v3098
        %vm3252 = vcmp.eq.f32.partialorder %v3251, 8.507059e+37
        %v3253 = vand.u32 %v3098, 2147483648
        %v3254 = vor.u32 1.1754944e-38, %v3253
        %v3255 = vsel %vm3252, %v3254, %v3250
        %v3256 = vmul.f32 1.0, %v3255
        %v3257 = vrcp.pop %v3099
        %v3258 = vmul.f32 %v3099, %v3257
        %v3259 = vsub.f32 1.0, %v3258
        %v3260 = vmul.f32 %v3257, %v3259
        %v3261 = vadd.f32 %v3257, %v3260
        %vm3262 = vweird.f32 %v3099
        %vm3263 = vweird.f32 %v3257
        %vm3264 = vmor %vm3262, %vm3263
        %v3265 = vsel %vm3264, %v3257, %v3261
        %v3266 = vand.u32 2147483647, %v3099
        %vm3267 = vcmp.eq.f32.partialorder %v3266, 8.507059e+37
        %v3268 = vand.u32 %v3099, 2147483648
        %v3269 = vor.u32 1.1754944e-38, %v3268
        %v3270 = vsel %vm3267, %v3269, %v3265
        %v3271 = vmul.f32 1.0, %v3270
        %v3272 = vrcp.pop %v3100
        %v3273 = vmul.f32 %v3100, %v3272
        %v3274 = vsub.f32 1.0, %v3273
        %v3275 = vmul.f32 %v3272, %v3274
        %v3276 = vadd.f32 %v3272, %v3275
        %vm3277 = vweird.f32 %v3100
        %vm3278 = vweird.f32 %v3272
        %vm3279 = vmor %vm3277, %vm3278
        %v3280 = vsel %vm3279, %v3272, %v3276
        %v3281 = vand.u32 2147483647, %v3100
        %vm3282 = vcmp.eq.f32.partialorder %v3281, 8.507059e+37
        %v3283 = vand.u32 %v3100, 2147483648
        %v3284 = vor.u32 1.1754944e-38, %v3283
        %v3285 = vsel %vm3282, %v3284, %v3280
        %v3286 = vmul.f32 1.0, %v3285
        %v3287 = vrcp.pop %v3101
        %v3288 = vmul.f32 %v3101, %v3287
        %v3289 = vsub.f32 1.0, %v3288
        %v3290 = vmul.f32 %v3287, %v3289
        %v3291 = vadd.f32 %v3287, %v3290
        %vm3292 = vweird.f32 %v3101
        %vm3293 = vweird.f32 %v3287
        %vm3294 = vmor %vm3292, %vm3293
        %v3295 = vsel %vm3294, %v3287, %v3291
        %v3296 = vand.u32 2147483647, %v3101
        %vm3297 = vcmp.eq.f32.partialorder %v3296, 8.507059e+37
        %v3298 = vand.u32 %v3101, 2147483648
        %v3299 = vor.u32 1.1754944e-38, %v3298
        %v3300 = vsel %vm3297, %v3299, %v3295
        %v3301 = vmul.f32 1.0, %v3300
        %v3302 = vrcp.pop %v3102
        %v3303 = vmul.f32 %v3102, %v3302
        %v3304 = vsub.f32 1.0, %v3303
        %v3305 = vmul.f32 %v3302, %v3304
        %v3306 = vadd.f32 %v3302, %v3305
        %vm3307 = vweird.f32 %v3102
        %vm3308 = vweird.f32 %v3302
        %vm3309 = vmor %vm3307, %vm3308
        %v3310 = vsel %vm3309, %v3302, %v3306
        %v3311 = vand.u32 2147483647, %v3102
        %vm3312 = vcmp.eq.f32.partialorder %v3311, 8.507059e+37
        %v3313 = vand.u32 %v3102, 2147483648
        %v3314 = vor.u32 1.1754944e-38, %v3313
        %v3315 = vsel %vm3312, %v3314, %v3310
        %v3316 = vmul.f32 1.0, %v3315
        %v3317 = vrcp.pop %v3103
        %v3318 = vmul.f32 %v3103, %v3317
        %v3319 = vsub.f32 1.0, %v3318
        %v3320 = vmul.f32 %v3317, %v3319
        %v3321 = vadd.f32 %v3317, %v3320
        %vm3322 = vweird.f32 %v3103
        %vm3323 = vweird.f32 %v3317
        %vm3324 = vmor %vm3322, %vm3323
        %v3325 = vsel %vm3324, %v3317, %v3321
        %v3326 = vand.u32 2147483647, %v3103
        %vm3327 = vcmp.eq.f32.partialorder %v3326, 8.507059e+37
        %v3328 = vand.u32 %v3103, 2147483648
        %v3329 = vor.u32 1.1754944e-38, %v3328
        %v3330 = vsel %vm3327, %v3329, %v3325
        %v3331 = vmul.f32 1.0, %v3330
        %v3332 = vrcp.pop %v3104
        %v3333 = vmul.f32 %v3104, %v3332
        %v3334 = vsub.f32 1.0, %v3333
        %v3335 = vmul.f32 %v3332, %v3334
        %v3336 = vadd.f32 %v3332, %v3335
        %vm3337 = vweird.f32 %v3104
        %vm3338 = vweird.f32 %v3332
        %vm3339 = vmor %vm3337, %vm3338
        %v3340 = vsel %vm3339, %v3332, %v3336
        %v3341 = vand.u32 2147483647, %v3104
        %vm3342 = vcmp.eq.f32.partialorder %v3341, 8.507059e+37
        %v3343 = vand.u32 %v3104, 2147483648
        %v3344 = vor.u32 1.1754944e-38, %v3343
        %v3345 = vsel %vm3342, %v3344, %v3340
        %v3346 = vmul.f32 1.0, %v3345
        %v3347 = vrcp.pop %v3105
        %v3348 = vmul.f32 %v3105, %v3347
        %v3349 = vsub.f32 1.0, %v3348
        %v3350 = vmul.f32 %v3347, %v3349
        %v3351 = vadd.f32 %v3347, %v3350
        %vm3352 = vweird.f32 %v3105
        %vm3353 = vweird.f32 %v3347
        %vm3354 = vmor %vm3352, %vm3353
        %v3355 = vsel %vm3354, %v3347, %v3351
        %v3356 = vand.u32 2147483647, %v3105
        %vm3357 = vcmp.eq.f32.partialorder %v3356, 8.507059e+37
        %v3358 = vand.u32 %v3105, 2147483648
        %v3359 = vor.u32 1.1754944e-38, %v3358
        %v3360 = vsel %vm3357, %v3359, %v3355
        %v3361 = vmul.f32 1.0, %v3360
        %v3362 = vrcp.pop %v3106
        %v3363 = vmul.f32 %v3106, %v3362
        %v3364 = vsub.f32 1.0, %v3363
        %v3365 = vmul.f32 %v3362, %v3364
        %v3366 = vadd.f32 %v3362, %v3365
        %vm3367 = vweird.f32 %v3106
        %vm3368 = vweird.f32 %v3362
        %vm3369 = vmor %vm3367, %vm3368
        %v3370 = vsel %vm3369, %v3362, %v3366
        %v3371 = vand.u32 2147483647, %v3106
        %vm3372 = vcmp.eq.f32.partialorder %v3371, 8.507059e+37
        %v3373 = vand.u32 %v3106, 2147483648
        %v3374 = vor.u32 1.1754944e-38, %v3373
        %v3375 = vsel %vm3372, %v3374, %v3370
        %v3376 = vmul.f32 1.0, %v3375
        %v3377 = vrcp.pop %v3107
        %v3378 = vmul.f32 %v3107, %v3377
        %v3379 = vsub.f32 1.0, %v3378
        %v3380 = vmul.f32 %v3377, %v3379
        %v3381 = vadd.f32 %v3377, %v3380
        %vm3382 = vweird.f32 %v3107
        %vm3383 = vweird.f32 %v3377
        %vm3384 = vmor %vm3382, %vm3383
        %v3385 = vsel %vm3384, %v3377, %v3381
        %v3386 = vand.u32 2147483647, %v3107
        %vm3387 = vcmp.eq.f32.partialorder %v3386, 8.507059e+37
        %v3388 = vand.u32 %v3107, 2147483648
        %v3389 = vor.u32 1.1754944e-38, %v3388
        %v3390 = vsel %vm3387, %v3389, %v3385
        %v3391 = vmul.f32 1.0, %v3390
        %v3392 = vrcp.pop %v3108
        %v3393 = vmul.f32 %v3108, %v3392
        %v3394 = vsub.f32 1.0, %v3393
        %v3395 = vmul.f32 %v3392, %v3394
        %v3396 = vadd.f32 %v3392, %v3395
        %vm3397 = vweird.f32 %v3108
        %vm3398 = vweird.f32 %v3392
        %vm3399 = vmor %vm3397, %vm3398
        %v3400 = vsel %vm3399, %v3392, %v3396
        %v3401 = vand.u32 2147483647, %v3108
        %vm3402 = vcmp.eq.f32.partialorder %v3401, 8.507059e+37
        %v3403 = vand.u32 %v3108, 2147483648
        %v3404 = vor.u32 1.1754944e-38, %v3403
        %v3405 = vsel %vm3402, %v3404, %v3400
        %v3406 = vmul.f32 1.0, %v3405
        %v3407 = vrcp.pop %v3109
        %v3408 = vmul.f32 %v3109, %v3407
        %v3409 = vsub.f32 1.0, %v3408
        %v3410 = vmul.f32 %v3407, %v3409
        %v3411 = vadd.f32 %v3407, %v3410
        %vm3412 = vweird.f32 %v3109
        %vm3413 = vweird.f32 %v3407
        %vm3414 = vmor %vm3412, %vm3413
        %v3415 = vsel %vm3414, %v3407, %v3411
        %v3416 = vand.u32 2147483647, %v3109
        %vm3417 = vcmp.eq.f32.partialorder %v3416, 8.507059e+37
        %v3418 = vand.u32 %v3109, 2147483648
        %v3419 = vor.u32 1.1754944e-38, %v3418
        %v3420 = vsel %vm3417, %v3419, %v3415
        %v3421 = vmul.f32 1.0, %v3420
        %v3422 = vrcp.pop %v3110
        %v3423 = vmul.f32 %v3110, %v3422
        %v3424 = vsub.f32 1.0, %v3423
        %v3425 = vmul.f32 %v3422, %v3424
        %v3426 = vadd.f32 %v3422, %v3425
        %vm3427 = vweird.f32 %v3110
        %vm3428 = vweird.f32 %v3422
        %vm3429 = vmor %vm3427, %vm3428
        %v3430 = vsel %vm3429, %v3422, %v3426
        %v3431 = vand.u32 2147483647, %v3110
        %vm3432 = vcmp.eq.f32.partialorder %v3431, 8.507059e+37
        %v3433 = vand.u32 %v3110, 2147483648
        %v3434 = vor.u32 1.1754944e-38, %v3433
        %v3435 = vsel %vm3432, %v3434, %v3430
        %v3436 = vmul.f32 1.0, %v3435
        %v3437 = vrcp.pop %v3111
        %v3438 = vmul.f32 %v3111, %v3437
        %v3439 = vsub.f32 1.0, %v3438
        %v3440 = vmul.f32 %v3437, %v3439
        %v3441 = vadd.f32 %v3437, %v3440
        %vm3442 = vweird.f32 %v3111
        %vm3443 = vweird.f32 %v3437
        %vm3444 = vmor %vm3442, %vm3443
        %v3445 = vsel %vm3444, %v3437, %v3441
        %v3446 = vand.u32 2147483647, %v3111
        %vm3447 = vcmp.eq.f32.partialorder %v3446, 8.507059e+37
        %v3448 = vand.u32 %v3111, 2147483648
        %v3449 = vor.u32 1.1754944e-38, %v3448
        %v3450 = vsel %vm3447, %v3449, %v3445
        %v3451 = vmul.f32 1.0, %v3450
        %v3452 = vrcp.pop %v3112
        %v3453 = vmul.f32 %v3112, %v3452
        %v3454 = vsub.f32 1.0, %v3453
        %v3455 = vmul.f32 %v3452, %v3454
        %v3456 = vadd.f32 %v3452, %v3455
        %vm3457 = vweird.f32 %v3112
        %vm3458 = vweird.f32 %v3452
        %vm3459 = vmor %vm3457, %vm3458
        %v3460 = vsel %vm3459, %v3452, %v3456
        %v3461 = vand.u32 2147483647, %v3112
        %vm3462 = vcmp.eq.f32.partialorder %v3461, 8.507059e+37
        %v3463 = vand.u32 %v3112, 2147483648
        %v3464 = vor.u32 1.1754944e-38, %v3463
        %v3465 = vsel %vm3462, %v3464, %v3460
        %v3466 = vmul.f32 1.0, %v3465
        %v3467 = vrcp.pop %v3113
        %v3468 = vmul.f32 %v3113, %v3467
        %v3469 = vsub.f32 1.0, %v3468
        %v3470 = vmul.f32 %v3467, %v3469
        %v3471 = vadd.f32 %v3467, %v3470
        %vm3472 = vweird.f32 %v3113
        %vm3473 = vweird.f32 %v3467
        %vm3474 = vmor %vm3472, %vm3473
        %v3475 = vsel %vm3474, %v3467, %v3471
        %v3476 = vand.u32 2147483647, %v3113
        %vm3477 = vcmp.eq.f32.partialorder %v3476, 8.507059e+37
        %v3478 = vand.u32 %v3113, 2147483648
        %v3479 = vor.u32 1.1754944e-38, %v3478
        %v3480 = vsel %vm3477, %v3479, %v3475
        %v3481 = vmul.f32 1.0, %v3480
        %v3482 = vrcp.pop %v3114
        %v3483 = vmul.f32 %v3114, %v3482
        %v3484 = vsub.f32 1.0, %v3483
        %v3485 = vmul.f32 %v3482, %v3484
        %v3486 = vadd.f32 %v3482, %v3485
        %vm3487 = vweird.f32 %v3114
        %vm3488 = vweird.f32 %v3482
        %vm3489 = vmor %vm3487, %vm3488
        %v3490 = vsel %vm3489, %v3482, %v3486
        %v3491 = vand.u32 2147483647, %v3114
        %vm3492 = vcmp.eq.f32.partialorder %v3491, 8.507059e+37
        %v3493 = vand.u32 %v3114, 2147483648
        %v3494 = vor.u32 1.1754944e-38, %v3493
        %v3495 = vsel %vm3492, %v3494, %v3490
        %v3496 = vmul.f32 1.0, %v3495
        %v3497 = vrcp.pop %v3115
        %v3498 = vmul.f32 %v3115, %v3497
        %v3499 = vsub.f32 1.0, %v3498
        %v3500 = vmul.f32 %v3497, %v3499
        %v3501 = vadd.f32 %v3497, %v3500
        %vm3502 = vweird.f32 %v3115
        %vm3503 = vweird.f32 %v3497
        %vm3504 = vmor %vm3502, %vm3503
        %v3505 = vsel %vm3504, %v3497, %v3501
        %v3506 = vand.u32 2147483647, %v3115
        %vm3507 = vcmp.eq.f32.partialorder %v3506, 8.507059e+37
        %v3508 = vand.u32 %v3115, 2147483648
        %v3509 = vor.u32 1.1754944e-38, %v3508
        %v3510 = vsel %vm3507, %v3509, %v3505
        %v3511 = vmul.f32 1.0, %v3510
        %v3512 = vrcp.pop %v3116
        %v3513 = vmul.f32 %v3116, %v3512
        %v3514 = vsub.f32 1.0, %v3513
        %v3515 = vmul.f32 %v3512, %v3514
        %v3516 = vadd.f32 %v3512, %v3515
        %vm3517 = vweird.f32 %v3116
        %vm3518 = vweird.f32 %v3512
        %vm3519 = vmor %vm3517, %vm3518
        %v3520 = vsel %vm3519, %v3512, %v3516
        %v3521 = vand.u32 2147483647, %v3116
        %vm3522 = vcmp.eq.f32.partialorder %v3521, 8.507059e+37
        %v3523 = vand.u32 %v3116, 2147483648
        %v3524 = vor.u32 1.1754944e-38, %v3523
        %v3525 = vsel %vm3522, %v3524, %v3520
        %v3526 = vmul.f32 1.0, %v3525
        %v3527 = vrcp.pop %v3117
        %v3528 = vmul.f32 %v3117, %v3527
        %v3529 = vsub.f32 1.0, %v3528
        %v3530 = vmul.f32 %v3527, %v3529
        %v3531 = vadd.f32 %v3527, %v3530
        %vm3532 = vweird.f32 %v3117
        %vm3533 = vweird.f32 %v3527
        %vm3534 = vmor %vm3532, %vm3533
        %v3535 = vsel %vm3534, %v3527, %v3531
        %v3536 = vand.u32 2147483647, %v3117
        %vm3537 = vcmp.eq.f32.partialorder %v3536, 8.507059e+37
        %v3538 = vand.u32 %v3117, 2147483648
        %v3539 = vor.u32 1.1754944e-38, %v3538
        %v3540 = vsel %vm3537, %v3539, %v3535
        %v3541 = vmul.f32 1.0, %v3540
        %v3542 = vrcp.pop %v3118
        %v3543 = vmul.f32 %v3118, %v3542
        %v3544 = vsub.f32 1.0, %v3543
        %v3545 = vmul.f32 %v3542, %v3544
        %v3546 = vadd.f32 %v3542, %v3545
        %vm3547 = vweird.f32 %v3118
        %vm3548 = vweird.f32 %v3542
        %vm3549 = vmor %vm3547, %vm3548
        %v3550 = vsel %vm3549, %v3542, %v3546
        %v3551 = vand.u32 2147483647, %v3118
        %vm3552 = vcmp.eq.f32.partialorder %v3551, 8.507059e+37
        %v3553 = vand.u32 %v3118, 2147483648
        %v3554 = vor.u32 1.1754944e-38, %v3553
        %v3555 = vsel %vm3552, %v3554, %v3550
        %v3556 = vmul.f32 1.0, %v3555
        %v3557 = vrcp.pop %v3119
        %v3558 = vmul.f32 %v3119, %v3557
        %v3559 = vsub.f32 1.0, %v3558
        %v3560 = vmul.f32 %v3557, %v3559
        %v3561 = vadd.f32 %v3557, %v3560
        %vm3562 = vweird.f32 %v3119
        %vm3563 = vweird.f32 %v3557
        %vm3564 = vmor %vm3562, %vm3563
        %v3565 = vsel %vm3564, %v3557, %v3561
        %v3566 = vand.u32 2147483647, %v3119
        %vm3567 = vcmp.eq.f32.partialorder %v3566, 8.507059e+37
        %v3568 = vand.u32 %v3119, 2147483648
        %v3569 = vor.u32 1.1754944e-38, %v3568
        %v3570 = vsel %vm3567, %v3569, %v3565
        %v3571 = vmul.f32 1.0, %v3570
        %v3572 = vrcp.pop %v3120
        %v3573 = vmul.f32 %v3120, %v3572
        %v3574 = vsub.f32 1.0, %v3573
        %v3575 = vmul.f32 %v3572, %v3574
        %v3576 = vadd.f32 %v3572, %v3575
        %vm3577 = vweird.f32 %v3120
        %vm3578 = vweird.f32 %v3572
        %vm3579 = vmor %vm3577, %vm3578
        %v3580 = vsel %vm3579, %v3572, %v3576
        %v3581 = vand.u32 2147483647, %v3120
        %vm3582 = vcmp.eq.f32.partialorder %v3581, 8.507059e+37
        %v3583 = vand.u32 %v3120, 2147483648
        %v3584 = vor.u32 1.1754944e-38, %v3583
        %v3585 = vsel %vm3582, %v3584, %v3580
        %v3586 = vmul.f32 1.0, %v3585
        %v3587 = vrcp.pop %v3121
        %v3588 = vmul.f32 %v3121, %v3587
        %v3589 = vsub.f32 1.0, %v3588
        %v3590 = vmul.f32 %v3587, %v3589
        %v3591 = vadd.f32 %v3587, %v3590
        %vm3592 = vweird.f32 %v3121
        %vm3593 = vweird.f32 %v3587
        %vm3594 = vmor %vm3592, %vm3593
        %v3595 = vsel %vm3594, %v3587, %v3591
        %v3596 = vand.u32 2147483647, %v3121
        %vm3597 = vcmp.eq.f32.partialorder %v3596, 8.507059e+37
        %v3598 = vand.u32 %v3121, 2147483648
        %v3599 = vor.u32 1.1754944e-38, %v3598
        %v3600 = vsel %vm3597, %v3599, %v3595
        %v3601 = vmul.f32 1.0, %v3600
        %v3602 = vmul.f32 %v2962, %v3136
        %v3603 = vmul.f32 %v2963, %v3151
        %v3604 = vmul.f32 %v2964, %v3166
        %v3605 = vmul.f32 %v2965, %v3181
        %v3606 = vmul.f32 %v2966, %v3196
        %v3607 = vmul.f32 %v2967, %v3211
        %v3608 = vmul.f32 %v2968, %v3226
        %v3609 = vmul.f32 %v2969, %v3241
        %v3610 = vmul.f32 %v2970, %v3256
        %v3611 = vmul.f32 %v2971, %v3271
        %v3612 = vmul.f32 %v2972, %v3286
        %v3613 = vmul.f32 %v2973, %v3301
        %v3614 = vmul.f32 %v2974, %v3316
        %v3615 = vmul.f32 %v2975, %v3331
        %v3616 = vmul.f32 %v2976, %v3346
        %v3617 = vmul.f32 %v2977, %v3361
        %v3618 = vmul.f32 %v2978, %v3376
        %v3619 = vmul.f32 %v2979, %v3391
        %v3620 = vmul.f32 %v2980, %v3406
        %v3621 = vmul.f32 %v2981, %v3421
        %v3622 = vmul.f32 %v2982, %v3436
        %v3623 = vmul.f32 %v2983, %v3451
        %v3624 = vmul.f32 %v2984, %v3466
        %v3625 = vmul.f32 %v2985, %v3481
        %v3626 = vmul.f32 %v2986, %v3496
        %v3627 = vmul.f32 %v2987, %v3511
        %v3628 = vmul.f32 %v2988, %v3526
        %v3629 = vmul.f32 %v2989, %v3541
        %v3630 = vmul.f32 %v2990, %v3556
        %v3631 = vmul.f32 %v2991, %v3571
        %v3632 = vmul.f32 %v2992, %v3586
        %v3633 = vmul.f32 %v2993, %v3601
        %v3634 = vpack.c.bf16 %v3602, %v3602
        %v3635 = vpack.c.bf16 %v3603, %v3603
        %v3636 = vpack.c.bf16 %v3604, %v3604
        %v3637 = vpack.c.bf16 %v3605, %v3605
        %v3638 = vpack.c.bf16 %v3606, %v3606
        %v3639 = vpack.c.bf16 %v3607, %v3607
        %v3640 = vpack.c.bf16 %v3608, %v3608
        %v3641 = vpack.c.bf16 %v3609, %v3609
        %v3642 = vpack.c.bf16 %v3610, %v3610
        %v3643 = vpack.c.bf16 %v3611, %v3611
        %v3644 = vpack.c.bf16 %v3612, %v3612
        %v3645 = vpack.c.bf16 %v3613, %v3613
        %v3646 = vpack.c.bf16 %v3614, %v3614
        %v3647 = vpack.c.bf16 %v3615, %v3615
        %v3648 = vpack.c.bf16 %v3616, %v3616
        %v3649 = vpack.c.bf16 %v3617, %v3617
        %v3650 = vpack.c.bf16 %v3618, %v3618
        %v3651 = vpack.c.bf16 %v3619, %v3619
        %v3652 = vpack.c.bf16 %v3620, %v3620
        %v3653 = vpack.c.bf16 %v3621, %v3621
        %v3654 = vpack.c.bf16 %v3622, %v3622
        %v3655 = vpack.c.bf16 %v3623, %v3623
        %v3656 = vpack.c.bf16 %v3624, %v3624
        %v3657 = vpack.c.bf16 %v3625, %v3625
        %v3658 = vpack.c.bf16 %v3626, %v3626
        %v3659 = vpack.c.bf16 %v3627, %v3627
        %v3660 = vpack.c.bf16 %v3628, %v3628
        %v3661 = vpack.c.bf16 %v3629, %v3629
        %v3662 = vpack.c.bf16 %v3630, %v3630
        %v3663 = vpack.c.bf16 %v3631, %v3631
        %v3664 = vpack.c.bf16 %v3632, %v3632
        %v3665 = vpack.c.bf16 %v3633, %v3633
        %vm3666 = vcmask 257024
        %3667 = vst.msk [vmem:[%s163] sm:$0xf] %vm3666, %v3634
        %3668 = vst.msk [vmem:[%s163 + $0x4] sm:$0xf] %vm3666, %v3635
        %3669 = vst.msk [vmem:[%s163 + $0x8] sm:$0xf] %vm3666, %v3636
        %3670 = vst.msk [vmem:[%s163 + $0xc] sm:$0xf] %vm3666, %v3637
        %3671 = vst.msk [vmem:[%s163 + $0x10] sm:$0xf] %vm3666, %v3638
        %3672 = vst.msk [vmem:[%s163 + $0x14] sm:$0xf] %vm3666, %v3639
        %3673 = vst.msk [vmem:[%s163 + $0x18] sm:$0xf] %vm3666, %v3640
        %3674 = vst.msk [vmem:[%s163 + $0x1c] sm:$0xf] %vm3666, %v3641
        %3675 = vst.msk [vmem:[%s163 + $0x20] sm:$0xf] %vm3666, %v3642
        %3676 = vst.msk [vmem:[%s163 + $0x24] sm:$0xf] %vm3666, %v3643
        %3677 = vst.msk [vmem:[%s163 + $0x28] sm:$0xf] %vm3666, %v3644
        %3678 = vst.msk [vmem:[%s163 + $0x2c] sm:$0xf] %vm3666, %v3645
        %3679 = vst.msk [vmem:[%s163 + $0x30] sm:$0xf] %vm3666, %v3646
        %3680 = vst.msk [vmem:[%s163 + $0x34] sm:$0xf] %vm3666, %v3647
        %3681 = vst.msk [vmem:[%s163 + $0x38] sm:$0xf] %vm3666, %v3648
        %3682 = vst.msk [vmem:[%s163 + $0x3c] sm:$0xf] %vm3666, %v3649
        %3683 = vst.msk [vmem:[%s163 + $0x40] sm:$0xf] %vm3666, %v3650
        %3684 = vst.msk [vmem:[%s163 + $0x44] sm:$0xf] %vm3666, %v3651
        %3685 = vst.msk [vmem:[%s163 + $0x48] sm:$0xf] %vm3666, %v3652
        %3686 = vst.msk [vmem:[%s163 + $0x4c] sm:$0xf] %vm3666, %v3653
        %3687 = vst.msk [vmem:[%s163 + $0x50] sm:$0xf] %vm3666, %v3654
        %3688 = vst.msk [vmem:[%s163 + $0x54] sm:$0xf] %vm3666, %v3655
        %3689 = vst.msk [vmem:[%s163 + $0x58] sm:$0xf] %vm3666, %v3656
        %3690 = vst.msk [vmem:[%s163 + $0x5c] sm:$0xf] %vm3666, %v3657
        %3691 = vst.msk [vmem:[%s163 + $0x60] sm:$0xf] %vm3666, %v3658
        %3692 = vst.msk [vmem:[%s163 + $0x64] sm:$0xf] %vm3666, %v3659
        %3693 = vst.msk [vmem:[%s163 + $0x68] sm:$0xf] %vm3666, %v3660
        %3694 = vst.msk [vmem:[%s163 + $0x6c] sm:$0xf] %vm3666, %v3661
        %3695 = vst.msk [vmem:[%s163 + $0x70] sm:$0xf] %vm3666, %v3662
        %3696 = vst.msk [vmem:[%s163 + $0x74] sm:$0xf] %vm3666, %v3663
        %3697 = vst.msk [vmem:[%s163 + $0x78] sm:$0xf] %vm3666, %v3664
        %3698 = vst.msk [vmem:[%s163 + $0x7c] sm:$0xf] %vm3666, %v3665
        %s3699 = sand.u32 %s93, 1
        %s3700 = scalar_lea.sflag [#allocation4], %s3699
        %s3701 = sand.u32 %s93, 1
        %s3702 = smul.addr %s3701, 128
        %s3703 = scalar_lea.vmem [#allocation3], %s3702
        // Predicated region
        $region33: #{tpu_custom_call.1} parent=31 // pred_check
          %p3704 = pneg %p103
        $region34: #{tpu_custom_call.1} parent=31 // pred_check_branch
          %3706 = sbr.rel (%p3704) target = $region36
        $region35: #{tpu_custom_call.1} parent=31 // pred_region
          %3708 = vsyncadd %s3700, 0
          %s3709 = smul.addr %s17, 32
          %s3710 = smul.addr %s3709, 4
          %s3711 = scalar_lea.hbm %s3, %s3710
          %s3712 = sshll.u32 %s3703, 4
          %s3713 = int_to_ptr.vmem [resolvable:$true] %s3712
          %s3714 = sshll.u32 %s3711, 4
          %s3715 = int_to_ptr.hbm [resolvable:$true] %s3714
          %3720 = dma.vmem_to_hbm [thread:$0]  %s3713, 2048, %s3715, %s3700, 64, 64, 4
        $region36: #{tpu_custom_call.1} parent=31 // pred_fallthru
          _
      $region32: #{tpu_custom_call.1} parent=5 // pred_fallthru
        _
      %p3721 = scmp.le.s32.totalorder 2, %s12
      // Predicated region
      $region37: #{tpu_custom_call.1} parent=5 // pred_check
        %p3722 = pneg %p3721
      $region38: #{tpu_custom_call.1} parent=5 // pred_check_branch
        %3724 = sbr.rel (%p3722) target = $region40
      $region39: #{tpu_custom_call.1} parent=5 // pred_region
        %s3725 = ssub.s32 %s12, 2
        // Predicated region
        $region41: #{tpu_custom_call.1} parent=39 // pred_check
          %p3726 = pneg %p109
        $region42: #{tpu_custom_call.1} parent=39 // pred_check_branch
          %3728 = sbr.rel (%p3726) target = $region44
        $region43: #{tpu_custom_call.1} parent=39 // pred_region
          %s3729 = sand.u32 %s94, 1
          %s3730 = scalar_lea.sflag [#allocation4], %s3729
          %s3731 = sand.u32 %s94, 1
          %s3732 = smul.addr %s3731, 128
          %s3733 = scalar_lea.vmem [#allocation3], %s3732
          %3735 = dma.done %s3730, 2048
        $region44: #{tpu_custom_call.1} parent=39 // pred_fallthru
          _
      $region40: #{tpu_custom_call.1} parent=5 // pred_fallthru
        _
    $region6: #{tpu_custom_call.1} parent=1 // loop_footer
      %s16 = sadd.s32 1, %s12
    $region7: #{tpu_custom_call.1} parent=1 // loop_footer_branch
      %11 = sbr.rel target = $region3
    $region8: #{tpu_custom_call.1} parent=1 // loop_exit
      _
    %3736 = vsyncpa [#allocation4], 1
    %s3737 = scalar_lea.sflag [#allocation4], 1
    %3738 = vsyncpa %s3737, 1

</llo_original>
